<compile_context>
chip_gen: v7x
topology: tpu7x:2x2x1
jax: 0.10.0
libtpu: 0.0.40
codegen_flags: <defaults>
</compile_context>

<pallas_src>
import math
from functools import partial

import jax
import jax.numpy as jnp
from jax import lax
from jax.experimental import pallas as pl
from jax.experimental.pallas import tpu as pltpu


# --------------------------------------------------------------------------
# Weight-blob layout (single fused VMEM input).
# --------------------------------------------------------------------------
def _blob_layout(I, H, F):
    entries = [
        ("e0_wih", I, 3 * H),   # encoder L0 input->gates
        ("w01",    H, 6 * H),   # [whh0 | e1_wih]  (fused wavefront matmul)
        ("whh1",   H, 3 * H),   # encoder L1 hidden->gates
        ("d0_w",   H, H),       # dec0 Linear
        ("wk",     H, H),       # attention key proj   (bias dropped: exact)
        ("wv",     H, H),       # attention value proj (bias folded into b_dec)
        ("w_hid",  H, 4 * H),   # [wq*scale | dc_whh]
        ("w_ov",   H, 3 * H),   # wo @ dc_w_attn
        ("w_tf",   F, 3 * H),   # decoder time-feature -> gates
        ("e0_bih", 1, 3 * H),
        ("b01",    1, 6 * H),   # [e0_bhh | e1_bih]
        ("bhh1",   1, 3 * H),
        ("d0_b",   1, H),
        ("b_hid",  1, 4 * H),   # [bq*scale | dc_bhh]
        ("b_dec",  1, 3 * H),   # dc_bih + (bv@wo + bo) @ dc_w_attn
        ("w_last", 1, 3 * H),
        ("fc_w",   1, H),
        ("fc_b",   1, 1),
    ]
    layout = {}
    row = 0
    for name, nr, nc in entries:
        layout[name] = (row, nr, nc)
        row += ((nr + 7) // 8) * 8          # sublane-aligned row offsets
    ncols = ((max(nc for _, _, nc in entries) + 127) // 128) * 128
    return layout, row, ncols


def pack_params(params):
    """Fuse + pack all weights into one VMEM blob.  Run ONCE per model."""
    H = params["hidden_size"]
    I = params["e0_wih"].shape[0]
    F = params["dc_w_tf"].shape[0]
    scale = 1.0 / math.sqrt(H)

    fused = {
        "e0_wih": params["e0_wih"],
        "w01": jnp.concatenate([params["e0_whh"], params["e1_wih"]], axis=1),
        "whh1": params["e1_whh"],
        "d0_w": params["d0_w"],
        "wk": params["wk"],
        "wv": params["wv"],
        "w_hid": jnp.concatenate([params["wq"] * scale, params["dc_whh"]], axis=1),
        "w_ov": params["wo"] @ params["dc_w_attn"],
        "w_tf": params["dc_w_tf"],
        "e0_bih": params["e0_bih"],
        "b01": jnp.concatenate([params["e0_bhh"], params["e1_bih"]], axis=1),
        "bhh1": params["e1_bhh"],
        "d0_b": params["d0_b"],
        "b_hid": jnp.concatenate([params["bq"] * scale, params["dc_bhh"]], axis=1),
        "b_dec": params["dc_bih"]
                 + (params["bv"] @ params["wo"] + params["bo"]) @ params["dc_w_attn"],
        "w_last": params["dc_w_last"],
        "fc_w": params["fc_w"],
        "fc_b": params["fc_b"],
    }
    layout, nrows, ncols = _blob_layout(I, H, F)
    blob = jnp.zeros((nrows, ncols), jnp.float32)
    for name, (r, nr, nc) in layout.items():
        blob = blob.at[r:r + nr, 0:nc].set(fused[name].astype(jnp.float32))
    return blob


# --------------------------------------------------------------------------
# Kernel
# --------------------------------------------------------------------------
def _make_kernel(Bp, S, I, H, T, F, layout):
    H2, H3, H4, H6 = 2 * H, 3 * H, 4 * H, 6 * H
    f32 = jnp.float32

    def view(blob_ref, name):
        r, nr, nc = layout[name]
        return blob_ref[r:r + nr, 0:nc]

    def gru_gates(gi, gh, h):
        # PyTorch GRU gate order: r (reset), z (update), n (new)
        r = jax.nn.sigmoid(gi[:, 0:H] + gh[:, 0:H])
        z = jax.nn.sigmoid(gi[:, H:H2] + gh[:, H:H2])
        n = jnp.tanh(gi[:, H2:H3] + r * gh[:, H2:H3])
        return (1.0 - z) * n + z * h

    def kernel(src_ref, tf_ref, blob_ref, out_ref,
               gi0_ref, st_ref, gt_ref, k_ref, v_ref):

        # ---- hoisted encoder L0 input gates: ONE (S*Bp,I)@(I,3H) matmul ----
        gi0_ref[...] = (jnp.dot(src_ref[...], view(blob_ref, "e0_wih"),
                                preferred_element_type=f32)
                        + view(blob_ref, "e0_bih"))

        # ---- wavefront-interleaved 2-layer encoder (S+1 combined steps) ----
        b01_b = jnp.broadcast_to(view(blob_ref, "b01"), (Bp, H6))
        bhh1_b = jnp.broadcast_to(view(blob_ref, "bhh1"), (Bp, H3))
        zero_h = jnp.zeros((Bp, H), f32)

        # combined step 0: h0[0] only (h0[-1] = 0 -> gh0 = bhh0)
        h0 = gru_gates(gi0_ref[0:Bp, :], b01_b[:, 0:H3], zero_h)
        h1 = zero_h
        for k in range(1, S + 1):                       # fully unrolled
            # one h0-dependent matmul: [gh0 | gi1] together
            g01 = (jnp.dot(h0, view(blob_ref, "w01"),
                           preferred_element_type=f32) + b01_b)
            if k == 1:
                gh1 = bhh1_b                            # h1[-1] = 0
            else:
                gh1 = (jnp.dot(h1, view(blob_ref, "whh1"),
                               preferred_element_type=f32) + bhh1_b)
            h1_new = gru_gates(g01[:, H3:H6], gh1, h1)  # h1[k-1]
            st_ref[(k - 1) * Bp:k * Bp, :] = h1_new
            if k < S:
                h0 = gru_gates(gi0_ref[k * Bp:(k + 1) * Bp, :],
                               g01[:, 0:H3], h0)        # h0[k]
            h1 = h1_new

        # dec0 linear on the last encoder state
        hidden = (jnp.dot(h1, view(blob_ref, "d0_w"),
                          preferred_element_type=f32) + view(blob_ref, "d0_b"))

        # ---- K / V (bias-free; folds done offline), built once, off-chain ----
        st = st_ref[...]
        k_ref[...] = jnp.dot(st, view(blob_ref, "wk"), preferred_element_type=f32)
        v_ref[...] = jnp.dot(st, view(blob_ref, "wv"), preferred_element_type=f32)

        # ---- hoisted decoder tf + bias gates: ONE (T*Bp,F)@(F,3H) matmul ----
        gt_ref[...] = (jnp.dot(tf_ref[...], view(blob_ref, "w_tf"),
                               preferred_element_type=f32)
                       + view(blob_ref, "b_dec"))

        # ---- in-kernel attention mask: 0 same-batch / -1e30 cross-batch ----
        jcol = lax.broadcasted_iota(jnp.int32, (Bp, S * Bp), 1)
        irow = lax.broadcasted_iota(jnp.int32, (Bp, S * Bp), 0)
        d = jcol - irow
        same = d == 0
        for s in range(1, S):
            same = jnp.logical_or(same, d == s * Bp)
        attn_bias = jnp.where(same, 0.0, -1e30).astype(f32)

        # small loop-invariants: broadcast once, outside the decode loop
        b_hid_b = jnp.broadcast_to(view(blob_ref, "b_hid"), (Bp, H4))
        w_last_b = jnp.broadcast_to(view(blob_ref, "w_last"), (Bp, H3))
        fc_w_b = jnp.broadcast_to(view(blob_ref, "fc_w"), (Bp, H))
        fc_b_b = jnp.broadcast_to(view(blob_ref, "fc_b"), (Bp, 1))

        tcol = lax.broadcasted_iota(jnp.int32, (Bp, T), 1)
        last_value = src_ref[(S - 1) * Bp:S * Bp, 0:1]     # src[:, -1, 0:1]
        preds = jnp.zeros((Bp, T), f32)

        # ------------------ autoregressive decoder (unrolled) ----------------
        for t in range(T):
            # one hidden-dependent matmul: scaled q and the h-gates together
            hp = (jnp.dot(hidden, view(blob_ref, "w_hid"),
                          preferred_element_type=f32) + b_hid_b)
            q = hp[:, 0:H]                               # already * 1/sqrt(H)
            gh = hp[:, H:H4]

            # single-head attention over encoder states (flat (s,b) layout)
            raw = lax.dot_general(q, k_ref[...], (((1,), (1,)), ((), ())),
                                  preferred_element_type=f32)     # (Bp, S*Bp)
            sc = raw + attn_bias
            m = jnp.max(sc, axis=-1, keepdims=True)
            e = jnp.exp(sc - m)
            denom = jnp.sum(e, axis=-1, keepdims=True)
            wgt = e * pl.reciprocal(denom, approx=False)
            attn_raw = jnp.dot(wgt, v_ref[...],
                               preferred_element_type=f32)        # (Bp, H)

            # GRUCell input gates (wo / bo / bv folded offline)
            gi = (last_value * w_last_b
                  + gt_ref[t * Bp:(t + 1) * Bp, :]
                  + jnp.dot(attn_raw, view(blob_ref, "w_ov"),
                            preferred_element_type=f32))
            hidden = gru_gates(gi, gh, hidden)

            # fc: Linear(H, 1) as a lane reduction
            pred = jnp.sum(hidden * fc_w_b, axis=-1, keepdims=True) + fc_b_b
            preds = jnp.where(tcol == t, pred, preds)
            last_value = pred

        out_ref[...] = preds                              # single dense store

    return kernel


# --------------------------------------------------------------------------
# Wrapper
# --------------------------------------------------------------------------
@partial(jax.jit, static_argnames=("hidden_size",))
def attention_seq2seq_forward(blob, src, future_time_features, *, hidden_size):
    B, S, I = src.shape
    _, T, F = future_time_features.shape
    H = hidden_size
    Bp = ((B + 7) // 8) * 8                # pad batch to a full sublane tile

    def flat_time_major(x):
        b, L, D = x.shape
        x = jnp.pad(x.astype(jnp.float32), ((0, Bp - b), (0, 0), (0, 0)))
        return jnp.transpose(x, (1, 0, 2)).reshape(L * Bp, D)   # row = l*Bp + b

    src_f = flat_time_major(src)                        # (S*Bp, I)
    tf_f = flat_time_major(future_time_features)        # (T*Bp, F)

    layout, _, _ = _blob_layout(I, H, F)
    kernel = _make_kernel(Bp, S, I, H, T, F, layout)

    out = pl.pallas_call(
        kernel,
        out_shape=jax.ShapeDtypeStruct((Bp, T), jnp.float32),
        in_specs=[pl.BlockSpec(memory_space=pltpu.MemorySpace.VMEM)] * 3,
        out_specs=pl.BlockSpec(memory_space=pltpu.MemorySpace.VMEM),
        scratch_shapes=[
            pltpu.VMEM((S * Bp, 3 * H), jnp.float32),   # encoder L0 input gates
            pltpu.VMEM((S * Bp, H), jnp.float32),       # encoder L1 states
            pltpu.VMEM((T * Bp, 3 * H), jnp.float32),   # decoder tf gates
            pltpu.VMEM((S * Bp, H), jnp.float32),       # attention K
            pltpu.VMEM((S * Bp, H), jnp.float32),       # attention V
        ],
    )(src_f, tf_f, blob)
    return out[:B, :, None]                # (B, T, 1), matches PyTorch output


# --------------------------------------------------------------------------
# Parameter init (PyTorch-equivalent layouts) and pure-JAX reference
# --------------------------------------------------------------------------
def init_params(key, input_size, hidden_size, num_layers, time_feature_size):
    assert num_layers == 2, "kernel is specialized to the 2-layer encoder used here"
    H = hidden_size
    F = time_feature_size
    bound = 1.0 / math.sqrt(H)
    keys = iter(jax.random.split(key, 32))

    def u(shape):
        return jax.random.uniform(next(keys), shape, jnp.float32,
                                  minval=-bound, maxval=bound)

    p = {"hidden_size": H}
    # encoder GRU layer 0 / 1 (PyTorch stores (3H, in); keep transposed (in, 3H))
    p["e0_wih"] = u((3 * H, input_size)).T
    p["e0_whh"] = u((3 * H, H)).T
    p["e0_bih"] = u((3 * H,)).reshape(1, 3 * H)
    p["e0_bhh"] = u((3 * H,)).reshape(1, 3 * H)
    p["e1_wih"] = u((3 * H, H)).T
    p["e1_whh"] = u((3 * H, H)).T
    p["e1_bih"] = u((3 * H,)).reshape(1, 3 * H)
    p["e1_bhh"] = u((3 * H,)).reshape(1, 3 * H)
    # dec0 Linear(H, H)
    p["d0_w"] = u((H, H)).T
    p["d0_b"] = u((H,)).reshape(1, H)
    # MultiheadAttention (embed_dim=H, num_heads=1): in_proj split q/k/v + out_proj
    p["wq"] = u((H, H)).T
    p["wk"] = u((H, H)).T
    p["wv"] = u((H, H)).T
    p["bq"] = u((H,)).reshape(1, H)
    p["bk"] = u((H,)).reshape(1, H)
    p["bv"] = u((H,)).reshape(1, H)
    p["wo"] = u((H, H)).T
    p["bo"] = u((H,)).reshape(1, H)
    # decoder GRUCell(input_size = 1 + F + H, hidden_size = H)
    D = 1 + F + H
    wih_dec_t = u((3 * H, D)).T           # (D, 3H)
    p["dc_w_last"] = wih_dec_t[0:1]       # (1, 3H)
    p["dc_w_tf"] = wih_dec_t[1:1 + F]     # (F, 3H)
    p["dc_w_attn"] = wih_dec_t[1 + F:]    # (H, 3H)
    p["dc_whh"] = u((3 * H, H)).T
    p["dc_bih"] = u((3 * H,)).reshape(1, 3 * H)
    p["dc_bhh"] = u((3 * H,)).reshape(1, 3 * H)
    # fc Linear(H, 1): keep PyTorch layout (1, H) for the lane-reduction form
    p["fc_w"] = u((1, H))
    p["fc_b"] = u((1,)).reshape(1, 1)
    return p


def reference_forward(params, src, future_time_features):
    """Pure-JAX reference mirroring PyTorch semantics (targets=None path)."""
    H = params["hidden_size"]
    B, S, I = src.shape
    _, T, F = future_time_features.shape

    def gru_step(x, h, wih, whh, bih, bhh):
        gi = x @ wih + bih
        gh = h @ whh + bhh
        r = jax.nn.sigmoid(gi[:, :H] + gh[:, :H])
        z = jax.nn.sigmoid(gi[:, H:2 * H] + gh[:, H:2 * H])
        n = jnp.tanh(gi[:, 2 * H:] + r * gh[:, 2 * H:])
        return (1.0 - z) * n + z * h

    h0 = jnp.zeros((B, H), jnp.float32)
    layer0 = []
    for t in range(S):
        h0 = gru_step(src[:, t], h0, params["e0_wih"], params["e0_whh"],
                      params["e0_bih"], params["e0_bhh"])
        layer0.append(h0)
    h1 = jnp.zeros((B, H), jnp.float32)
    states = []
    for t in range(S):
        h1 = gru_step(layer0[t], h1, params["e1_wih"], params["e1_whh"],
                      params["e1_bih"], params["e1_bhh"])
        states.append(h1)
    states = jnp.stack(states, axis=1)                      # (B, S, H)

    hidden = states[:, -1] @ params["d0_w"] + params["d0_b"]
    last_value = src[:, -1, 0:1]
    Kp = states @ params["wk"] + params["bk"]
    Vp = states @ params["wv"] + params["bv"]
    scale = 1.0 / math.sqrt(H)

    outs = []
    for t in range(T):
        q = hidden @ params["wq"] + params["bq"]
        scores = jnp.einsum("bh,bsh->bs", q, Kp) * scale
        w = jax.nn.softmax(scores, axis=-1)
        attn = jnp.einsum("bs,bsh->bh", w, Vp)
        attn = attn @ params["wo"] + params["bo"]
        tfeat = future_time_features[:, t]
        gi = (last_value * params["dc_w_last"] + tfeat @ params["dc_w_tf"]
              + attn @ params["dc_w_attn"] + params["dc_bih"])
        gh = hidden @ params["dc_whh"] + params["dc_bhh"]
        r = jax.nn.sigmoid(gi[:, :H] + gh[:, :H])
        z = jax.nn.sigmoid(gi[:, H:2 * H] + gh[:, H:2 * H])
        n = jnp.tanh(gi[:, 2 * H:] + r * gh[:, 2 * H:])
        hidden = (1.0 - z) * n + z * hidden
        pred = jnp.sum(hidden * params["fc_w"], axis=-1, keepdims=True) + params["fc_b"]
        outs.append(pred)
        last_value = pred
    return jnp.stack(outs, axis=1)                          # (B, T, 1)


if __name__ == "__main__":
    # small shapes consistent with the module's forward
    B, S, I, H, L, F, T = 2, 8, 3, 32, 2, 4, 4

    key = jax.random.PRNGKey(0)
    pkey, skey, tkey = jax.random.split(key, 3)
    params = init_params(pkey, I, H, L, F)
    src = jax.random.normal(skey, (B, S, I), jnp.float32)
    future_time_features = jax.random.normal(tkey, (B, T, F), jnp.float32)

    # weight fusion/packing runs ONCE, not per forward call
    blob = jax.block_until_ready(pack_params(params))

    out = attention_seq2seq_forward(blob, src, future_time_features, hidden_size=H)
    out = jax.block_until_ready(out)
    assert out.shape == (B, T, 1), out.shape

    with jax.default_matmul_precision("highest"):
        ref = reference_forward(params, src, future_time_features)
    max_err = float(jnp.max(jnp.abs(out - ref)))
    assert max_err < 1e-2, f"kernel/reference mismatch: {max_err}"

    print("KERNEL_OK")
</pallas_src>

<mosaic_0001>
module attributes {stable_mosaic.version = 11 : i64} {
  func.func @kernel(%arg0: memref<64x3xf32, #tpu.memory_space<vmem>>, %arg1: memref<32x4xf32, #tpu.memory_space<vmem>>, %arg2: memref<312x256xf32, #tpu.memory_space<vmem>>, %arg3: memref<8x4xf32, #tpu.memory_space<vmem>>, %arg4: memref<64x96xf32, #tpu.memory_space<vmem>>, %arg5: memref<64x32xf32, #tpu.memory_space<vmem>>, %arg6: memref<32x96xf32, #tpu.memory_space<vmem>>, %arg7: memref<64x32xf32, #tpu.memory_space<vmem>>, %arg8: memref<64x32xf32, #tpu.memory_space<vmem>>) attributes {dimension_semantics = [], scalar_prefetch = 0 : i64, scratch_operands = 5 : i64, tpu.core_type = #tpu.core_type<tc>} {
    %c0 = arith.constant 0 : index
    %c0_0 = arith.constant 0 : index
    %0 = vector.load %arg0[%c0, %c0_0] : memref<64x3xf32, #tpu.memory_space<vmem>>, vector<64x3xf32>
    %c0_1 = arith.constant 0 : index
    %c0_2 = arith.constant 0 : index
    %1 = vector.load %arg2[%c0_1, %c0_2] : memref<312x256xf32, #tpu.memory_space<vmem>>, vector<3x96xf32>
    %cst = arith.constant dense<0.000000e+00> : vector<64x96xf32>
    %2 = tpu.matmul %0, %1, %cst {dimension_numbers = #tpu.dot_dimension_numbers<[1], [0], [0], [1], [0, 0, 1, 1], [], []>} : vector<64x3xf32>, vector<3x96xf32>, vector<64x96xf32> -> vector<64x96xf32>
    %c240 = arith.constant 240 : index
    %c0_3 = arith.constant 0 : index
    %3 = vector.load %arg2[%c240, %c0_3] : memref<312x256xf32, #tpu.memory_space<vmem>>, vector<1x96xf32>
    %4 = vector.broadcast %3 : vector<1x96xf32> to vector<64x96xf32>
    %5 = arith.addf %2, %4 : vector<64x96xf32>
    %c0_4 = arith.constant 0 : index
    %c0_5 = arith.constant 0 : index
    %6 = vector.load %arg4[%c0_4, %c0_5] : memref<64x96xf32, #tpu.memory_space<vmem>>, vector<64x96xf32>
    tpu.vector_store %arg4[%c0_4, %c0_5], %5 {strides = array<i32>} : memref<64x96xf32, #tpu.memory_space<vmem>>, vector<64x96xf32>,
    %c248 = arith.constant 248 : index
    %c0_6 = arith.constant 0 : index
    %7 = vector.load %arg2[%c248, %c0_6] : memref<312x256xf32, #tpu.memory_space<vmem>>, vector<1x192xf32>
    %8 = vector.shape_cast %7 : vector<1x192xf32> to vector<1x192xf32>
    %9 = vector.broadcast %8 : vector<1x192xf32> to vector<8x192xf32>
    %c256 = arith.constant 256 : index
    %c0_7 = arith.constant 0 : index
    %10 = vector.load %arg2[%c256, %c0_7] : memref<312x256xf32, #tpu.memory_space<vmem>>, vector<1x96xf32>
    %11 = vector.shape_cast %10 : vector<1x96xf32> to vector<1x96xf32>
    %12 = vector.broadcast %11 : vector<1x96xf32> to vector<8x96xf32>
    %cst_8 = arith.constant 0.000000e+00 : f32
    %13 = vector.broadcast %cst_8 : f32 to vector<8x32xf32>
    %c0_9 = arith.constant 0 : index
    %c0_10 = arith.constant 0 : index
    %14 = vector.load %arg4[%c0_9, %c0_10] : memref<64x96xf32, #tpu.memory_space<vmem>>, vector<8x96xf32>
    %15 = vector.extract_strided_slice %9 {offsets = [0, 0], sizes = [8, 96], strides = [1, 1]} : vector<8x192xf32> to vector<8x96xf32>
    %16 = vector.extract_strided_slice %14 {offsets = [0, 0], sizes = [8, 32], strides = [1, 1]} : vector<8x96xf32> to vector<8x32xf32>
    %17 = vector.extract_strided_slice %15 {offsets = [0, 0], sizes = [8, 32], strides = [1, 1]} : vector<8x96xf32> to vector<8x32xf32>
    %18 = arith.addf %16, %17 : vector<8x32xf32>
    %19 = arith.negf %18 : vector<8x32xf32>
    %20 = math.exp %19 : vector<8x32xf32>
    %cst_11 = arith.constant 1.000000e+00 : f32
    %21 = vector.broadcast %cst_11 : f32 to vector<8x32xf32>
    %22 = arith.addf %21, %20 : vector<8x32xf32>
    %23 = arith.divf %21, %22 : vector<8x32xf32>
    %24 = vector.extract_strided_slice %14 {offsets = [0, 32], sizes = [8, 32], strides = [1, 1]} : vector<8x96xf32> to vector<8x32xf32>
    %25 = vector.extract_strided_slice %15 {offsets = [0, 32], sizes = [8, 32], strides = [1, 1]} : vector<8x96xf32> to vector<8x32xf32>
    %26 = arith.addf %24, %25 : vector<8x32xf32>
    %27 = arith.negf %26 : vector<8x32xf32>
    %28 = math.exp %27 : vector<8x32xf32>
    %cst_12 = arith.constant 1.000000e+00 : f32
    %29 = vector.broadcast %cst_12 : f32 to vector<8x32xf32>
    %30 = arith.addf %29, %28 : vector<8x32xf32>
    %31 = arith.divf %29, %30 : vector<8x32xf32>
    %32 = vector.extract_strided_slice %14 {offsets = [0, 64], sizes = [8, 32], strides = [1, 1]} : vector<8x96xf32> to vector<8x32xf32>
    %33 = vector.extract_strided_slice %15 {offsets = [0, 64], sizes = [8, 32], strides = [1, 1]} : vector<8x96xf32> to vector<8x32xf32>
    %34 = arith.mulf %23, %33 : vector<8x32xf32>
    %35 = arith.addf %32, %34 : vector<8x32xf32>
    %36 = math.tanh %35 : vector<8x32xf32>
    %cst_13 = arith.constant 1.000000e+00 : f32
    %37 = vector.broadcast %cst_13 : f32 to vector<8x32xf32>
    %38 = arith.subf %37, %31 : vector<8x32xf32>
    %39 = arith.mulf %38, %36 : vector<8x32xf32>
    %40 = arith.mulf %31, %13 : vector<8x32xf32>
    %41 = arith.addf %39, %40 : vector<8x32xf32>
    %c8 = arith.constant 8 : index
    %c0_14 = arith.constant 0 : index
    %42 = vector.load %arg2[%c8, %c0_14] : memref<312x256xf32, #tpu.memory_space<vmem>>, vector<32x192xf32>
    %cst_15 = arith.constant dense<0.000000e+00> : vector<8x192xf32>
    %43 = tpu.matmul %41, %42, %cst_15 {dimension_numbers = #tpu.dot_dimension_numbers<[1], [0], [0], [1], [0, 0, 1, 1], [], []>} : vector<8x32xf32>, vector<32x192xf32>, vector<8x192xf32> -> vector<8x192xf32>
    %44 = arith.addf %43, %9 : vector<8x192xf32>
    %45 = vector.extract_strided_slice %44 {offsets = [0, 96], sizes = [8, 96], strides = [1, 1]} : vector<8x192xf32> to vector<8x96xf32>
    %46 = vector.extract_strided_slice %45 {offsets = [0, 0], sizes = [8, 32], strides = [1, 1]} : vector<8x96xf32> to vector<8x32xf32>
    %47 = vector.extract_strided_slice %12 {offsets = [0, 0], sizes = [8, 32], strides = [1, 1]} : vector<8x96xf32> to vector<8x32xf32>
    %48 = arith.addf %46, %47 : vector<8x32xf32>
    %49 = arith.negf %48 : vector<8x32xf32>
    %50 = math.exp %49 : vector<8x32xf32>
    %cst_16 = arith.constant 1.000000e+00 : f32
    %51 = vector.broadcast %cst_16 : f32 to vector<8x32xf32>
    %52 = arith.addf %51, %50 : vector<8x32xf32>
    %53 = arith.divf %51, %52 : vector<8x32xf32>
    %54 = vector.extract_strided_slice %45 {offsets = [0, 32], sizes = [8, 32], strides = [1, 1]} : vector<8x96xf32> to vector<8x32xf32>
    %55 = vector.extract_strided_slice %12 {offsets = [0, 32], sizes = [8, 32], strides = [1, 1]} : vector<8x96xf32> to vector<8x32xf32>
    %56 = arith.addf %54, %55 : vector<8x32xf32>
    %57 = arith.negf %56 : vector<8x32xf32>
    %58 = math.exp %57 : vector<8x32xf32>
    %cst_17 = arith.constant 1.000000e+00 : f32
    %59 = vector.broadcast %cst_17 : f32 to vector<8x32xf32>
    %60 = arith.addf %59, %58 : vector<8x32xf32>
    %61 = arith.divf %59, %60 : vector<8x32xf32>
    %62 = vector.extract_strided_slice %45 {offsets = [0, 64], sizes = [8, 32], strides = [1, 1]} : vector<8x96xf32> to vector<8x32xf32>
    %63 = vector.extract_strided_slice %12 {offsets = [0, 64], sizes = [8, 32], strides = [1, 1]} : vector<8x96xf32> to vector<8x32xf32>
    %64 = arith.mulf %53, %63 : vector<8x32xf32>
    %65 = arith.addf %62, %64 : vector<8x32xf32>
    %66 = math.tanh %65 : vector<8x32xf32>
    %cst_18 = arith.constant 1.000000e+00 : f32
    %67 = vector.broadcast %cst_18 : f32 to vector<8x32xf32>
    %68 = arith.subf %67, %61 : vector<8x32xf32>
    %69 = arith.mulf %68, %66 : vector<8x32xf32>
    %70 = arith.mulf %61, %13 : vector<8x32xf32>
    %71 = arith.addf %69, %70 : vector<8x32xf32>
    %c0_19 = arith.constant 0 : index
    %c0_20 = arith.constant 0 : index
    %72 = vector.load %arg5[%c0_19, %c0_20] : memref<64x32xf32, #tpu.memory_space<vmem>>, vector<8x32xf32>
    tpu.vector_store %arg5[%c0_19, %c0_20], %71 {strides = array<i32>} : memref<64x32xf32, #tpu.memory_space<vmem>>, vector<8x32xf32>,
    %c8_21 = arith.constant 8 : index
    %c0_22 = arith.constant 0 : index
    %73 = vector.load %arg4[%c8_21, %c0_22] : memref<64x96xf32, #tpu.memory_space<vmem>>, vector<8x96xf32>
    %74 = vector.extract_strided_slice %44 {offsets = [0, 0], sizes = [8, 96], strides = [1, 1]} : vector<8x192xf32> to vector<8x96xf32>
    %75 = vector.extract_strided_slice %73 {offsets = [0, 0], sizes = [8, 32], strides = [1, 1]} : vector<8x96xf32> to vector<8x32xf32>
    %76 = vector.extract_strided_slice %74 {offsets = [0, 0], sizes = [8, 32], strides = [1, 1]} : vector<8x96xf32> to vector<8x32xf32>
    %77 = arith.addf %75, %76 : vector<8x32xf32>
    %78 = arith.negf %77 : vector<8x32xf32>
    %79 = math.exp %78 : vector<8x32xf32>
    %cst_23 = arith.constant 1.000000e+00 : f32
    %80 = vector.broadcast %cst_23 : f32 to vector<8x32xf32>
    %81 = arith.addf %80, %79 : vector<8x32xf32>
    %82 = arith.divf %80, %81 : vector<8x32xf32>
    %83 = vector.extract_strided_slice %73 {offsets = [0, 32], sizes = [8, 32], strides = [1, 1]} : vector<8x96xf32> to vector<8x32xf32>
    %84 = vector.extract_strided_slice %74 {offsets = [0, 32], sizes = [8, 32], strides = [1, 1]} : vector<8x96xf32> to vector<8x32xf32>
    %85 = arith.addf %83, %84 : vector<8x32xf32>
    %86 = arith.negf %85 : vector<8x32xf32>
    %87 = math.exp %86 : vector<8x32xf32>
    %cst_24 = arith.constant 1.000000e+00 : f32
    %88 = vector.broadcast %cst_24 : f32 to vector<8x32xf32>
    %89 = arith.addf %88, %87 : vector<8x32xf32>
    %90 = arith.divf %88, %89 : vector<8x32xf32>
    %91 = vector.extract_strided_slice %73 {offsets = [0, 64], sizes = [8, 32], strides = [1, 1]} : vector<8x96xf32> to vector<8x32xf32>
    %92 = vector.extract_strided_slice %74 {offsets = [0, 64], sizes = [8, 32], strides = [1, 1]} : vector<8x96xf32> to vector<8x32xf32>
    %93 = arith.mulf %82, %92 : vector<8x32xf32>
    %94 = arith.addf %91, %93 : vector<8x32xf32>
    %95 = math.tanh %94 : vector<8x32xf32>
    %cst_25 = arith.constant 1.000000e+00 : f32
    %96 = vector.broadcast %cst_25 : f32 to vector<8x32xf32>
    %97 = arith.subf %96, %90 : vector<8x32xf32>
    %98 = arith.mulf %97, %95 : vector<8x32xf32>
    %99 = arith.mulf %90, %41 : vector<8x32xf32>
    %100 = arith.addf %98, %99 : vector<8x32xf32>
    %c8_26 = arith.constant 8 : index
    %c0_27 = arith.constant 0 : index
    %101 = vector.load %arg2[%c8_26, %c0_27] : memref<312x256xf32, #tpu.memory_space<vmem>>, vector<32x192xf32>
    %cst_28 = arith.constant dense<0.000000e+00> : vector<8x192xf32>
    %102 = tpu.matmul %100, %101, %cst_28 {dimension_numbers = #tpu.dot_dimension_numbers<[1], [0], [0], [1], [0, 0, 1, 1], [], []>} : vector<8x32xf32>, vector<32x192xf32>, vector<8x192xf32> -> vector<8x192xf32>
    %103 = arith.addf %102, %9 : vector<8x192xf32>
    %c40 = arith.constant 40 : index
    %c0_29 = arith.constant 0 : index
    %104 = vector.load %arg2[%c40, %c0_29] : memref<312x256xf32, #tpu.memory_space<vmem>>, vector<32x96xf32>
    %cst_30 = arith.constant dense<0.000000e+00> : vector<8x96xf32>
    %105 = tpu.matmul %71, %104, %cst_30 {dimension_numbers = #tpu.dot_dimension_numbers<[1], [0], [0], [1], [0, 0, 1, 1], [], []>} : vector<8x32xf32>, vector<32x96xf32>, vector<8x96xf32> -> vector<8x96xf32>
    %106 = arith.addf %105, %12 : vector<8x96xf32>
    %107 = vector.extract_strided_slice %103 {offsets = [0, 96], sizes = [8, 96], strides = [1, 1]} : vector<8x192xf32> to vector<8x96xf32>
    %108 = vector.extract_strided_slice %107 {offsets = [0, 0], sizes = [8, 32], strides = [1, 1]} : vector<8x96xf32> to vector<8x32xf32>
    %109 = vector.extract_strided_slice %106 {offsets = [0, 0], sizes = [8, 32], strides = [1, 1]} : vector<8x96xf32> to vector<8x32xf32>
    %110 = arith.addf %108, %109 : vector<8x32xf32>
    %111 = arith.negf %110 : vector<8x32xf32>
    %112 = math.exp %111 : vector<8x32xf32>
    %cst_31 = arith.constant 1.000000e+00 : f32
    %113 = vector.broadcast %cst_31 : f32 to vector<8x32xf32>
    %114 = arith.addf %113, %112 : vector<8x32xf32>
    %115 = arith.divf %113, %114 : vector<8x32xf32>
    %116 = vector.extract_strided_slice %107 {offsets = [0, 32], sizes = [8, 32], strides = [1, 1]} : vector<8x96xf32> to vector<8x32xf32>
    %117 = vector.extract_strided_slice %106 {offsets = [0, 32], sizes = [8, 32], strides = [1, 1]} : vector<8x96xf32> to vector<8x32xf32>
    %118 = arith.addf %116, %117 : vector<8x32xf32>
    %119 = arith.negf %118 : vector<8x32xf32>
    %120 = math.exp %119 : vector<8x32xf32>
    %cst_32 = arith.constant 1.000000e+00 : f32
    %121 = vector.broadcast %cst_32 : f32 to vector<8x32xf32>
    %122 = arith.addf %121, %120 : vector<8x32xf32>
    %123 = arith.divf %121, %122 : vector<8x32xf32>
    %124 = vector.extract_strided_slice %107 {offsets = [0, 64], sizes = [8, 32], strides = [1, 1]} : vector<8x96xf32> to vector<8x32xf32>
    %125 = vector.extract_strided_slice %106 {offsets = [0, 64], sizes = [8, 32], strides = [1, 1]} : vector<8x96xf32> to vector<8x32xf32>
    %126 = arith.mulf %115, %125 : vector<8x32xf32>
    %127 = arith.addf %124, %126 : vector<8x32xf32>
    %128 = math.tanh %127 : vector<8x32xf32>
    %cst_33 = arith.constant 1.000000e+00 : f32
    %129 = vector.broadcast %cst_33 : f32 to vector<8x32xf32>
    %130 = arith.subf %129, %123 : vector<8x32xf32>
    %131 = arith.mulf %130, %128 : vector<8x32xf32>
    %132 = arith.mulf %123, %71 : vector<8x32xf32>
    %133 = arith.addf %131, %132 : vector<8x32xf32>
    %c8_34 = arith.constant 8 : index
    %c0_35 = arith.constant 0 : index
    %134 = vector.load %arg5[%c8_34, %c0_35] : memref<64x32xf32, #tpu.memory_space<vmem>>, vector<8x32xf32>
    tpu.vector_store %arg5[%c8_34, %c0_35], %133 {strides = array<i32>} : memref<64x32xf32, #tpu.memory_space<vmem>>, vector<8x32xf32>,
    %c16 = arith.constant 16 : index
    %c0_36 = arith.constant 0 : index
    %135 = vector.load %arg4[%c16, %c0_36] : memref<64x96xf32, #tpu.memory_space<vmem>>, vector<8x96xf32>
    %136 = vector.extract_strided_slice %103 {offsets = [0, 0], sizes = [8, 96], strides = [1, 1]} : vector<8x192xf32> to vector<8x96xf32>
    %137 = vector.extract_strided_slice %135 {offsets = [0, 0], sizes = [8, 32], strides = [1, 1]} : vector<8x96xf32> to vector<8x32xf32>
    %138 = vector.extract_strided_slice %136 {offsets = [0, 0], sizes = [8, 32], strides = [1, 1]} : vector<8x96xf32> to vector<8x32xf32>
    %139 = arith.addf %137, %138 : vector<8x32xf32>
    %140 = arith.negf %139 : vector<8x32xf32>
    %141 = math.exp %140 : vector<8x32xf32>
    %cst_37 = arith.constant 1.000000e+00 : f32
    %142 = vector.broadcast %cst_37 : f32 to vector<8x32xf32>
    %143 = arith.addf %142, %141 : vector<8x32xf32>
    %144 = arith.divf %142, %143 : vector<8x32xf32>
    %145 = vector.extract_strided_slice %135 {offsets = [0, 32], sizes = [8, 32], strides = [1, 1]} : vector<8x96xf32> to vector<8x32xf32>
    %146 = vector.extract_strided_slice %136 {offsets = [0, 32], sizes = [8, 32], strides = [1, 1]} : vector<8x96xf32> to vector<8x32xf32>
    %147 = arith.addf %145, %146 : vector<8x32xf32>
    %148 = arith.negf %147 : vector<8x32xf32>
    %149 = math.exp %148 : vector<8x32xf32>
    %cst_38 = arith.constant 1.000000e+00 : f32
    %150 = vector.broadcast %cst_38 : f32 to vector<8x32xf32>
    %151 = arith.addf %150, %149 : vector<8x32xf32>
    %152 = arith.divf %150, %151 : vector<8x32xf32>
    %153 = vector.extract_strided_slice %135 {offsets = [0, 64], sizes = [8, 32], strides = [1, 1]} : vector<8x96xf32> to vector<8x32xf32>
    %154 = vector.extract_strided_slice %136 {offsets = [0, 64], sizes = [8, 32], strides = [1, 1]} : vector<8x96xf32> to vector<8x32xf32>
    %155 = arith.mulf %144, %154 : vector<8x32xf32>
    %156 = arith.addf %153, %155 : vector<8x32xf32>
    %157 = math.tanh %156 : vector<8x32xf32>
    %cst_39 = arith.constant 1.000000e+00 : f32
    %158 = vector.broadcast %cst_39 : f32 to vector<8x32xf32>
    %159 = arith.subf %158, %152 : vector<8x32xf32>
    %160 = arith.mulf %159, %157 : vector<8x32xf32>
    %161 = arith.mulf %152, %100 : vector<8x32xf32>
    %162 = arith.addf %160, %161 : vector<8x32xf32>
    %c8_40 = arith.constant 8 : index
    %c0_41 = arith.constant 0 : index
    %163 = vector.load %arg2[%c8_40, %c0_41] : memref<312x256xf32, #tpu.memory_space<vmem>>, vector<32x192xf32>
    %cst_42 = arith.constant dense<0.000000e+00> : vector<8x192xf32>
    %164 = tpu.matmul %162, %163, %cst_42 {dimension_numbers = #tpu.dot_dimension_numbers<[1], [0], [0], [1], [0, 0, 1, 1], [], []>} : vector<8x32xf32>, vector<32x192xf32>, vector<8x192xf32> -> vector<8x192xf32>
    %165 = arith.addf %164, %9 : vector<8x192xf32>
    %c40_43 = arith.constant 40 : index
    %c0_44 = arith.constant 0 : index
    %166 = vector.load %arg2[%c40_43, %c0_44] : memref<312x256xf32, #tpu.memory_space<vmem>>, vector<32x96xf32>
    %cst_45 = arith.constant dense<0.000000e+00> : vector<8x96xf32>
    %167 = tpu.matmul %133, %166, %cst_45 {dimension_numbers = #tpu.dot_dimension_numbers<[1], [0], [0], [1], [0, 0, 1, 1], [], []>} : vector<8x32xf32>, vector<32x96xf32>, vector<8x96xf32> -> vector<8x96xf32>
    %168 = arith.addf %167, %12 : vector<8x96xf32>
    %169 = vector.extract_strided_slice %165 {offsets = [0, 96], sizes = [8, 96], strides = [1, 1]} : vector<8x192xf32> to vector<8x96xf32>
    %170 = vector.extract_strided_slice %169 {offsets = [0, 0], sizes = [8, 32], strides = [1, 1]} : vector<8x96xf32> to vector<8x32xf32>
    %171 = vector.extract_strided_slice %168 {offsets = [0, 0], sizes = [8, 32], strides = [1, 1]} : vector<8x96xf32> to vector<8x32xf32>
    %172 = arith.addf %170, %171 : vector<8x32xf32>
    %173 = arith.negf %172 : vector<8x32xf32>
    %174 = math.exp %173 : vector<8x32xf32>
    %cst_46 = arith.constant 1.000000e+00 : f32
    %175 = vector.broadcast %cst_46 : f32 to vector<8x32xf32>
    %176 = arith.addf %175, %174 : vector<8x32xf32>
    %177 = arith.divf %175, %176 : vector<8x32xf32>
    %178 = vector.extract_strided_slice %169 {offsets = [0, 32], sizes = [8, 32], strides = [1, 1]} : vector<8x96xf32> to vector<8x32xf32>
    %179 = vector.extract_strided_slice %168 {offsets = [0, 32], sizes = [8, 32], strides = [1, 1]} : vector<8x96xf32> to vector<8x32xf32>
    %180 = arith.addf %178, %179 : vector<8x32xf32>
    %181 = arith.negf %180 : vector<8x32xf32>
    %182 = math.exp %181 : vector<8x32xf32>
    %cst_47 = arith.constant 1.000000e+00 : f32
    %183 = vector.broadcast %cst_47 : f32 to vector<8x32xf32>
    %184 = arith.addf %183, %182 : vector<8x32xf32>
    %185 = arith.divf %183, %184 : vector<8x32xf32>
    %186 = vector.extract_strided_slice %169 {offsets = [0, 64], sizes = [8, 32], strides = [1, 1]} : vector<8x96xf32> to vector<8x32xf32>
    %187 = vector.extract_strided_slice %168 {offsets = [0, 64], sizes = [8, 32], strides = [1, 1]} : vector<8x96xf32> to vector<8x32xf32>
    %188 = arith.mulf %177, %187 : vector<8x32xf32>
    %189 = arith.addf %186, %188 : vector<8x32xf32>
    %190 = math.tanh %189 : vector<8x32xf32>
    %cst_48 = arith.constant 1.000000e+00 : f32
    %191 = vector.broadcast %cst_48 : f32 to vector<8x32xf32>
    %192 = arith.subf %191, %185 : vector<8x32xf32>
    %193 = arith.mulf %192, %190 : vector<8x32xf32>
    %194 = arith.mulf %185, %133 : vector<8x32xf32>
    %195 = arith.addf %193, %194 : vector<8x32xf32>
    %c16_49 = arith.constant 16 : index
    %c0_50 = arith.constant 0 : index
    %196 = vector.load %arg5[%c16_49, %c0_50] : memref<64x32xf32, #tpu.memory_space<vmem>>, vector<8x32xf32>
    tpu.vector_store %arg5[%c16_49, %c0_50], %195 {strides = array<i32>} : memref<64x32xf32, #tpu.memory_space<vmem>>, vector<8x32xf32>,
    %c24 = arith.constant 24 : index
    %c0_51 = arith.constant 0 : index
    %197 = vector.load %arg4[%c24, %c0_51] : memref<64x96xf32, #tpu.memory_space<vmem>>, vector<8x96xf32>
    %198 = vector.extract_strided_slice %165 {offsets = [0, 0], sizes = [8, 96], strides = [1, 1]} : vector<8x192xf32> to vector<8x96xf32>
    %199 = vector.extract_strided_slice %197 {offsets = [0, 0], sizes = [8, 32], strides = [1, 1]} : vector<8x96xf32> to vector<8x32xf32>
    %200 = vector.extract_strided_slice %198 {offsets = [0, 0], sizes = [8, 32], strides = [1, 1]} : vector<8x96xf32> to vector<8x32xf32>
    %201 = arith.addf %199, %200 : vector<8x32xf32>
    %202 = arith.negf %201 : vector<8x32xf32>
    %203 = math.exp %202 : vector<8x32xf32>
    %cst_52 = arith.constant 1.000000e+00 : f32
    %204 = vector.broadcast %cst_52 : f32 to vector<8x32xf32>
    %205 = arith.addf %204, %203 : vector<8x32xf32>
    %206 = arith.divf %204, %205 : vector<8x32xf32>
    %207 = vector.extract_strided_slice %197 {offsets = [0, 32], sizes = [8, 32], strides = [1, 1]} : vector<8x96xf32> to vector<8x32xf32>
    %208 = vector.extract_strided_slice %198 {offsets = [0, 32], sizes = [8, 32], strides = [1, 1]} : vector<8x96xf32> to vector<8x32xf32>
    %209 = arith.addf %207, %208 : vector<8x32xf32>
    %210 = arith.negf %209 : vector<8x32xf32>
    %211 = math.exp %210 : vector<8x32xf32>
    %cst_53 = arith.constant 1.000000e+00 : f32
    %212 = vector.broadcast %cst_53 : f32 to vector<8x32xf32>
    %213 = arith.addf %212, %211 : vector<8x32xf32>
    %214 = arith.divf %212, %213 : vector<8x32xf32>
    %215 = vector.extract_strided_slice %197 {offsets = [0, 64], sizes = [8, 32], strides = [1, 1]} : vector<8x96xf32> to vector<8x32xf32>
    %216 = vector.extract_strided_slice %198 {offsets = [0, 64], sizes = [8, 32], strides = [1, 1]} : vector<8x96xf32> to vector<8x32xf32>
    %217 = arith.mulf %206, %216 : vector<8x32xf32>
    %218 = arith.addf %215, %217 : vector<8x32xf32>
    %219 = math.tanh %218 : vector<8x32xf32>
    %cst_54 = arith.constant 1.000000e+00 : f32
    %220 = vector.broadcast %cst_54 : f32 to vector<8x32xf32>
    %221 = arith.subf %220, %214 : vector<8x32xf32>
    %222 = arith.mulf %221, %219 : vector<8x32xf32>
    %223 = arith.mulf %214, %162 : vector<8x32xf32>
    %224 = arith.addf %222, %223 : vector<8x32xf32>
    %c8_55 = arith.constant 8 : index
    %c0_56 = arith.constant 0 : index
    %225 = vector.load %arg2[%c8_55, %c0_56] : memref<312x256xf32, #tpu.memory_space<vmem>>, vector<32x192xf32>
    %cst_57 = arith.constant dense<0.000000e+00> : vector<8x192xf32>
    %226 = tpu.matmul %224, %225, %cst_57 {dimension_numbers = #tpu.dot_dimension_numbers<[1], [0], [0], [1], [0, 0, 1, 1], [], []>} : vector<8x32xf32>, vector<32x192xf32>, vector<8x192xf32> -> vector<8x192xf32>
    %227 = arith.addf %226, %9 : vector<8x192xf32>
    %c40_58 = arith.constant 40 : index
    %c0_59 = arith.constant 0 : index
    %228 = vector.load %arg2[%c40_58, %c0_59] : memref<312x256xf32, #tpu.memory_space<vmem>>, vector<32x96xf32>
    %cst_60 = arith.constant dense<0.000000e+00> : vector<8x96xf32>
    %229 = tpu.matmul %195, %228, %cst_60 {dimension_numbers = #tpu.dot_dimension_numbers<[1], [0], [0], [1], [0, 0, 1, 1], [], []>} : vector<8x32xf32>, vector<32x96xf32>, vector<8x96xf32> -> vector<8x96xf32>
    %230 = arith.addf %229, %12 : vector<8x96xf32>
    %231 = vector.extract_strided_slice %227 {offsets = [0, 96], sizes = [8, 96], strides = [1, 1]} : vector<8x192xf32> to vector<8x96xf32>
    %232 = vector.extract_strided_slice %231 {offsets = [0, 0], sizes = [8, 32], strides = [1, 1]} : vector<8x96xf32> to vector<8x32xf32>
    %233 = vector.extract_strided_slice %230 {offsets = [0, 0], sizes = [8, 32], strides = [1, 1]} : vector<8x96xf32> to vector<8x32xf32>
    %234 = arith.addf %232, %233 : vector<8x32xf32>
    %235 = arith.negf %234 : vector<8x32xf32>
    %236 = math.exp %235 : vector<8x32xf32>
    %cst_61 = arith.constant 1.000000e+00 : f32
    %237 = vector.broadcast %cst_61 : f32 to vector<8x32xf32>
    %238 = arith.addf %237, %236 : vector<8x32xf32>
    %239 = arith.divf %237, %238 : vector<8x32xf32>
    %240 = vector.extract_strided_slice %231 {offsets = [0, 32], sizes = [8, 32], strides = [1, 1]} : vector<8x96xf32> to vector<8x32xf32>
    %241 = vector.extract_strided_slice %230 {offsets = [0, 32], sizes = [8, 32], strides = [1, 1]} : vector<8x96xf32> to vector<8x32xf32>
    %242 = arith.addf %240, %241 : vector<8x32xf32>
    %243 = arith.negf %242 : vector<8x32xf32>
    %244 = math.exp %243 : vector<8x32xf32>
    %cst_62 = arith.constant 1.000000e+00 : f32
    %245 = vector.broadcast %cst_62 : f32 to vector<8x32xf32>
    %246 = arith.addf %245, %244 : vector<8x32xf32>
    %247 = arith.divf %245, %246 : vector<8x32xf32>
    %248 = vector.extract_strided_slice %231 {offsets = [0, 64], sizes = [8, 32], strides = [1, 1]} : vector<8x96xf32> to vector<8x32xf32>
    %249 = vector.extract_strided_slice %230 {offsets = [0, 64], sizes = [8, 32], strides = [1, 1]} : vector<8x96xf32> to vector<8x32xf32>
    %250 = arith.mulf %239, %249 : vector<8x32xf32>
    %251 = arith.addf %248, %250 : vector<8x32xf32>
    %252 = math.tanh %251 : vector<8x32xf32>
    %cst_63 = arith.constant 1.000000e+00 : f32
    %253 = vector.broadcast %cst_63 : f32 to vector<8x32xf32>
    %254 = arith.subf %253, %247 : vector<8x32xf32>
    %255 = arith.mulf %254, %252 : vector<8x32xf32>
    %256 = arith.mulf %247, %195 : vector<8x32xf32>
    %257 = arith.addf %255, %256 : vector<8x32xf32>
    %c24_64 = arith.constant 24 : index
    %c0_65 = arith.constant 0 : index
    %258 = vector.load %arg5[%c24_64, %c0_65] : memref<64x32xf32, #tpu.memory_space<vmem>>, vector<8x32xf32>
    tpu.vector_store %arg5[%c24_64, %c0_65], %257 {strides = array<i32>} : memref<64x32xf32, #tpu.memory_space<vmem>>, vector<8x32xf32>,
    %c32 = arith.constant 32 : index
    %c0_66 = arith.constant 0 : index
    %259 = vector.load %arg4[%c32, %c0_66] : memref<64x96xf32, #tpu.memory_space<vmem>>, vector<8x96xf32>
    %260 = vector.extract_strided_slice %227 {offsets = [0, 0], sizes = [8, 96], strides = [1, 1]} : vector<8x192xf32> to vector<8x96xf32>
    %261 = vector.extract_strided_slice %259 {offsets = [0, 0], sizes = [8, 32], strides = [1, 1]} : vector<8x96xf32> to vector<8x32xf32>
    %262 = vector.extract_strided_slice %260 {offsets = [0, 0], sizes = [8, 32], strides = [1, 1]} : vector<8x96xf32> to vector<8x32xf32>
    %263 = arith.addf %261, %262 : vector<8x32xf32>
    %264 = arith.negf %263 : vector<8x32xf32>
    %265 = math.exp %264 : vector<8x32xf32>
    %cst_67 = arith.constant 1.000000e+00 : f32
    %266 = vector.broadcast %cst_67 : f32 to vector<8x32xf32>
    %267 = arith.addf %266, %265 : vector<8x32xf32>
    %268 = arith.divf %266, %267 : vector<8x32xf32>
    %269 = vector.extract_strided_slice %259 {offsets = [0, 32], sizes = [8, 32], strides = [1, 1]} : vector<8x96xf32> to vector<8x32xf32>
    %270 = vector.extract_strided_slice %260 {offsets = [0, 32], sizes = [8, 32], strides = [1, 1]} : vector<8x96xf32> to vector<8x32xf32>
    %271 = arith.addf %269, %270 : vector<8x32xf32>
    %272 = arith.negf %271 : vector<8x32xf32>
    %273 = math.exp %272 : vector<8x32xf32>
    %cst_68 = arith.constant 1.000000e+00 : f32
    %274 = vector.broadcast %cst_68 : f32 to vector<8x32xf32>
    %275 = arith.addf %274, %273 : vector<8x32xf32>
    %276 = arith.divf %274, %275 : vector<8x32xf32>
    %277 = vector.extract_strided_slice %259 {offsets = [0, 64], sizes = [8, 32], strides = [1, 1]} : vector<8x96xf32> to vector<8x32xf32>
    %278 = vector.extract_strided_slice %260 {offsets = [0, 64], sizes = [8, 32], strides = [1, 1]} : vector<8x96xf32> to vector<8x32xf32>
    %279 = arith.mulf %268, %278 : vector<8x32xf32>
    %280 = arith.addf %277, %279 : vector<8x32xf32>
    %281 = math.tanh %280 : vector<8x32xf32>
    %cst_69 = arith.constant 1.000000e+00 : f32
    %282 = vector.broadcast %cst_69 : f32 to vector<8x32xf32>
    %283 = arith.subf %282, %276 : vector<8x32xf32>
    %284 = arith.mulf %283, %281 : vector<8x32xf32>
    %285 = arith.mulf %276, %224 : vector<8x32xf32>
    %286 = arith.addf %284, %285 : vector<8x32xf32>
    %c8_70 = arith.constant 8 : index
    %c0_71 = arith.constant 0 : index
    %287 = vector.load %arg2[%c8_70, %c0_71] : memref<312x256xf32, #tpu.memory_space<vmem>>, vector<32x192xf32>
    %cst_72 = arith.constant dense<0.000000e+00> : vector<8x192xf32>
    %288 = tpu.matmul %286, %287, %cst_72 {dimension_numbers = #tpu.dot_dimension_numbers<[1], [0], [0], [1], [0, 0, 1, 1], [], []>} : vector<8x32xf32>, vector<32x192xf32>, vector<8x192xf32> -> vector<8x192xf32>
    %289 = arith.addf %288, %9 : vector<8x192xf32>
    %c40_73 = arith.constant 40 : index
    %c0_74 = arith.constant 0 : index
    %290 = vector.load %arg2[%c40_73, %c0_74] : memref<312x256xf32, #tpu.memory_space<vmem>>, vector<32x96xf32>
    %cst_75 = arith.constant dense<0.000000e+00> : vector<8x96xf32>
    %291 = tpu.matmul %257, %290, %cst_75 {dimension_numbers = #tpu.dot_dimension_numbers<[1], [0], [0], [1], [0, 0, 1, 1], [], []>} : vector<8x32xf32>, vector<32x96xf32>, vector<8x96xf32> -> vector<8x96xf32>
    %292 = arith.addf %291, %12 : vector<8x96xf32>
    %293 = vector.extract_strided_slice %289 {offsets = [0, 96], sizes = [8, 96], strides = [1, 1]} : vector<8x192xf32> to vector<8x96xf32>
    %294 = vector.extract_strided_slice %293 {offsets = [0, 0], sizes = [8, 32], strides = [1, 1]} : vector<8x96xf32> to vector<8x32xf32>
    %295 = vector.extract_strided_slice %292 {offsets = [0, 0], sizes = [8, 32], strides = [1, 1]} : vector<8x96xf32> to vector<8x32xf32>
    %296 = arith.addf %294, %295 : vector<8x32xf32>
    %297 = arith.negf %296 : vector<8x32xf32>
    %298 = math.exp %297 : vector<8x32xf32>
    %cst_76 = arith.constant 1.000000e+00 : f32
    %299 = vector.broadcast %cst_76 : f32 to vector<8x32xf32>
    %300 = arith.addf %299, %298 : vector<8x32xf32>
    %301 = arith.divf %299, %300 : vector<8x32xf32>
    %302 = vector.extract_strided_slice %293 {offsets = [0, 32], sizes = [8, 32], strides = [1, 1]} : vector<8x96xf32> to vector<8x32xf32>
    %303 = vector.extract_strided_slice %292 {offsets = [0, 32], sizes = [8, 32], strides = [1, 1]} : vector<8x96xf32> to vector<8x32xf32>
    %304 = arith.addf %302, %303 : vector<8x32xf32>
    %305 = arith.negf %304 : vector<8x32xf32>
    %306 = math.exp %305 : vector<8x32xf32>
    %cst_77 = arith.constant 1.000000e+00 : f32
    %307 = vector.broadcast %cst_77 : f32 to vector<8x32xf32>
    %308 = arith.addf %307, %306 : vector<8x32xf32>
    %309 = arith.divf %307, %308 : vector<8x32xf32>
    %310 = vector.extract_strided_slice %293 {offsets = [0, 64], sizes = [8, 32], strides = [1, 1]} : vector<8x96xf32> to vector<8x32xf32>
    %311 = vector.extract_strided_slice %292 {offsets = [0, 64], sizes = [8, 32], strides = [1, 1]} : vector<8x96xf32> to vector<8x32xf32>
    %312 = arith.mulf %301, %311 : vector<8x32xf32>
    %313 = arith.addf %310, %312 : vector<8x32xf32>
    %314 = math.tanh %313 : vector<8x32xf32>
    %cst_78 = arith.constant 1.000000e+00 : f32
    %315 = vector.broadcast %cst_78 : f32 to vector<8x32xf32>
    %316 = arith.subf %315, %309 : vector<8x32xf32>
    %317 = arith.mulf %316, %314 : vector<8x32xf32>
    %318 = arith.mulf %309, %257 : vector<8x32xf32>
    %319 = arith.addf %317, %318 : vector<8x32xf32>
    %c32_79 = arith.constant 32 : index
    %c0_80 = arith.constant 0 : index
    %320 = vector.load %arg5[%c32_79, %c0_80] : memref<64x32xf32, #tpu.memory_space<vmem>>, vector<8x32xf32>
    tpu.vector_store %arg5[%c32_79, %c0_80], %319 {strides = array<i32>} : memref<64x32xf32, #tpu.memory_space<vmem>>, vector<8x32xf32>,
    %c40_81 = arith.constant 40 : index
    %c0_82 = arith.constant 0 : index
    %321 = vector.load %arg4[%c40_81, %c0_82] : memref<64x96xf32, #tpu.memory_space<vmem>>, vector<8x96xf32>
    %322 = vector.extract_strided_slice %289 {offsets = [0, 0], sizes = [8, 96], strides = [1, 1]} : vector<8x192xf32> to vector<8x96xf32>
    %323 = vector.extract_strided_slice %321 {offsets = [0, 0], sizes = [8, 32], strides = [1, 1]} : vector<8x96xf32> to vector<8x32xf32>
    %324 = vector.extract_strided_slice %322 {offsets = [0, 0], sizes = [8, 32], strides = [1, 1]} : vector<8x96xf32> to vector<8x32xf32>
    %325 = arith.addf %323, %324 : vector<8x32xf32>
    %326 = arith.negf %325 : vector<8x32xf32>
    %327 = math.exp %326 : vector<8x32xf32>
    %cst_83 = arith.constant 1.000000e+00 : f32
    %328 = vector.broadcast %cst_83 : f32 to vector<8x32xf32>
    %329 = arith.addf %328, %327 : vector<8x32xf32>
    %330 = arith.divf %328, %329 : vector<8x32xf32>
    %331 = vector.extract_strided_slice %321 {offsets = [0, 32], sizes = [8, 32], strides = [1, 1]} : vector<8x96xf32> to vector<8x32xf32>
    %332 = vector.extract_strided_slice %322 {offsets = [0, 32], sizes = [8, 32], strides = [1, 1]} : vector<8x96xf32> to vector<8x32xf32>
    %333 = arith.addf %331, %332 : vector<8x32xf32>
    %334 = arith.negf %333 : vector<8x32xf32>
    %335 = math.exp %334 : vector<8x32xf32>
    %cst_84 = arith.constant 1.000000e+00 : f32
    %336 = vector.broadcast %cst_84 : f32 to vector<8x32xf32>
    %337 = arith.addf %336, %335 : vector<8x32xf32>
    %338 = arith.divf %336, %337 : vector<8x32xf32>
    %339 = vector.extract_strided_slice %321 {offsets = [0, 64], sizes = [8, 32], strides = [1, 1]} : vector<8x96xf32> to vector<8x32xf32>
    %340 = vector.extract_strided_slice %322 {offsets = [0, 64], sizes = [8, 32], strides = [1, 1]} : vector<8x96xf32> to vector<8x32xf32>
    %341 = arith.mulf %330, %340 : vector<8x32xf32>
    %342 = arith.addf %339, %341 : vector<8x32xf32>
    %343 = math.tanh %342 : vector<8x32xf32>
    %cst_85 = arith.constant 1.000000e+00 : f32
    %344 = vector.broadcast %cst_85 : f32 to vector<8x32xf32>
    %345 = arith.subf %344, %338 : vector<8x32xf32>
    %346 = arith.mulf %345, %343 : vector<8x32xf32>
    %347 = arith.mulf %338, %286 : vector<8x32xf32>
    %348 = arith.addf %346, %347 : vector<8x32xf32>
    %c8_86 = arith.constant 8 : index
    %c0_87 = arith.constant 0 : index
    %349 = vector.load %arg2[%c8_86, %c0_87] : memref<312x256xf32, #tpu.memory_space<vmem>>, vector<32x192xf32>
    %cst_88 = arith.constant dense<0.000000e+00> : vector<8x192xf32>
    %350 = tpu.matmul %348, %349, %cst_88 {dimension_numbers = #tpu.dot_dimension_numbers<[1], [0], [0], [1], [0, 0, 1, 1], [], []>} : vector<8x32xf32>, vector<32x192xf32>, vector<8x192xf32> -> vector<8x192xf32>
    %351 = arith.addf %350, %9 : vector<8x192xf32>
    %c40_89 = arith.constant 40 : index
    %c0_90 = arith.constant 0 : index
    %352 = vector.load %arg2[%c40_89, %c0_90] : memref<312x256xf32, #tpu.memory_space<vmem>>, vector<32x96xf32>
    %cst_91 = arith.constant dense<0.000000e+00> : vector<8x96xf32>
    %353 = tpu.matmul %319, %352, %cst_91 {dimension_numbers = #tpu.dot_dimension_numbers<[1], [0], [0], [1], [0, 0, 1, 1], [], []>} : vector<8x32xf32>, vector<32x96xf32>, vector<8x96xf32> -> vector<8x96xf32>
    %354 = arith.addf %353, %12 : vector<8x96xf32>
    %355 = vector.extract_strided_slice %351 {offsets = [0, 96], sizes = [8, 96], strides = [1, 1]} : vector<8x192xf32> to vector<8x96xf32>
    %356 = vector.extract_strided_slice %355 {offsets = [0, 0], sizes = [8, 32], strides = [1, 1]} : vector<8x96xf32> to vector<8x32xf32>
    %357 = vector.extract_strided_slice %354 {offsets = [0, 0], sizes = [8, 32], strides = [1, 1]} : vector<8x96xf32> to vector<8x32xf32>
    %358 = arith.addf %356, %357 : vector<8x32xf32>
    %359 = arith.negf %358 : vector<8x32xf32>
    %360 = math.exp %359 : vector<8x32xf32>
    %cst_92 = arith.constant 1.000000e+00 : f32
    %361 = vector.broadcast %cst_92 : f32 to vector<8x32xf32>
    %362 = arith.addf %361, %360 : vector<8x32xf32>
    %363 = arith.divf %361, %362 : vector<8x32xf32>
    %364 = vector.extract_strided_slice %355 {offsets = [0, 32], sizes = [8, 32], strides = [1, 1]} : vector<8x96xf32> to vector<8x32xf32>
    %365 = vector.extract_strided_slice %354 {offsets = [0, 32], sizes = [8, 32], strides = [1, 1]} : vector<8x96xf32> to vector<8x32xf32>
    %366 = arith.addf %364, %365 : vector<8x32xf32>
    %367 = arith.negf %366 : vector<8x32xf32>
    %368 = math.exp %367 : vector<8x32xf32>
    %cst_93 = arith.constant 1.000000e+00 : f32
    %369 = vector.broadcast %cst_93 : f32 to vector<8x32xf32>
    %370 = arith.addf %369, %368 : vector<8x32xf32>
    %371 = arith.divf %369, %370 : vector<8x32xf32>
    %372 = vector.extract_strided_slice %355 {offsets = [0, 64], sizes = [8, 32], strides = [1, 1]} : vector<8x96xf32> to vector<8x32xf32>
    %373 = vector.extract_strided_slice %354 {offsets = [0, 64], sizes = [8, 32], strides = [1, 1]} : vector<8x96xf32> to vector<8x32xf32>
    %374 = arith.mulf %363, %373 : vector<8x32xf32>
    %375 = arith.addf %372, %374 : vector<8x32xf32>
    %376 = math.tanh %375 : vector<8x32xf32>
    %cst_94 = arith.constant 1.000000e+00 : f32
    %377 = vector.broadcast %cst_94 : f32 to vector<8x32xf32>
    %378 = arith.subf %377, %371 : vector<8x32xf32>
    %379 = arith.mulf %378, %376 : vector<8x32xf32>
    %380 = arith.mulf %371, %319 : vector<8x32xf32>
    %381 = arith.addf %379, %380 : vector<8x32xf32>
    %c40_95 = arith.constant 40 : index
    %c0_96 = arith.constant 0 : index
    %382 = vector.load %arg5[%c40_95, %c0_96] : memref<64x32xf32, #tpu.memory_space<vmem>>, vector<8x32xf32>
    tpu.vector_store %arg5[%c40_95, %c0_96], %381 {strides = array<i32>} : memref<64x32xf32, #tpu.memory_space<vmem>>, vector<8x32xf32>,
    %c48 = arith.constant 48 : index
    %c0_97 = arith.constant 0 : index
    %383 = vector.load %arg4[%c48, %c0_97] : memref<64x96xf32, #tpu.memory_space<vmem>>, vector<8x96xf32>
    %384 = vector.extract_strided_slice %351 {offsets = [0, 0], sizes = [8, 96], strides = [1, 1]} : vector<8x192xf32> to vector<8x96xf32>
    %385 = vector.extract_strided_slice %383 {offsets = [0, 0], sizes = [8, 32], strides = [1, 1]} : vector<8x96xf32> to vector<8x32xf32>
    %386 = vector.extract_strided_slice %384 {offsets = [0, 0], sizes = [8, 32], strides = [1, 1]} : vector<8x96xf32> to vector<8x32xf32>
    %387 = arith.addf %385, %386 : vector<8x32xf32>
    %388 = arith.negf %387 : vector<8x32xf32>
    %389 = math.exp %388 : vector<8x32xf32>
    %cst_98 = arith.constant 1.000000e+00 : f32
    %390 = vector.broadcast %cst_98 : f32 to vector<8x32xf32>
    %391 = arith.addf %390, %389 : vector<8x32xf32>
    %392 = arith.divf %390, %391 : vector<8x32xf32>
    %393 = vector.extract_strided_slice %383 {offsets = [0, 32], sizes = [8, 32], strides = [1, 1]} : vector<8x96xf32> to vector<8x32xf32>
    %394 = vector.extract_strided_slice %384 {offsets = [0, 32], sizes = [8, 32], strides = [1, 1]} : vector<8x96xf32> to vector<8x32xf32>
    %395 = arith.addf %393, %394 : vector<8x32xf32>
    %396 = arith.negf %395 : vector<8x32xf32>
    %397 = math.exp %396 : vector<8x32xf32>
    %cst_99 = arith.constant 1.000000e+00 : f32
    %398 = vector.broadcast %cst_99 : f32 to vector<8x32xf32>
    %399 = arith.addf %398, %397 : vector<8x32xf32>
    %400 = arith.divf %398, %399 : vector<8x32xf32>
    %401 = vector.extract_strided_slice %383 {offsets = [0, 64], sizes = [8, 32], strides = [1, 1]} : vector<8x96xf32> to vector<8x32xf32>
    %402 = vector.extract_strided_slice %384 {offsets = [0, 64], sizes = [8, 32], strides = [1, 1]} : vector<8x96xf32> to vector<8x32xf32>
    %403 = arith.mulf %392, %402 : vector<8x32xf32>
    %404 = arith.addf %401, %403 : vector<8x32xf32>
    %405 = math.tanh %404 : vector<8x32xf32>
    %cst_100 = arith.constant 1.000000e+00 : f32
    %406 = vector.broadcast %cst_100 : f32 to vector<8x32xf32>
    %407 = arith.subf %406, %400 : vector<8x32xf32>
    %408 = arith.mulf %407, %405 : vector<8x32xf32>
    %409 = arith.mulf %400, %348 : vector<8x32xf32>
    %410 = arith.addf %408, %409 : vector<8x32xf32>
    %c8_101 = arith.constant 8 : index
    %c0_102 = arith.constant 0 : index
    %411 = vector.load %arg2[%c8_101, %c0_102] : memref<312x256xf32, #tpu.memory_space<vmem>>, vector<32x192xf32>
    %cst_103 = arith.constant dense<0.000000e+00> : vector<8x192xf32>
    %412 = tpu.matmul %410, %411, %cst_103 {dimension_numbers = #tpu.dot_dimension_numbers<[1], [0], [0], [1], [0, 0, 1, 1], [], []>} : vector<8x32xf32>, vector<32x192xf32>, vector<8x192xf32> -> vector<8x192xf32>
    %413 = arith.addf %412, %9 : vector<8x192xf32>
    %c40_104 = arith.constant 40 : index
    %c0_105 = arith.constant 0 : index
    %414 = vector.load %arg2[%c40_104, %c0_105] : memref<312x256xf32, #tpu.memory_space<vmem>>, vector<32x96xf32>
    %cst_106 = arith.constant dense<0.000000e+00> : vector<8x96xf32>
    %415 = tpu.matmul %381, %414, %cst_106 {dimension_numbers = #tpu.dot_dimension_numbers<[1], [0], [0], [1], [0, 0, 1, 1], [], []>} : vector<8x32xf32>, vector<32x96xf32>, vector<8x96xf32> -> vector<8x96xf32>
    %416 = arith.addf %415, %12 : vector<8x96xf32>
    %417 = vector.extract_strided_slice %413 {offsets = [0, 96], sizes = [8, 96], strides = [1, 1]} : vector<8x192xf32> to vector<8x96xf32>
    %418 = vector.extract_strided_slice %417 {offsets = [0, 0], sizes = [8, 32], strides = [1, 1]} : vector<8x96xf32> to vector<8x32xf32>
    %419 = vector.extract_strided_slice %416 {offsets = [0, 0], sizes = [8, 32], strides = [1, 1]} : vector<8x96xf32> to vector<8x32xf32>
    %420 = arith.addf %418, %419 : vector<8x32xf32>
    %421 = arith.negf %420 : vector<8x32xf32>
    %422 = math.exp %421 : vector<8x32xf32>
    %cst_107 = arith.constant 1.000000e+00 : f32
    %423 = vector.broadcast %cst_107 : f32 to vector<8x32xf32>
    %424 = arith.addf %423, %422 : vector<8x32xf32>
    %425 = arith.divf %423, %424 : vector<8x32xf32>
    %426 = vector.extract_strided_slice %417 {offsets = [0, 32], sizes = [8, 32], strides = [1, 1]} : vector<8x96xf32> to vector<8x32xf32>
    %427 = vector.extract_strided_slice %416 {offsets = [0, 32], sizes = [8, 32], strides = [1, 1]} : vector<8x96xf32> to vector<8x32xf32>
    %428 = arith.addf %426, %427 : vector<8x32xf32>
    %429 = arith.negf %428 : vector<8x32xf32>
    %430 = math.exp %429 : vector<8x32xf32>
    %cst_108 = arith.constant 1.000000e+00 : f32
    %431 = vector.broadcast %cst_108 : f32 to vector<8x32xf32>
    %432 = arith.addf %431, %430 : vector<8x32xf32>
    %433 = arith.divf %431, %432 : vector<8x32xf32>
    %434 = vector.extract_strided_slice %417 {offsets = [0, 64], sizes = [8, 32], strides = [1, 1]} : vector<8x96xf32> to vector<8x32xf32>
    %435 = vector.extract_strided_slice %416 {offsets = [0, 64], sizes = [8, 32], strides = [1, 1]} : vector<8x96xf32> to vector<8x32xf32>
    %436 = arith.mulf %425, %435 : vector<8x32xf32>
    %437 = arith.addf %434, %436 : vector<8x32xf32>
    %438 = math.tanh %437 : vector<8x32xf32>
    %cst_109 = arith.constant 1.000000e+00 : f32
    %439 = vector.broadcast %cst_109 : f32 to vector<8x32xf32>
    %440 = arith.subf %439, %433 : vector<8x32xf32>
    %441 = arith.mulf %440, %438 : vector<8x32xf32>
    %442 = arith.mulf %433, %381 : vector<8x32xf32>
    %443 = arith.addf %441, %442 : vector<8x32xf32>
    %c48_110 = arith.constant 48 : index
    %c0_111 = arith.constant 0 : index
    %444 = vector.load %arg5[%c48_110, %c0_111] : memref<64x32xf32, #tpu.memory_space<vmem>>, vector<8x32xf32>
    tpu.vector_store %arg5[%c48_110, %c0_111], %443 {strides = array<i32>} : memref<64x32xf32, #tpu.memory_space<vmem>>, vector<8x32xf32>,
    %c56 = arith.constant 56 : index
    %c0_112 = arith.constant 0 : index
    %445 = vector.load %arg4[%c56, %c0_112] : memref<64x96xf32, #tpu.memory_space<vmem>>, vector<8x96xf32>
    %446 = vector.extract_strided_slice %413 {offsets = [0, 0], sizes = [8, 96], strides = [1, 1]} : vector<8x192xf32> to vector<8x96xf32>
    %447 = vector.extract_strided_slice %445 {offsets = [0, 0], sizes = [8, 32], strides = [1, 1]} : vector<8x96xf32> to vector<8x32xf32>
    %448 = vector.extract_strided_slice %446 {offsets = [0, 0], sizes = [8, 32], strides = [1, 1]} : vector<8x96xf32> to vector<8x32xf32>
    %449 = arith.addf %447, %448 : vector<8x32xf32>
    %450 = arith.negf %449 : vector<8x32xf32>
    %451 = math.exp %450 : vector<8x32xf32>
    %cst_113 = arith.constant 1.000000e+00 : f32
    %452 = vector.broadcast %cst_113 : f32 to vector<8x32xf32>
    %453 = arith.addf %452, %451 : vector<8x32xf32>
    %454 = arith.divf %452, %453 : vector<8x32xf32>
    %455 = vector.extract_strided_slice %445 {offsets = [0, 32], sizes = [8, 32], strides = [1, 1]} : vector<8x96xf32> to vector<8x32xf32>
    %456 = vector.extract_strided_slice %446 {offsets = [0, 32], sizes = [8, 32], strides = [1, 1]} : vector<8x96xf32> to vector<8x32xf32>
    %457 = arith.addf %455, %456 : vector<8x32xf32>
    %458 = arith.negf %457 : vector<8x32xf32>
    %459 = math.exp %458 : vector<8x32xf32>
    %cst_114 = arith.constant 1.000000e+00 : f32
    %460 = vector.broadcast %cst_114 : f32 to vector<8x32xf32>
    %461 = arith.addf %460, %459 : vector<8x32xf32>
    %462 = arith.divf %460, %461 : vector<8x32xf32>
    %463 = vector.extract_strided_slice %445 {offsets = [0, 64], sizes = [8, 32], strides = [1, 1]} : vector<8x96xf32> to vector<8x32xf32>
    %464 = vector.extract_strided_slice %446 {offsets = [0, 64], sizes = [8, 32], strides = [1, 1]} : vector<8x96xf32> to vector<8x32xf32>
    %465 = arith.mulf %454, %464 : vector<8x32xf32>
    %466 = arith.addf %463, %465 : vector<8x32xf32>
    %467 = math.tanh %466 : vector<8x32xf32>
    %cst_115 = arith.constant 1.000000e+00 : f32
    %468 = vector.broadcast %cst_115 : f32 to vector<8x32xf32>
    %469 = arith.subf %468, %462 : vector<8x32xf32>
    %470 = arith.mulf %469, %467 : vector<8x32xf32>
    %471 = arith.mulf %462, %410 : vector<8x32xf32>
    %472 = arith.addf %470, %471 : vector<8x32xf32>
    %c8_116 = arith.constant 8 : index
    %c0_117 = arith.constant 0 : index
    %473 = vector.load %arg2[%c8_116, %c0_117] : memref<312x256xf32, #tpu.memory_space<vmem>>, vector<32x192xf32>
    %cst_118 = arith.constant dense<0.000000e+00> : vector<8x192xf32>
    %474 = tpu.matmul %472, %473, %cst_118 {dimension_numbers = #tpu.dot_dimension_numbers<[1], [0], [0], [1], [0, 0, 1, 1], [], []>} : vector<8x32xf32>, vector<32x192xf32>, vector<8x192xf32> -> vector<8x192xf32>
    %475 = arith.addf %474, %9 : vector<8x192xf32>
    %c40_119 = arith.constant 40 : index
    %c0_120 = arith.constant 0 : index
    %476 = vector.load %arg2[%c40_119, %c0_120] : memref<312x256xf32, #tpu.memory_space<vmem>>, vector<32x96xf32>
    %cst_121 = arith.constant dense<0.000000e+00> : vector<8x96xf32>
    %477 = tpu.matmul %443, %476, %cst_121 {dimension_numbers = #tpu.dot_dimension_numbers<[1], [0], [0], [1], [0, 0, 1, 1], [], []>} : vector<8x32xf32>, vector<32x96xf32>, vector<8x96xf32> -> vector<8x96xf32>
    %478 = arith.addf %477, %12 : vector<8x96xf32>
    %479 = vector.extract_strided_slice %475 {offsets = [0, 96], sizes = [8, 96], strides = [1, 1]} : vector<8x192xf32> to vector<8x96xf32>
    %480 = vector.extract_strided_slice %479 {offsets = [0, 0], sizes = [8, 32], strides = [1, 1]} : vector<8x96xf32> to vector<8x32xf32>
    %481 = vector.extract_strided_slice %478 {offsets = [0, 0], sizes = [8, 32], strides = [1, 1]} : vector<8x96xf32> to vector<8x32xf32>
    %482 = arith.addf %480, %481 : vector<8x32xf32>
    %483 = arith.negf %482 : vector<8x32xf32>
    %484 = math.exp %483 : vector<8x32xf32>
    %cst_122 = arith.constant 1.000000e+00 : f32
    %485 = vector.broadcast %cst_122 : f32 to vector<8x32xf32>
    %486 = arith.addf %485, %484 : vector<8x32xf32>
    %487 = arith.divf %485, %486 : vector<8x32xf32>
    %488 = vector.extract_strided_slice %479 {offsets = [0, 32], sizes = [8, 32], strides = [1, 1]} : vector<8x96xf32> to vector<8x32xf32>
    %489 = vector.extract_strided_slice %478 {offsets = [0, 32], sizes = [8, 32], strides = [1, 1]} : vector<8x96xf32> to vector<8x32xf32>
    %490 = arith.addf %488, %489 : vector<8x32xf32>
    %491 = arith.negf %490 : vector<8x32xf32>
    %492 = math.exp %491 : vector<8x32xf32>
    %cst_123 = arith.constant 1.000000e+00 : f32
    %493 = vector.broadcast %cst_123 : f32 to vector<8x32xf32>
    %494 = arith.addf %493, %492 : vector<8x32xf32>
    %495 = arith.divf %493, %494 : vector<8x32xf32>
    %496 = vector.extract_strided_slice %479 {offsets = [0, 64], sizes = [8, 32], strides = [1, 1]} : vector<8x96xf32> to vector<8x32xf32>
    %497 = vector.extract_strided_slice %478 {offsets = [0, 64], sizes = [8, 32], strides = [1, 1]} : vector<8x96xf32> to vector<8x32xf32>
    %498 = arith.mulf %487, %497 : vector<8x32xf32>
    %499 = arith.addf %496, %498 : vector<8x32xf32>
    %500 = math.tanh %499 : vector<8x32xf32>
    %cst_124 = arith.constant 1.000000e+00 : f32
    %501 = vector.broadcast %cst_124 : f32 to vector<8x32xf32>
    %502 = arith.subf %501, %495 : vector<8x32xf32>
    %503 = arith.mulf %502, %500 : vector<8x32xf32>
    %504 = arith.mulf %495, %443 : vector<8x32xf32>
    %505 = arith.addf %503, %504 : vector<8x32xf32>
    %c56_125 = arith.constant 56 : index
    %c0_126 = arith.constant 0 : index
    %506 = vector.load %arg5[%c56_125, %c0_126] : memref<64x32xf32, #tpu.memory_space<vmem>>, vector<8x32xf32>
    tpu.vector_store %arg5[%c56_125, %c0_126], %505 {strides = array<i32>} : memref<64x32xf32, #tpu.memory_space<vmem>>, vector<8x32xf32>,
    %c72 = arith.constant 72 : index
    %c0_127 = arith.constant 0 : index
    %507 = vector.load %arg2[%c72, %c0_127] : memref<312x256xf32, #tpu.memory_space<vmem>>, vector<32x32xf32>
    %cst_128 = arith.constant dense<0.000000e+00> : vector<8x32xf32>
    %508 = tpu.matmul %505, %507, %cst_128 {dimension_numbers = #tpu.dot_dimension_numbers<[1], [0], [0], [1], [0, 0, 1, 1], [], []>} : vector<8x32xf32>, vector<32x32xf32>, vector<8x32xf32> -> vector<8x32xf32>
    %c264 = arith.constant 264 : index
    %c0_129 = arith.constant 0 : index
    %509 = vector.load %arg2[%c264, %c0_129] : memref<312x256xf32, #tpu.memory_space<vmem>>, vector<1x32xf32>
    %510 = vector.broadcast %509 : vector<1x32xf32> to vector<8x32xf32>
    %511 = arith.addf %508, %510 : vector<8x32xf32>
    %c0_130 = arith.constant 0 : index
    %c0_131 = arith.constant 0 : index
    %512 = vector.load %arg5[%c0_130, %c0_131] : memref<64x32xf32, #tpu.memory_space<vmem>>, vector<64x32xf32>
    %c104 = arith.constant 104 : index
    %c0_132 = arith.constant 0 : index
    %513 = vector.load %arg2[%c104, %c0_132] : memref<312x256xf32, #tpu.memory_space<vmem>>, vector<32x32xf32>
    %cst_133 = arith.constant dense<0.000000e+00> : vector<64x32xf32>
    %514 = tpu.matmul %512, %513, %cst_133 {dimension_numbers = #tpu.dot_dimension_numbers<[1], [0], [0], [1], [0, 0, 1, 1], [], []>} : vector<64x32xf32>, vector<32x32xf32>, vector<64x32xf32> -> vector<64x32xf32>
    %c0_134 = arith.constant 0 : index
    %c0_135 = arith.constant 0 : index
    %515 = vector.load %arg7[%c0_134, %c0_135] : memref<64x32xf32, #tpu.memory_space<vmem>>, vector<64x32xf32>
    tpu.vector_store %arg7[%c0_134, %c0_135], %514 {strides = array<i32>} : memref<64x32xf32, #tpu.memory_space<vmem>>, vector<64x32xf32>,
    %c136 = arith.constant 136 : index
    %c0_136 = arith.constant 0 : index
    %516 = vector.load %arg2[%c136, %c0_136] : memref<312x256xf32, #tpu.memory_space<vmem>>, vector<32x32xf32>
    %cst_137 = arith.constant dense<0.000000e+00> : vector<64x32xf32>
    %517 = tpu.matmul %512, %516, %cst_137 {dimension_numbers = #tpu.dot_dimension_numbers<[1], [0], [0], [1], [0, 0, 1, 1], [], []>} : vector<64x32xf32>, vector<32x32xf32>, vector<64x32xf32> -> vector<64x32xf32>
    %c0_138 = arith.constant 0 : index
    %c0_139 = arith.constant 0 : index
    %518 = vector.load %arg8[%c0_138, %c0_139] : memref<64x32xf32, #tpu.memory_space<vmem>>, vector<64x32xf32>
    tpu.vector_store %arg8[%c0_138, %c0_139], %517 {strides = array<i32>} : memref<64x32xf32, #tpu.memory_space<vmem>>, vector<64x32xf32>,
    %c0_140 = arith.constant 0 : index
    %c0_141 = arith.constant 0 : index
    %519 = vector.load %arg1[%c0_140, %c0_141] : memref<32x4xf32, #tpu.memory_space<vmem>>, vector<32x4xf32>
    %c232 = arith.constant 232 : index
    %c0_142 = arith.constant 0 : index
    %520 = vector.load %arg2[%c232, %c0_142] : memref<312x256xf32, #tpu.memory_space<vmem>>, vector<4x96xf32>
    %cst_143 = arith.constant dense<0.000000e+00> : vector<32x96xf32>
    %521 = tpu.matmul %519, %520, %cst_143 {dimension_numbers = #tpu.dot_dimension_numbers<[1], [0], [0], [1], [0, 0, 1, 1], [], []>} : vector<32x4xf32>, vector<4x96xf32>, vector<32x96xf32> -> vector<32x96xf32>
    %c280 = arith.constant 280 : index
    %c0_144 = arith.constant 0 : index
    %522 = vector.load %arg2[%c280, %c0_144] : memref<312x256xf32, #tpu.memory_space<vmem>>, vector<1x96xf32>
    %523 = vector.broadcast %522 : vector<1x96xf32> to vector<32x96xf32>
    %524 = arith.addf %521, %523 : vector<32x96xf32>
    %c0_145 = arith.constant 0 : index
    %c0_146 = arith.constant 0 : index
    %525 = vector.load %arg6[%c0_145, %c0_146] : memref<32x96xf32, #tpu.memory_space<vmem>>, vector<32x96xf32>
    tpu.vector_store %arg6[%c0_145, %c0_146], %524 {strides = array<i32>} : memref<32x96xf32, #tpu.memory_space<vmem>>, vector<32x96xf32>,
    %526 = tpu.iota {dimensions = array<i32: 1>} : vector<8x64xi32>
    %527 = tpu.iota {dimensions = array<i32: 0>} : vector<8x64xi32>
    %528 = arith.subi %526, %527 : vector<8x64xi32>
    %c0_i32 = arith.constant 0 : i32
    %529 = vector.broadcast %c0_i32 : i32 to vector<8x64xi32>
    %530 = arith.cmpi eq, %528, %529 : vector<8x64xi32>
    %c8_i32 = arith.constant 8 : i32
    %531 = vector.broadcast %c8_i32 : i32 to vector<8x64xi32>
    %532 = arith.cmpi eq, %528, %531 : vector<8x64xi32>
    %533 = arith.ori %530, %532 : vector<8x64xi1>
    %c16_i32 = arith.constant 16 : i32
    %534 = vector.broadcast %c16_i32 : i32 to vector<8x64xi32>
    %535 = arith.cmpi eq, %528, %534 : vector<8x64xi32>
    %536 = arith.ori %533, %535 : vector<8x64xi1>
    %c24_i32 = arith.constant 24 : i32
    %537 = vector.broadcast %c24_i32 : i32 to vector<8x64xi32>
    %538 = arith.cmpi eq, %528, %537 : vector<8x64xi32>
    %539 = arith.ori %536, %538 : vector<8x64xi1>
    %c32_i32 = arith.constant 32 : i32
    %540 = vector.broadcast %c32_i32 : i32 to vector<8x64xi32>
    %541 = arith.cmpi eq, %528, %540 : vector<8x64xi32>
    %542 = arith.ori %539, %541 : vector<8x64xi1>
    %c40_i32 = arith.constant 40 : i32
    %543 = vector.broadcast %c40_i32 : i32 to vector<8x64xi32>
    %544 = arith.cmpi eq, %528, %543 : vector<8x64xi32>
    %545 = arith.ori %542, %544 : vector<8x64xi1>
    %c48_i32 = arith.constant 48 : i32
    %546 = vector.broadcast %c48_i32 : i32 to vector<8x64xi32>
    %547 = arith.cmpi eq, %528, %546 : vector<8x64xi32>
    %548 = arith.ori %545, %547 : vector<8x64xi1>
    %c56_i32 = arith.constant 56 : i32
    %549 = vector.broadcast %c56_i32 : i32 to vector<8x64xi32>
    %550 = arith.cmpi eq, %528, %549 : vector<8x64xi32>
    %551 = arith.ori %548, %550 : vector<8x64xi1>
    %cst_147 = arith.constant 0.000000e+00 : f32
    %cst_148 = arith.constant -1.000000e+30 : f32
    %552 = vector.broadcast %cst_147 : f32 to vector<8x64xf32>
    %553 = vector.broadcast %cst_148 : f32 to vector<8x64xf32>
    %554 = arith.select %551, %552, %553 : vector<8x64xi1>, vector<8x64xf32>
    %c272 = arith.constant 272 : index
    %c0_149 = arith.constant 0 : index
    %555 = vector.load %arg2[%c272, %c0_149] : memref<312x256xf32, #tpu.memory_space<vmem>>, vector<1x128xf32>
    %556 = vector.shape_cast %555 : vector<1x128xf32> to vector<1x128xf32>
    %557 = vector.broadcast %556 : vector<1x128xf32> to vector<8x128xf32>
    %c288 = arith.constant 288 : index
    %c0_150 = arith.constant 0 : index
    %558 = vector.load %arg2[%c288, %c0_150] : memref<312x256xf32, #tpu.memory_space<vmem>>, vector<1x96xf32>
    %559 = vector.shape_cast %558 : vector<1x96xf32> to vector<1x96xf32>
    %560 = vector.broadcast %559 : vector<1x96xf32> to vector<8x96xf32>
    %c296 = arith.constant 296 : index
    %c0_151 = arith.constant 0 : index
    %561 = vector.load %arg2[%c296, %c0_151] : memref<312x256xf32, #tpu.memory_space<vmem>>, vector<1x32xf32>
    %562 = vector.shape_cast %561 : vector<1x32xf32> to vector<1x32xf32>
    %563 = vector.broadcast %562 : vector<1x32xf32> to vector<8x32xf32>
    %c304 = arith.constant 304 : index
    %c0_152 = arith.constant 0 : index
    %564 = vector.load %arg2[%c304, %c0_152] : memref<312x256xf32, #tpu.memory_space<vmem>>, vector<1x1xf32>
    %565 = vector.shape_cast %564 : vector<1x1xf32> to vector<1x1xf32>
    %566 = vector.broadcast %565 : vector<1x1xf32> to vector<8x1xf32>
    %567 = tpu.iota {dimensions = array<i32: 1>} : vector<8x4xi32>
    %c56_153 = arith.constant 56 : index
    %c0_154 = arith.constant 0 : index
    %568 = vector.load %arg0[%c56_153, %c0_154] : memref<64x3xf32, #tpu.memory_space<vmem>>, vector<8x1xf32>
    %cst_155 = arith.constant 0.000000e+00 : f32
    %569 = vector.broadcast %cst_155 : f32 to vector<8x4xf32>
    %c168 = arith.constant 168 : index
    %c0_156 = arith.constant 0 : index
    %570 = vector.load %arg2[%c168, %c0_156] : memref<312x256xf32, #tpu.memory_space<vmem>>, vector<32x128xf32>
    %cst_157 = arith.constant dense<0.000000e+00> : vector<8x128xf32>
    %571 = tpu.matmul %511, %570, %cst_157 {dimension_numbers = #tpu.dot_dimension_numbers<[1], [0], [0], [1], [0, 0, 1, 1], [], []>} : vector<8x32xf32>, vector<32x128xf32>, vector<8x128xf32> -> vector<8x128xf32>
    %572 = arith.addf %571, %557 : vector<8x128xf32>
    %573 = vector.extract_strided_slice %572 {offsets = [0, 0], sizes = [8, 32], strides = [1, 1]} : vector<8x128xf32> to vector<8x32xf32>
    %574 = vector.extract_strided_slice %572 {offsets = [0, 32], sizes = [8, 96], strides = [1, 1]} : vector<8x128xf32> to vector<8x96xf32>
    %c0_158 = arith.constant 0 : index
    %c0_159 = arith.constant 0 : index
    %575 = vector.load %arg7[%c0_158, %c0_159] : memref<64x32xf32, #tpu.memory_space<vmem>>, vector<64x32xf32>
    %cst_160 = arith.constant dense<0.000000e+00> : vector<8x64xf32>
    %576 = tpu.matmul %573, %575, %cst_160 {dimension_numbers = #tpu.dot_dimension_numbers<[1], [1], [0], [0], [0, 0, 1, 0], [], []>} : vector<8x32xf32>, vector<64x32xf32>, vector<8x64xf32> -> vector<8x64xf32>
    %577 = arith.addf %576, %554 : vector<8x64xf32>
    %cst_161 = arith.constant dense<0xFF800000> : vector<8xf32>
    %578 = vector.multi_reduction <maximumf>, %577, %cst_161 [1] : vector<8x64xf32> to vector<8xf32>
    %579 = vector.shape_cast %578 : vector<8xf32> to vector<8x1xf32>
    %580 = vector.broadcast %579 : vector<8x1xf32> to vector<8x64xf32>
    %581 = arith.subf %577, %580 : vector<8x64xf32>
    %582 = math.exp %581 : vector<8x64xf32>
    %cst_162 = arith.constant dense<0.000000e+00> : vector<8xf32>
    %583 = vector.multi_reduction <add>, %582, %cst_162 [1] : vector<8x64xf32> to vector<8xf32>
    %584 = vector.shape_cast %583 : vector<8xf32> to vector<8x1xf32>
    %585 = tpu.reciprocal %584 : vector<8x1xf32> -> vector<8x1xf32>
    %586 = vector.broadcast %585 : vector<8x1xf32> to vector<8x64xf32>
    %587 = arith.mulf %582, %586 : vector<8x64xf32>
    %c0_163 = arith.constant 0 : index
    %c0_164 = arith.constant 0 : index
    %588 = vector.load %arg8[%c0_163, %c0_164] : memref<64x32xf32, #tpu.memory_space<vmem>>, vector<64x32xf32>
    %cst_165 = arith.constant dense<0.000000e+00> : vector<8x32xf32>
    %589 = tpu.matmul %587, %588, %cst_165 {dimension_numbers = #tpu.dot_dimension_numbers<[1], [0], [0], [1], [0, 0, 1, 1], [], []>} : vector<8x64xf32>, vector<64x32xf32>, vector<8x32xf32> -> vector<8x32xf32>
    %590 = vector.broadcast %568 : vector<8x1xf32> to vector<8x96xf32>
    %591 = arith.mulf %590, %560 : vector<8x96xf32>
    %c0_166 = arith.constant 0 : index
    %c0_167 = arith.constant 0 : index
    %592 = vector.load %arg6[%c0_166, %c0_167] : memref<32x96xf32, #tpu.memory_space<vmem>>, vector<8x96xf32>
    %593 = arith.addf %591, %592 : vector<8x96xf32>
    %c200 = arith.constant 200 : index
    %c0_168 = arith.constant 0 : index
    %594 = vector.load %arg2[%c200, %c0_168] : memref<312x256xf32, #tpu.memory_space<vmem>>, vector<32x96xf32>
    %cst_169 = arith.constant dense<0.000000e+00> : vector<8x96xf32>
    %595 = tpu.matmul %589, %594, %cst_169 {dimension_numbers = #tpu.dot_dimension_numbers<[1], [0], [0], [1], [0, 0, 1, 1], [], []>} : vector<8x32xf32>, vector<32x96xf32>, vector<8x96xf32> -> vector<8x96xf32>
    %596 = arith.addf %593, %595 : vector<8x96xf32>
    %597 = vector.extract_strided_slice %596 {offsets = [0, 0], sizes = [8, 32], strides = [1, 1]} : vector<8x96xf32> to vector<8x32xf32>
    %598 = vector.extract_strided_slice %574 {offsets = [0, 0], sizes = [8, 32], strides = [1, 1]} : vector<8x96xf32> to vector<8x32xf32>
    %599 = arith.addf %597, %598 : vector<8x32xf32>
    %600 = arith.negf %599 : vector<8x32xf32>
    %601 = math.exp %600 : vector<8x32xf32>
    %cst_170 = arith.constant 1.000000e+00 : f32
    %602 = vector.broadcast %cst_170 : f32 to vector<8x32xf32>
    %603 = arith.addf %602, %601 : vector<8x32xf32>
    %604 = arith.divf %602, %603 : vector<8x32xf32>
    %605 = vector.extract_strided_slice %596 {offsets = [0, 32], sizes = [8, 32], strides = [1, 1]} : vector<8x96xf32> to vector<8x32xf32>
    %606 = vector.extract_strided_slice %574 {offsets = [0, 32], sizes = [8, 32], strides = [1, 1]} : vector<8x96xf32> to vector<8x32xf32>
    %607 = arith.addf %605, %606 : vector<8x32xf32>
    %608 = arith.negf %607 : vector<8x32xf32>
    %609 = math.exp %608 : vector<8x32xf32>
    %cst_171 = arith.constant 1.000000e+00 : f32
    %610 = vector.broadcast %cst_171 : f32 to vector<8x32xf32>
    %611 = arith.addf %610, %609 : vector<8x32xf32>
    %612 = arith.divf %610, %611 : vector<8x32xf32>
    %613 = vector.extract_strided_slice %596 {offsets = [0, 64], sizes = [8, 32], strides = [1, 1]} : vector<8x96xf32> to vector<8x32xf32>
    %614 = vector.extract_strided_slice %574 {offsets = [0, 64], sizes = [8, 32], strides = [1, 1]} : vector<8x96xf32> to vector<8x32xf32>
    %615 = arith.mulf %604, %614 : vector<8x32xf32>
    %616 = arith.addf %613, %615 : vector<8x32xf32>
    %617 = math.tanh %616 : vector<8x32xf32>
    %cst_172 = arith.constant 1.000000e+00 : f32
    %618 = vector.broadcast %cst_172 : f32 to vector<8x32xf32>
    %619 = arith.subf %618, %612 : vector<8x32xf32>
    %620 = arith.mulf %619, %617 : vector<8x32xf32>
    %621 = arith.mulf %612, %511 : vector<8x32xf32>
    %622 = arith.addf %620, %621 : vector<8x32xf32>
    %623 = arith.mulf %622, %563 : vector<8x32xf32>
    %cst_173 = arith.constant dense<0.000000e+00> : vector<8xf32>
    %624 = vector.multi_reduction <add>, %623, %cst_173 [1] : vector<8x32xf32> to vector<8xf32>
    %625 = vector.shape_cast %624 : vector<8xf32> to vector<8x1xf32>
    %626 = arith.addf %625, %566 : vector<8x1xf32>
    %c0_i32_174 = arith.constant 0 : i32
    %627 = vector.broadcast %c0_i32_174 : i32 to vector<8x4xi32>
    %628 = arith.cmpi eq, %567, %627 : vector<8x4xi32>
    %629 = vector.shape_cast %626 : vector<8x1xf32> to vector<8x1xf32>
    %630 = vector.broadcast %629 : vector<8x1xf32> to vector<8x4xf32>
    %631 = arith.select %628, %630, %569 : vector<8x4xi1>, vector<8x4xf32>
    %c168_175 = arith.constant 168 : index
    %c0_176 = arith.constant 0 : index
    %632 = vector.load %arg2[%c168_175, %c0_176] : memref<312x256xf32, #tpu.memory_space<vmem>>, vector<32x128xf32>
    %cst_177 = arith.constant dense<0.000000e+00> : vector<8x128xf32>
    %633 = tpu.matmul %622, %632, %cst_177 {dimension_numbers = #tpu.dot_dimension_numbers<[1], [0], [0], [1], [0, 0, 1, 1], [], []>} : vector<8x32xf32>, vector<32x128xf32>, vector<8x128xf32> -> vector<8x128xf32>
    %634 = arith.addf %633, %557 : vector<8x128xf32>
    %635 = vector.extract_strided_slice %634 {offsets = [0, 0], sizes = [8, 32], strides = [1, 1]} : vector<8x128xf32> to vector<8x32xf32>
    %636 = vector.extract_strided_slice %634 {offsets = [0, 32], sizes = [8, 96], strides = [1, 1]} : vector<8x128xf32> to vector<8x96xf32>
    %c0_178 = arith.constant 0 : index
    %c0_179 = arith.constant 0 : index
    %637 = vector.load %arg7[%c0_178, %c0_179] : memref<64x32xf32, #tpu.memory_space<vmem>>, vector<64x32xf32>
    %cst_180 = arith.constant dense<0.000000e+00> : vector<8x64xf32>
    %638 = tpu.matmul %635, %637, %cst_180 {dimension_numbers = #tpu.dot_dimension_numbers<[1], [1], [0], [0], [0, 0, 1, 0], [], []>} : vector<8x32xf32>, vector<64x32xf32>, vector<8x64xf32> -> vector<8x64xf32>
    %639 = arith.addf %638, %554 : vector<8x64xf32>
    %cst_181 = arith.constant dense<0xFF800000> : vector<8xf32>
    %640 = vector.multi_reduction <maximumf>, %639, %cst_181 [1] : vector<8x64xf32> to vector<8xf32>
    %641 = vector.shape_cast %640 : vector<8xf32> to vector<8x1xf32>
    %642 = vector.broadcast %641 : vector<8x1xf32> to vector<8x64xf32>
    %643 = arith.subf %639, %642 : vector<8x64xf32>
    %644 = math.exp %643 : vector<8x64xf32>
    %cst_182 = arith.constant dense<0.000000e+00> : vector<8xf32>
    %645 = vector.multi_reduction <add>, %644, %cst_182 [1] : vector<8x64xf32> to vector<8xf32>
    %646 = vector.shape_cast %645 : vector<8xf32> to vector<8x1xf32>
    %647 = tpu.reciprocal %646 : vector<8x1xf32> -> vector<8x1xf32>
    %648 = vector.broadcast %647 : vector<8x1xf32> to vector<8x64xf32>
    %649 = arith.mulf %644, %648 : vector<8x64xf32>
    %c0_183 = arith.constant 0 : index
    %c0_184 = arith.constant 0 : index
    %650 = vector.load %arg8[%c0_183, %c0_184] : memref<64x32xf32, #tpu.memory_space<vmem>>, vector<64x32xf32>
    %cst_185 = arith.constant dense<0.000000e+00> : vector<8x32xf32>
    %651 = tpu.matmul %649, %650, %cst_185 {dimension_numbers = #tpu.dot_dimension_numbers<[1], [0], [0], [1], [0, 0, 1, 1], [], []>} : vector<8x64xf32>, vector<64x32xf32>, vector<8x32xf32> -> vector<8x32xf32>
    %652 = vector.broadcast %626 : vector<8x1xf32> to vector<8x96xf32>
    %653 = arith.mulf %652, %560 : vector<8x96xf32>
    %c8_186 = arith.constant 8 : index
    %c0_187 = arith.constant 0 : index
    %654 = vector.load %arg6[%c8_186, %c0_187] : memref<32x96xf32, #tpu.memory_space<vmem>>, vector<8x96xf32>
    %655 = arith.addf %653, %654 : vector<8x96xf32>
    %c200_188 = arith.constant 200 : index
    %c0_189 = arith.constant 0 : index
    %656 = vector.load %arg2[%c200_188, %c0_189] : memref<312x256xf32, #tpu.memory_space<vmem>>, vector<32x96xf32>
    %cst_190 = arith.constant dense<0.000000e+00> : vector<8x96xf32>
    %657 = tpu.matmul %651, %656, %cst_190 {dimension_numbers = #tpu.dot_dimension_numbers<[1], [0], [0], [1], [0, 0, 1, 1], [], []>} : vector<8x32xf32>, vector<32x96xf32>, vector<8x96xf32> -> vector<8x96xf32>
    %658 = arith.addf %655, %657 : vector<8x96xf32>
    %659 = vector.extract_strided_slice %658 {offsets = [0, 0], sizes = [8, 32], strides = [1, 1]} : vector<8x96xf32> to vector<8x32xf32>
    %660 = vector.extract_strided_slice %636 {offsets = [0, 0], sizes = [8, 32], strides = [1, 1]} : vector<8x96xf32> to vector<8x32xf32>
    %661 = arith.addf %659, %660 : vector<8x32xf32>
    %662 = arith.negf %661 : vector<8x32xf32>
    %663 = math.exp %662 : vector<8x32xf32>
    %cst_191 = arith.constant 1.000000e+00 : f32
    %664 = vector.broadcast %cst_191 : f32 to vector<8x32xf32>
    %665 = arith.addf %664, %663 : vector<8x32xf32>
    %666 = arith.divf %664, %665 : vector<8x32xf32>
    %667 = vector.extract_strided_slice %658 {offsets = [0, 32], sizes = [8, 32], strides = [1, 1]} : vector<8x96xf32> to vector<8x32xf32>
    %668 = vector.extract_strided_slice %636 {offsets = [0, 32], sizes = [8, 32], strides = [1, 1]} : vector<8x96xf32> to vector<8x32xf32>
    %669 = arith.addf %667, %668 : vector<8x32xf32>
    %670 = arith.negf %669 : vector<8x32xf32>
    %671 = math.exp %670 : vector<8x32xf32>
    %cst_192 = arith.constant 1.000000e+00 : f32
    %672 = vector.broadcast %cst_192 : f32 to vector<8x32xf32>
    %673 = arith.addf %672, %671 : vector<8x32xf32>
    %674 = arith.divf %672, %673 : vector<8x32xf32>
    %675 = vector.extract_strided_slice %658 {offsets = [0, 64], sizes = [8, 32], strides = [1, 1]} : vector<8x96xf32> to vector<8x32xf32>
    %676 = vector.extract_strided_slice %636 {offsets = [0, 64], sizes = [8, 32], strides = [1, 1]} : vector<8x96xf32> to vector<8x32xf32>
    %677 = arith.mulf %666, %676 : vector<8x32xf32>
    %678 = arith.addf %675, %677 : vector<8x32xf32>
    %679 = math.tanh %678 : vector<8x32xf32>
    %cst_193 = arith.constant 1.000000e+00 : f32
    %680 = vector.broadcast %cst_193 : f32 to vector<8x32xf32>
    %681 = arith.subf %680, %674 : vector<8x32xf32>
    %682 = arith.mulf %681, %679 : vector<8x32xf32>
    %683 = arith.mulf %674, %622 : vector<8x32xf32>
    %684 = arith.addf %682, %683 : vector<8x32xf32>
    %685 = arith.mulf %684, %563 : vector<8x32xf32>
    %cst_194 = arith.constant dense<0.000000e+00> : vector<8xf32>
    %686 = vector.multi_reduction <add>, %685, %cst_194 [1] : vector<8x32xf32> to vector<8xf32>
    %687 = vector.shape_cast %686 : vector<8xf32> to vector<8x1xf32>
    %688 = arith.addf %687, %566 : vector<8x1xf32>
    %c1_i32 = arith.constant 1 : i32
    %689 = vector.broadcast %c1_i32 : i32 to vector<8x4xi32>
    %690 = arith.cmpi eq, %567, %689 : vector<8x4xi32>
    %691 = vector.shape_cast %688 : vector<8x1xf32> to vector<8x1xf32>
    %692 = vector.broadcast %691 : vector<8x1xf32> to vector<8x4xf32>
    %693 = arith.select %690, %692, %631 : vector<8x4xi1>, vector<8x4xf32>
    %c168_195 = arith.constant 168 : index
    %c0_196 = arith.constant 0 : index
    %694 = vector.load %arg2[%c168_195, %c0_196] : memref<312x256xf32, #tpu.memory_space<vmem>>, vector<32x128xf32>
    %cst_197 = arith.constant dense<0.000000e+00> : vector<8x128xf32>
    %695 = tpu.matmul %684, %694, %cst_197 {dimension_numbers = #tpu.dot_dimension_numbers<[1], [0], [0], [1], [0, 0, 1, 1], [], []>} : vector<8x32xf32>, vector<32x128xf32>, vector<8x128xf32> -> vector<8x128xf32>
    %696 = arith.addf %695, %557 : vector<8x128xf32>
    %697 = vector.extract_strided_slice %696 {offsets = [0, 0], sizes = [8, 32], strides = [1, 1]} : vector<8x128xf32> to vector<8x32xf32>
    %698 = vector.extract_strided_slice %696 {offsets = [0, 32], sizes = [8, 96], strides = [1, 1]} : vector<8x128xf32> to vector<8x96xf32>
    %c0_198 = arith.constant 0 : index
    %c0_199 = arith.constant 0 : index
    %699 = vector.load %arg7[%c0_198, %c0_199] : memref<64x32xf32, #tpu.memory_space<vmem>>, vector<64x32xf32>
    %cst_200 = arith.constant dense<0.000000e+00> : vector<8x64xf32>
    %700 = tpu.matmul %697, %699, %cst_200 {dimension_numbers = #tpu.dot_dimension_numbers<[1], [1], [0], [0], [0, 0, 1, 0], [], []>} : vector<8x32xf32>, vector<64x32xf32>, vector<8x64xf32> -> vector<8x64xf32>
    %701 = arith.addf %700, %554 : vector<8x64xf32>
    %cst_201 = arith.constant dense<0xFF800000> : vector<8xf32>
    %702 = vector.multi_reduction <maximumf>, %701, %cst_201 [1] : vector<8x64xf32> to vector<8xf32>
    %703 = vector.shape_cast %702 : vector<8xf32> to vector<8x1xf32>
    %704 = vector.broadcast %703 : vector<8x1xf32> to vector<8x64xf32>
    %705 = arith.subf %701, %704 : vector<8x64xf32>
    %706 = math.exp %705 : vector<8x64xf32>
    %cst_202 = arith.constant dense<0.000000e+00> : vector<8xf32>
    %707 = vector.multi_reduction <add>, %706, %cst_202 [1] : vector<8x64xf32> to vector<8xf32>
    %708 = vector.shape_cast %707 : vector<8xf32> to vector<8x1xf32>
    %709 = tpu.reciprocal %708 : vector<8x1xf32> -> vector<8x1xf32>
    %710 = vector.broadcast %709 : vector<8x1xf32> to vector<8x64xf32>
    %711 = arith.mulf %706, %710 : vector<8x64xf32>
    %c0_203 = arith.constant 0 : index
    %c0_204 = arith.constant 0 : index
    %712 = vector.load %arg8[%c0_203, %c0_204] : memref<64x32xf32, #tpu.memory_space<vmem>>, vector<64x32xf32>
    %cst_205 = arith.constant dense<0.000000e+00> : vector<8x32xf32>
    %713 = tpu.matmul %711, %712, %cst_205 {dimension_numbers = #tpu.dot_dimension_numbers<[1], [0], [0], [1], [0, 0, 1, 1], [], []>} : vector<8x64xf32>, vector<64x32xf32>, vector<8x32xf32> -> vector<8x32xf32>
    %714 = vector.broadcast %688 : vector<8x1xf32> to vector<8x96xf32>
    %715 = arith.mulf %714, %560 : vector<8x96xf32>
    %c16_206 = arith.constant 16 : index
    %c0_207 = arith.constant 0 : index
    %716 = vector.load %arg6[%c16_206, %c0_207] : memref<32x96xf32, #tpu.memory_space<vmem>>, vector<8x96xf32>
    %717 = arith.addf %715, %716 : vector<8x96xf32>
    %c200_208 = arith.constant 200 : index
    %c0_209 = arith.constant 0 : index
    %718 = vector.load %arg2[%c200_208, %c0_209] : memref<312x256xf32, #tpu.memory_space<vmem>>, vector<32x96xf32>
    %cst_210 = arith.constant dense<0.000000e+00> : vector<8x96xf32>
    %719 = tpu.matmul %713, %718, %cst_210 {dimension_numbers = #tpu.dot_dimension_numbers<[1], [0], [0], [1], [0, 0, 1, 1], [], []>} : vector<8x32xf32>, vector<32x96xf32>, vector<8x96xf32> -> vector<8x96xf32>
    %720 = arith.addf %717, %719 : vector<8x96xf32>
    %721 = vector.extract_strided_slice %720 {offsets = [0, 0], sizes = [8, 32], strides = [1, 1]} : vector<8x96xf32> to vector<8x32xf32>
    %722 = vector.extract_strided_slice %698 {offsets = [0, 0], sizes = [8, 32], strides = [1, 1]} : vector<8x96xf32> to vector<8x32xf32>
    %723 = arith.addf %721, %722 : vector<8x32xf32>
    %724 = arith.negf %723 : vector<8x32xf32>
    %725 = math.exp %724 : vector<8x32xf32>
    %cst_211 = arith.constant 1.000000e+00 : f32
    %726 = vector.broadcast %cst_211 : f32 to vector<8x32xf32>
    %727 = arith.addf %726, %725 : vector<8x32xf32>
    %728 = arith.divf %726, %727 : vector<8x32xf32>
    %729 = vector.extract_strided_slice %720 {offsets = [0, 32], sizes = [8, 32], strides = [1, 1]} : vector<8x96xf32> to vector<8x32xf32>
    %730 = vector.extract_strided_slice %698 {offsets = [0, 32], sizes = [8, 32], strides = [1, 1]} : vector<8x96xf32> to vector<8x32xf32>
    %731 = arith.addf %729, %730 : vector<8x32xf32>
    %732 = arith.negf %731 : vector<8x32xf32>
    %733 = math.exp %732 : vector<8x32xf32>
    %cst_212 = arith.constant 1.000000e+00 : f32
    %734 = vector.broadcast %cst_212 : f32 to vector<8x32xf32>
    %735 = arith.addf %734, %733 : vector<8x32xf32>
    %736 = arith.divf %734, %735 : vector<8x32xf32>
    %737 = vector.extract_strided_slice %720 {offsets = [0, 64], sizes = [8, 32], strides = [1, 1]} : vector<8x96xf32> to vector<8x32xf32>
    %738 = vector.extract_strided_slice %698 {offsets = [0, 64], sizes = [8, 32], strides = [1, 1]} : vector<8x96xf32> to vector<8x32xf32>
    %739 = arith.mulf %728, %738 : vector<8x32xf32>
    %740 = arith.addf %737, %739 : vector<8x32xf32>
    %741 = math.tanh %740 : vector<8x32xf32>
    %cst_213 = arith.constant 1.000000e+00 : f32
    %742 = vector.broadcast %cst_213 : f32 to vector<8x32xf32>
    %743 = arith.subf %742, %736 : vector<8x32xf32>
    %744 = arith.mulf %743, %741 : vector<8x32xf32>
    %745 = arith.mulf %736, %684 : vector<8x32xf32>
    %746 = arith.addf %744, %745 : vector<8x32xf32>
    %747 = arith.mulf %746, %563 : vector<8x32xf32>
    %cst_214 = arith.constant dense<0.000000e+00> : vector<8xf32>
    %748 = vector.multi_reduction <add>, %747, %cst_214 [1] : vector<8x32xf32> to vector<8xf32>
    %749 = vector.shape_cast %748 : vector<8xf32> to vector<8x1xf32>
    %750 = arith.addf %749, %566 : vector<8x1xf32>
    %c2_i32 = arith.constant 2 : i32
    %751 = vector.broadcast %c2_i32 : i32 to vector<8x4xi32>
    %752 = arith.cmpi eq, %567, %751 : vector<8x4xi32>
    %753 = vector.shape_cast %750 : vector<8x1xf32> to vector<8x1xf32>
    %754 = vector.broadcast %753 : vector<8x1xf32> to vector<8x4xf32>
    %755 = arith.select %752, %754, %693 : vector<8x4xi1>, vector<8x4xf32>
    %c168_215 = arith.constant 168 : index
    %c0_216 = arith.constant 0 : index
    %756 = vector.load %arg2[%c168_215, %c0_216] : memref<312x256xf32, #tpu.memory_space<vmem>>, vector<32x128xf32>
    %cst_217 = arith.constant dense<0.000000e+00> : vector<8x128xf32>
    %757 = tpu.matmul %746, %756, %cst_217 {dimension_numbers = #tpu.dot_dimension_numbers<[1], [0], [0], [1], [0, 0, 1, 1], [], []>} : vector<8x32xf32>, vector<32x128xf32>, vector<8x128xf32> -> vector<8x128xf32>
    %758 = arith.addf %757, %557 : vector<8x128xf32>
    %759 = vector.extract_strided_slice %758 {offsets = [0, 0], sizes = [8, 32], strides = [1, 1]} : vector<8x128xf32> to vector<8x32xf32>
    %760 = vector.extract_strided_slice %758 {offsets = [0, 32], sizes = [8, 96], strides = [1, 1]} : vector<8x128xf32> to vector<8x96xf32>
    %c0_218 = arith.constant 0 : index
    %c0_219 = arith.constant 0 : index
    %761 = vector.load %arg7[%c0_218, %c0_219] : memref<64x32xf32, #tpu.memory_space<vmem>>, vector<64x32xf32>
    %cst_220 = arith.constant dense<0.000000e+00> : vector<8x64xf32>
    %762 = tpu.matmul %759, %761, %cst_220 {dimension_numbers = #tpu.dot_dimension_numbers<[1], [1], [0], [0], [0, 0, 1, 0], [], []>} : vector<8x32xf32>, vector<64x32xf32>, vector<8x64xf32> -> vector<8x64xf32>
    %763 = arith.addf %762, %554 : vector<8x64xf32>
    %cst_221 = arith.constant dense<0xFF800000> : vector<8xf32>
    %764 = vector.multi_reduction <maximumf>, %763, %cst_221 [1] : vector<8x64xf32> to vector<8xf32>
    %765 = vector.shape_cast %764 : vector<8xf32> to vector<8x1xf32>
    %766 = vector.broadcast %765 : vector<8x1xf32> to vector<8x64xf32>
    %767 = arith.subf %763, %766 : vector<8x64xf32>
    %768 = math.exp %767 : vector<8x64xf32>
    %cst_222 = arith.constant dense<0.000000e+00> : vector<8xf32>
    %769 = vector.multi_reduction <add>, %768, %cst_222 [1] : vector<8x64xf32> to vector<8xf32>
    %770 = vector.shape_cast %769 : vector<8xf32> to vector<8x1xf32>
    %771 = tpu.reciprocal %770 : vector<8x1xf32> -> vector<8x1xf32>
    %772 = vector.broadcast %771 : vector<8x1xf32> to vector<8x64xf32>
    %773 = arith.mulf %768, %772 : vector<8x64xf32>
    %c0_223 = arith.constant 0 : index
    %c0_224 = arith.constant 0 : index
    %774 = vector.load %arg8[%c0_223, %c0_224] : memref<64x32xf32, #tpu.memory_space<vmem>>, vector<64x32xf32>
    %cst_225 = arith.constant dense<0.000000e+00> : vector<8x32xf32>
    %775 = tpu.matmul %773, %774, %cst_225 {dimension_numbers = #tpu.dot_dimension_numbers<[1], [0], [0], [1], [0, 0, 1, 1], [], []>} : vector<8x64xf32>, vector<64x32xf32>, vector<8x32xf32> -> vector<8x32xf32>
    %776 = vector.broadcast %750 : vector<8x1xf32> to vector<8x96xf32>
    %777 = arith.mulf %776, %560 : vector<8x96xf32>
    %c24_226 = arith.constant 24 : index
    %c0_227 = arith.constant 0 : index
    %778 = vector.load %arg6[%c24_226, %c0_227] : memref<32x96xf32, #tpu.memory_space<vmem>>, vector<8x96xf32>
    %779 = arith.addf %777, %778 : vector<8x96xf32>
    %c200_228 = arith.constant 200 : index
    %c0_229 = arith.constant 0 : index
    %780 = vector.load %arg2[%c200_228, %c0_229] : memref<312x256xf32, #tpu.memory_space<vmem>>, vector<32x96xf32>
    %cst_230 = arith.constant dense<0.000000e+00> : vector<8x96xf32>
    %781 = tpu.matmul %775, %780, %cst_230 {dimension_numbers = #tpu.dot_dimension_numbers<[1], [0], [0], [1], [0, 0, 1, 1], [], []>} : vector<8x32xf32>, vector<32x96xf32>, vector<8x96xf32> -> vector<8x96xf32>
    %782 = arith.addf %779, %781 : vector<8x96xf32>
    %783 = vector.extract_strided_slice %782 {offsets = [0, 0], sizes = [8, 32], strides = [1, 1]} : vector<8x96xf32> to vector<8x32xf32>
    %784 = vector.extract_strided_slice %760 {offsets = [0, 0], sizes = [8, 32], strides = [1, 1]} : vector<8x96xf32> to vector<8x32xf32>
    %785 = arith.addf %783, %784 : vector<8x32xf32>
    %786 = arith.negf %785 : vector<8x32xf32>
    %787 = math.exp %786 : vector<8x32xf32>
    %cst_231 = arith.constant 1.000000e+00 : f32
    %788 = vector.broadcast %cst_231 : f32 to vector<8x32xf32>
    %789 = arith.addf %788, %787 : vector<8x32xf32>
    %790 = arith.divf %788, %789 : vector<8x32xf32>
    %791 = vector.extract_strided_slice %782 {offsets = [0, 32], sizes = [8, 32], strides = [1, 1]} : vector<8x96xf32> to vector<8x32xf32>
    %792 = vector.extract_strided_slice %760 {offsets = [0, 32], sizes = [8, 32], strides = [1, 1]} : vector<8x96xf32> to vector<8x32xf32>
    %793 = arith.addf %791, %792 : vector<8x32xf32>
    %794 = arith.negf %793 : vector<8x32xf32>
    %795 = math.exp %794 : vector<8x32xf32>
    %cst_232 = arith.constant 1.000000e+00 : f32
    %796 = vector.broadcast %cst_232 : f32 to vector<8x32xf32>
    %797 = arith.addf %796, %795 : vector<8x32xf32>
    %798 = arith.divf %796, %797 : vector<8x32xf32>
    %799 = vector.extract_strided_slice %782 {offsets = [0, 64], sizes = [8, 32], strides = [1, 1]} : vector<8x96xf32> to vector<8x32xf32>
    %800 = vector.extract_strided_slice %760 {offsets = [0, 64], sizes = [8, 32], strides = [1, 1]} : vector<8x96xf32> to vector<8x32xf32>
    %801 = arith.mulf %790, %800 : vector<8x32xf32>
    %802 = arith.addf %799, %801 : vector<8x32xf32>
    %803 = math.tanh %802 : vector<8x32xf32>
    %cst_233 = arith.constant 1.000000e+00 : f32
    %804 = vector.broadcast %cst_233 : f32 to vector<8x32xf32>
    %805 = arith.subf %804, %798 : vector<8x32xf32>
    %806 = arith.mulf %805, %803 : vector<8x32xf32>
    %807 = arith.mulf %798, %746 : vector<8x32xf32>
    %808 = arith.addf %806, %807 : vector<8x32xf32>
    %809 = arith.mulf %808, %563 : vector<8x32xf32>
    %cst_234 = arith.constant dense<0.000000e+00> : vector<8xf32>
    %810 = vector.multi_reduction <add>, %809, %cst_234 [1] : vector<8x32xf32> to vector<8xf32>
    %811 = vector.shape_cast %810 : vector<8xf32> to vector<8x1xf32>
    %812 = arith.addf %811, %566 : vector<8x1xf32>
    %c3_i32 = arith.constant 3 : i32
    %813 = vector.broadcast %c3_i32 : i32 to vector<8x4xi32>
    %814 = arith.cmpi eq, %567, %813 : vector<8x4xi32>
    %815 = vector.shape_cast %812 : vector<8x1xf32> to vector<8x1xf32>
    %816 = vector.broadcast %815 : vector<8x1xf32> to vector<8x4xf32>
    %817 = arith.select %814, %816, %755 : vector<8x4xi1>, vector<8x4xf32>
    %c0_235 = arith.constant 0 : index
    %c0_236 = arith.constant 0 : index
    %818 = vector.load %arg3[%c0_235, %c0_236] : memref<8x4xf32, #tpu.memory_space<vmem>>, vector<8x4xf32>
    tpu.vector_store %arg3[%c0_235, %c0_236], %817 {strides = array<i32>} : memref<8x4xf32, #tpu.memory_space<vmem>>, vector<8x4xf32>,
    return
  }
}

</mosaic_0001>

<llo_original>
// kernel: attention_seq2seq_forward.1
$region0: #{attention_seq2seq_forward.1}
  #allocation0 [shape = 'u32[]', space=smem, size = 0x4, offset = 0x4, fixed_abs, tag = 'smem constant byte address 0x4 - core index']
  #allocation1 [shape = 'u32[144,128]{1,0:T(1,128)}', space=vmem, size = 0x12000, scoped, tag = 'internal scratch']
  #allocation2 [shape = 'f32[64,96]{1,0:T(8,128)}', space=vmem, size = 0x8000, scoped, tag = 'scratch operand']
  #allocation3 [shape = 'f32[64,32]{1,0:T(8,128)}', space=vmem, size = 0x8000, scoped, tag = 'scratch operand']
  #allocation4 [shape = 'f32[32,96]{1,0:T(8,128)}', space=vmem, size = 0x4000, scoped, tag = 'scratch operand']
  #allocation5 [shape = 'f32[64,32]{1,0:T(8,128)}', space=vmem, size = 0x8000, scoped, tag = 'scratch operand']
  #allocation6 [shape = 'f32[64,32]{1,0:T(8,128)}', space=vmem, size = 0x8000, scoped, tag = 'scratch operand']
  %s0 = inlined_call_operand.vmem [shape: f32[64,3], index: 0, kind: input, shape index: {}]
  %s1 = inlined_call_operand.vmem [shape: f32[32,4], index: 1, kind: input, shape index: {}]
  %s2 = inlined_call_operand.hbm [shape: f32[312,256], index: 2, kind: input, shape index: {}]
  %s3 = inlined_call_operand.vmem [shape: f32[8,4], index: 3, kind: output, shape index: {}]
  %s4 = sld [smem:[#allocation0]]
  $region26: #{attention_seq2seq_forward.1} parent=0
    _
  %s6 = ssub.s32 1, %s4
  %s7 = scalar_select 0, %s6, %s4
  $region1: #{attention_seq2seq_forward.1} parent=0
    #allocation7 [shape = 'u8[319488]{0}', space=vmem, size = 0x4e000, scoped, tag = 'input window, operand 2, single buffered']
    #allocation8 [shape = 's32[1]{0}', space=sflag, size = 0x4, scoped, tag = 'scoped memory for attention_seq2seq_forward.1']
    %8 = vsyncpa [#allocation8], 0
    // Predicated region
    $region2: #{attention_seq2seq_forward.1} parent=1 // pred_check
      _
    $region3: #{attention_seq2seq_forward.1} parent=1 // pred_check_branch
      %10 = sbr.rel (0) target = $region5
    $region4: #{attention_seq2seq_forward.1} parent=1 // pred_region
      _
    $region5: #{attention_seq2seq_forward.1} parent=1 // pred_fallthru
      _
    // Predicated region
    $region6: #{attention_seq2seq_forward.1} parent=1 // pred_check
      _
    $region7: #{attention_seq2seq_forward.1} parent=1 // pred_check_branch
      %12 = sbr.rel (0) target = $region9
    $region8: #{attention_seq2seq_forward.1} parent=1 // pred_region
      _
    $region9: #{attention_seq2seq_forward.1} parent=1 // pred_fallthru
      _
    // Predicated region
    $region10: #{attention_seq2seq_forward.1} parent=1 // pred_check
      _
    $region11: #{attention_seq2seq_forward.1} parent=1 // pred_check_branch
      %14 = sbr.rel (0) target = $region13
    $region12: #{attention_seq2seq_forward.1} parent=1 // pred_region
      %s16 = ssub.s32 9984, 9984
      %17 = vsyncadd [#allocation8], %s16
      %s18 = sshll.u32 [#allocation7], 4
      %s19 = int_to_ptr.vmem [resolvable:$true] %s18
      %24 = dma.hbm_to_vmem [thread:$0]  %s2, 9984, %s19, [#allocation8], 256, 256, 16
    $region13: #{attention_seq2seq_forward.1} parent=1 // pred_fallthru
      _
    // Predicated region
    $region14: #{attention_seq2seq_forward.1} parent=1 // pred_check
      _
    $region15: #{attention_seq2seq_forward.1} parent=1 // pred_check_branch
      %26 = sbr.rel (0) target = $region17
    $region16: #{attention_seq2seq_forward.1} parent=1 // pred_region
      %27 = dma.done [#allocation8], 9984
    $region17: #{attention_seq2seq_forward.1} parent=1 // pred_fallthru
      _
    %v28 = vld [vmem:[%s0] sm:$0xff]
    %v29 = vld [vmem:[%s0 + $0x8] sm:$0xff]
    %v30 = vld [vmem:[%s0 + $0x10] sm:$0xff]
    %v31 = vld [vmem:[%s0 + $0x18] sm:$0xff]
    %v32 = vld [vmem:[%s0 + $0x20] sm:$0xff]
    %v33 = vld [vmem:[%s0 + $0x28] sm:$0xff]
    %v34 = vld [vmem:[%s0 + $0x30] sm:$0xff]
    %v35 = vld [vmem:[%s0 + $0x38] sm:$0xff]
    %v36 = vld [vmem:[#allocation7] sm:$0x7]
    %v37 = vld [vmem:[#allocation7 + $0x1e0] ss:$0 sm:$0xff]
    %vm38 = vcmask 23552
    %v40 = vsel %vm38, %v28, 0
    %v43 = vsel %vm38, %v29, 0
    %v46 = vsel %vm38, %v30, 0
    %v49 = vsel %vm38, %v31, 0
    %v52 = vsel %vm38, %v32, 0
    %v55 = vsel %vm38, %v33, 0
    %v58 = vsel %vm38, %v34, 0
    %v61 = vsel %vm38, %v35, 0
    %vm63 = vcmask 1042432
    %v65 = vsel %vm63, %v36, 0
    %67 = vmatprep.subr.mxu0 0.0
    %68 = vmatpush1.msra.mxu0 %v65
    %69 = vmatprep.subr.mxu0 0.0
    %70 = vmatpush1.msra.mxu0 0.0
    %71 = vmatprep.subr.mxu0 0.0
    %72 = vmatpush1.msra.mxu0 0.0
    %73 = vmatprep.subr.mxu0 0.0
    %74 = vmatpush1.msra.mxu0 0.0
    %75 = vmatprep.subr.mxu0 0.0
    %76 = vmatpush1.msra.mxu0 0.0
    %77 = vmatprep.subr.mxu0 0.0
    %78 = vmatpush1.msra.mxu0 0.0
    %79 = vmatprep.subr.mxu0 0.0
    %80 = vmatpush1.msra.mxu0 0.0
    %81 = vmatprep.subr.mxu0 0.0
    %82 = vmatpush1.msra.mxu0 0.0
    %83 = vmatprep.subr.mxu0 0.0
    %84 = vmatpush1.msra.mxu0 0.0
    %85 = vmatprep.subr.mxu0 0.0
    %86 = vmatpush1.msra.mxu0 0.0
    %87 = vmatprep.subr.mxu0 0.0
    %88 = vmatpush1.msra.mxu0 0.0
    %89 = vmatprep.subr.mxu0 0.0
    %90 = vmatpush1.msra.mxu0 0.0
    %91 = vmatprep.subr.mxu0 0.0
    %92 = vmatpush1.msra.mxu0 0.0
    %93 = vmatprep.subr.mxu0 0.0
    %94 = vmatpush1.msra.mxu0 0.0
    %95 = vmatprep.subr.mxu0 0.0
    %96 = vmatpush1.msra.mxu0 0.0
    %97 = vmatprep.subr.mxu0 0.0
    %98 = vmatpush1.msra.mxu0 0.0
    %99 = vmatprep.subr.mxu0 0.0
    %100 = vmatpush1.msra.mxu0 0.0
    %101 = vmatprep.subr.mxu0 0.0
    %102 = vmatpush1.msra.mxu0 0.0
    %103 = vmatprep.subr.mxu0 0.0
    %104 = vmatpush1.msra.mxu0 0.0
    %105 = vmatprep.subr.mxu0 0.0
    %106 = vmatpush1.msra.mxu0 0.0
    %107 = vmatprep.subr.mxu0 0.0
    %108 = vmatpush1.msra.mxu0 0.0
    %109 = vmatprep.subr.mxu0 0.0
    %110 = vmatpush1.msra.mxu0 0.0
    %111 = vmatprep.subr.mxu0 0.0
    %112 = vmatpush1.msra.mxu0 0.0
    %113 = vmatprep.subr.mxu0 0.0
    %114 = vmatpush1.msra.mxu0 0.0
    %115 = vmatprep.subr.mxu0 0.0
    %116 = vmatpush1.msra.mxu0 0.0
    %117 = vmatprep.subr.mxu0 0.0
    %118 = vmatpush1.msra.mxu0 0.0
    %119 = vmatprep.subr.mxu0 0.0
    %120 = vmatpush1.msra.mxu0 0.0
    %121 = vmatprep.subr.mxu0 0.0
    %122 = vmatpush1.msra.mxu0 0.0
    %123 = vmatprep.subr.mxu0 0.0
    %124 = vmatpush1.msra.mxu0 0.0
    %125 = vmatprep.subr.mxu0 0.0
    %126 = vmatpush1.msra.mxu0 0.0
    %127 = vmatprep.subr.mxu0 0.0
    %128 = vmatpush1.msra.mxu0 0.0
    %129 = vmatprep.subr.mxu0 0.0
    %130 = vmatpush1.msra.mxu0 0.0
    %131 = vmatprep.mubr.f32.mxu0 0.0
    %132 = vmatmul.mubr.f32.gmra.mrb[0].mxu0 %v40
    %v133 = vpop.f32.mrb[0].mxu0
    %v134 = vadd.f32 %v37, %v133
    %v135 = vpop.f32.mrb[0].mxu0
    %136 = vmatprep.mubr.f32.mxu0 0.0
    %137 = vmatmul.mubr.f32.gmra.mrb[0].mxu0 %v43
    %v138 = vpop.f32.mrb[0].mxu0
    %v139 = vadd.f32 %v37, %v138
    %v140 = vpop.f32.mrb[0].mxu0
    %141 = vmatprep.mubr.f32.mxu0 0.0
    %142 = vmatmul.mubr.f32.gmra.mrb[0].mxu0 %v46
    %v143 = vpop.f32.mrb[0].mxu0
    %v144 = vadd.f32 %v37, %v143
    %v145 = vpop.f32.mrb[0].mxu0
    %146 = vmatprep.mubr.f32.mxu0 0.0
    %147 = vmatmul.mubr.f32.gmra.mrb[0].mxu0 %v49
    %v148 = vpop.f32.mrb[0].mxu0
    %v149 = vadd.f32 %v37, %v148
    %v150 = vpop.f32.mrb[0].mxu0
    %151 = vmatprep.mubr.f32.mxu0 0.0
    %152 = vmatmul.mubr.f32.gmra.mrb[0].mxu0 %v52
    %v153 = vpop.f32.mrb[0].mxu0
    %v154 = vadd.f32 %v37, %v153
    %v155 = vpop.f32.mrb[0].mxu0
    %156 = vmatprep.mubr.f32.mxu0 0.0
    %157 = vmatmul.mubr.f32.gmra.mrb[0].mxu0 %v55
    %v158 = vpop.f32.mrb[0].mxu0
    %v159 = vadd.f32 %v37, %v158
    %v160 = vpop.f32.mrb[0].mxu0
    %161 = vmatprep.mubr.f32.mxu0 0.0
    %162 = vmatmul.mubr.f32.gmra.mrb[0].mxu0 %v58
    %v163 = vpop.f32.mrb[0].mxu0
    %v164 = vadd.f32 %v37, %v163
    %v165 = vpop.f32.mrb[0].mxu0
    %166 = vmatprep.mubr.f32.mxu0 0.0
    %167 = vmatmul.mubr.f32.gmra.mrb[0].mxu0 %v61
    %v168 = vpop.f32.mrb[0].mxu0
    %v169 = vadd.f32 %v37, %v168
    %v170 = vpop.f32.mrb[0].mxu0
    %171 = vdwg.mxu0
    %vm172 = vcmask 785408
    %173 = vst.msk [vmem:[#allocation2] sm:$0xff] %vm172, %v134
    %174 = vst.msk [vmem:[#allocation2 + $0x8] sm:$0xff] %vm172, %v139
    %175 = vst.msk [vmem:[#allocation2 + $0x10] sm:$0xff] %vm172, %v144
    %176 = vst.msk [vmem:[#allocation2 + $0x18] sm:$0xff] %vm172, %v149
    %177 = vst.msk [vmem:[#allocation2 + $0x20] sm:$0xff] %vm172, %v154
    %178 = vst.msk [vmem:[#allocation2 + $0x28] sm:$0xff] %vm172, %v159
    %179 = vst.msk [vmem:[#allocation2 + $0x30] sm:$0xff] %vm172, %v164
    %180 = vst.msk [vmem:[#allocation2 + $0x38] sm:$0xff] %vm172, %v169
    %s181 = scalar_lea.vmem [#allocation7], 496
    %v182 = vld [vmem:[%s181] ss:$8 sm:$0x3]
    %v184 = vlaneseq
    %v185 = vshrl.u32 %v184, 7
    %v186 = vsub.s32 0, %v185
    %v187 = vrot.slane %v182, %v186
    %v188 = vlaneseq
    %v189 = vshrl.u32 %v188, 7
    %v190 = vsub.s32 1, %v189
    %v191 = vrot.slane %v182, %v190
    %v194 = vld [vmem:[#allocation7 + $0x200] ss:$0 sm:$0xff]
    %v195 = vld [vmem:[#allocation2] sm:$0xff]
    %v196 = vadd.f32 %v195, %v187
    %v197 = vxor.u32 %v196, 2147483648
    %v198 = vmul.f32 %v197, 1.442695
    %v199 = vpow.pop %v198
    %v200 = vadd.f32 %v199, 1.0
    %v201 = vrcp.pop %v200
    %v202 = vmul.f32 1.0, %v201
    %203 = vrot.lane.b32.xlu0 %v187, 64
    %v204 = vpop.permute.xlu0 %203
    %v206 = vmul.f32 %v202, %v204
    %208 = vrot.lane.b32.xlu0 %v206, 64
    %v209 = vpop.permute.xlu0 %208
    %v211 = vadd.f32 %v195, %v209
    %v212 = vtanh.pop %v211
    %v213 = vsub.f32 1.0, %v202
    %215 = vrot.lane.b32.xlu0 %v212, 96
    %v216 = vpop.permute.xlu0 %215
    %v218 = vmul.f32 %v213, %v216
    %v219 = vmul.f32 %v202, 0.0
    %v220 = vadd.f32 %v218, %v219
    %v221 = vld [vmem:[#allocation7 + $0x10] sm:$0xff]
    %v222 = vld [vmem:[#allocation7 + $0x18] sm:$0xff]
    %v223 = vld [vmem:[#allocation7 + $0x20] sm:$0xff]
    %v224 = vld [vmem:[#allocation7 + $0x28] sm:$0xff]
    %v225 = vld [vmem:[#allocation7 + $0x30] sm:$0xff]
    %v226 = vld [vmem:[#allocation7 + $0x38] sm:$0xff]
    %v227 = vld [vmem:[#allocation7 + $0x40] sm:$0xff]
    %v228 = vld [vmem:[#allocation7 + $0x48] sm:$0xff]
    %230 = vrot.lane.b32.xlu0 %v220, 96
    %v231 = vpop.permute.xlu0 %230
    %vm232 = vcmask 261120
    %v233 = vsel %vm232, %v231, 0
    %235 = vmatprep.subr.mxu0 %v222
    %236 = vmatpush1.msra.mxu0 %v221
    %237 = vmatprep.subr.mxu0 %v224
    %238 = vmatpush1.msra.mxu0 %v223
    %239 = vmatprep.subr.mxu0 %v226
    %240 = vmatpush1.msra.mxu0 %v225
    %241 = vmatprep.subr.mxu0 %v228
    %242 = vmatpush1.msra.mxu0 %v227
    %243 = vmatprep.subr.mxu0 0.0
    %244 = vmatpush1.msra.mxu0 0.0
    %245 = vmatprep.subr.mxu0 0.0
    %246 = vmatpush1.msra.mxu0 0.0
    %247 = vmatprep.subr.mxu0 0.0
    %248 = vmatpush1.msra.mxu0 0.0
    %249 = vmatprep.subr.mxu0 0.0
    %250 = vmatpush1.msra.mxu0 0.0
    %251 = vmatprep.subr.mxu0 0.0
    %252 = vmatpush1.msra.mxu0 0.0
    %253 = vmatprep.subr.mxu0 0.0
    %254 = vmatpush1.msra.mxu0 0.0
    %255 = vmatprep.subr.mxu0 0.0
    %256 = vmatpush1.msra.mxu0 0.0
    %257 = vmatprep.subr.mxu0 0.0
    %258 = vmatpush1.msra.mxu0 0.0
    %259 = vmatprep.subr.mxu0 0.0
    %260 = vmatpush1.msra.mxu0 0.0
    %261 = vmatprep.subr.mxu0 0.0
    %262 = vmatpush1.msra.mxu0 0.0
    %263 = vmatprep.subr.mxu0 0.0
    %264 = vmatpush1.msra.mxu0 0.0
    %265 = vmatprep.subr.mxu0 0.0
    %266 = vmatpush1.msra.mxu0 0.0
    %267 = vmatprep.subr.mxu0 0.0
    %268 = vmatpush1.msra.mxu0 0.0
    %269 = vmatprep.subr.mxu0 0.0
    %270 = vmatpush1.msra.mxu0 0.0
    %271 = vmatprep.subr.mxu0 0.0
    %272 = vmatpush1.msra.mxu0 0.0
    %273 = vmatprep.subr.mxu0 0.0
    %274 = vmatpush1.msra.mxu0 0.0
    %275 = vmatprep.subr.mxu0 0.0
    %276 = vmatpush1.msra.mxu0 0.0
    %277 = vmatprep.subr.mxu0 0.0
    %278 = vmatpush1.msra.mxu0 0.0
    %279 = vmatprep.subr.mxu0 0.0
    %280 = vmatpush1.msra.mxu0 0.0
    %281 = vmatprep.subr.mxu0 0.0
    %282 = vmatpush1.msra.mxu0 0.0
    %283 = vmatprep.subr.mxu0 0.0
    %284 = vmatpush1.msra.mxu0 0.0
    %285 = vmatprep.subr.mxu0 0.0
    %286 = vmatpush1.msra.mxu0 0.0
    %287 = vmatprep.subr.mxu0 0.0
    %288 = vmatpush1.msra.mxu0 0.0
    %289 = vmatprep.subr.mxu0 0.0
    %290 = vmatpush1.msra.mxu0 0.0
    %291 = vmatprep.subr.mxu0 0.0
    %292 = vmatpush1.msra.mxu0 0.0
    %293 = vmatprep.subr.mxu0 0.0
    %294 = vmatpush1.msra.mxu0 0.0
    %295 = vmatprep.subr.mxu0 0.0
    %296 = vmatpush1.msra.mxu0 0.0
    %297 = vmatprep.subr.mxu0 0.0
    %298 = vmatpush1.msra.mxu0 0.0
    %299 = vmatprep.mubr.f32.mxu0 0.0
    %300 = vmatmul.mubr.f32.gmra.mrb[0].mxu0 %v233
    %v301 = vpop.f32.mrb[0].mxu0
    %v302 = vadd.f32 %v187, %v301
    %v303 = vpop.f32.mrb[0].mxu0
    %v304 = vadd.f32 %v191, %v303
    %305 = vdwg.mxu0
    %307 = vrot.lane.b32.xlu0 %v194, 96
    %v308 = vpop.permute.xlu0 %307
    %v310 = vadd.f32 %v302, %v308
    %v311 = vxor.u32 %v310, 2147483648
    %v312 = vmul.f32 %v311, 1.442695
    %v313 = vpow.pop %v312
    %v314 = vadd.f32 %v313, 1.0
    %v315 = vrcp.pop %v314
    %v316 = vmul.f32 1.0, %v315
    %v317 = vadd.f32 %v304, %v308
    %v318 = vxor.u32 %v317, 2147483648
    %v319 = vmul.f32 %v318, 1.442695
    %v320 = vpow.pop %v319
    %v321 = vadd.f32 %v320, 1.0
    %v322 = vrcp.pop %v321
    %v323 = vmul.f32 1.0, %v322
    %324 = vrot.lane.b32.xlu0 %v194, 32
    %v325 = vpop.permute.xlu0 %324
    %v327 = vmul.f32 %v316, %v325
    %329 = vrot.lane.b32.xlu0 %v327, 64
    %v330 = vpop.permute.xlu0 %329
    %v332 = vadd.f32 %v304, %v330
    %v333 = vtanh.pop %v332
    %v334 = vsub.f32 1.0, %v323
    %336 = vrot.lane.b32.xlu0 %v333, 96
    %v337 = vpop.permute.xlu0 %336
    %v339 = vmul.f32 %v334, %v337
    %v340 = vmul.f32 %v323, 0.0
    %v341 = vadd.f32 %v339, %v340
    %342 = vst.msk [vmem:[#allocation3] sm:$0xff] %vm232, %v341
    %v343 = vld [vmem:[#allocation2 + $0x8] sm:$0xff]
    %v344 = vadd.f32 %v343, %v302
    %v345 = vxor.u32 %v344, 2147483648
    %v346 = vmul.f32 %v345, 1.442695
    %v347 = vpow.pop %v346
    %v348 = vadd.f32 %v347, 1.0
    %v349 = vrcp.pop %v348
    %v350 = vmul.f32 1.0, %v349
    %352 = vrot.lane.b32.xlu0 %v302, 64
    %v353 = vpop.permute.xlu0 %352
    %v355 = vmul.f32 %v350, %v353
    %357 = vrot.lane.b32.xlu0 %v355, 64
    %v358 = vpop.permute.xlu0 %357
    %v360 = vadd.f32 %v343, %v358
    %v361 = vtanh.pop %v360
    %v362 = vsub.f32 1.0, %v350
    %364 = vrot.lane.b32.xlu0 %v361, 96
    %v365 = vpop.permute.xlu0 %364
    %v367 = vmul.f32 %v362, %v365
    %v368 = vmul.f32 %v350, %v220
    %v369 = vadd.f32 %v367, %v368
    %v370 = vld [vmem:[#allocation7 + $0x10] sm:$0xff]
    %v371 = vld [vmem:[#allocation7 + $0x18] sm:$0xff]
    %v372 = vld [vmem:[#allocation7 + $0x20] sm:$0xff]
    %v373 = vld [vmem:[#allocation7 + $0x28] sm:$0xff]
    %v374 = vld [vmem:[#allocation7 + $0x30] sm:$0xff]
    %v375 = vld [vmem:[#allocation7 + $0x38] sm:$0xff]
    %v376 = vld [vmem:[#allocation7 + $0x40] sm:$0xff]
    %v377 = vld [vmem:[#allocation7 + $0x48] sm:$0xff]
    %379 = vrot.lane.b32.xlu0 %v369, 96
    %v380 = vpop.permute.xlu0 %379
    %v381 = vsel %vm232, %v380, 0
    %383 = vmatprep.subr.mxu0 %v371
    %384 = vmatpush1.msra.mxu0 %v370
    %385 = vmatprep.subr.mxu0 %v373
    %386 = vmatpush1.msra.mxu0 %v372
    %387 = vmatprep.subr.mxu0 %v375
    %388 = vmatpush1.msra.mxu0 %v374
    %389 = vmatprep.subr.mxu0 %v377
    %390 = vmatpush1.msra.mxu0 %v376
    %391 = vmatprep.subr.mxu0 0.0
    %392 = vmatpush1.msra.mxu0 0.0
    %393 = vmatprep.subr.mxu0 0.0
    %394 = vmatpush1.msra.mxu0 0.0
    %395 = vmatprep.subr.mxu0 0.0
    %396 = vmatpush1.msra.mxu0 0.0
    %397 = vmatprep.subr.mxu0 0.0
    %398 = vmatpush1.msra.mxu0 0.0
    %399 = vmatprep.subr.mxu0 0.0
    %400 = vmatpush1.msra.mxu0 0.0
    %401 = vmatprep.subr.mxu0 0.0
    %402 = vmatpush1.msra.mxu0 0.0
    %403 = vmatprep.subr.mxu0 0.0
    %404 = vmatpush1.msra.mxu0 0.0
    %405 = vmatprep.subr.mxu0 0.0
    %406 = vmatpush1.msra.mxu0 0.0
    %407 = vmatprep.subr.mxu0 0.0
    %408 = vmatpush1.msra.mxu0 0.0
    %409 = vmatprep.subr.mxu0 0.0
    %410 = vmatpush1.msra.mxu0 0.0
    %411 = vmatprep.subr.mxu0 0.0
    %412 = vmatpush1.msra.mxu0 0.0
    %413 = vmatprep.subr.mxu0 0.0
    %414 = vmatpush1.msra.mxu0 0.0
    %415 = vmatprep.subr.mxu0 0.0
    %416 = vmatpush1.msra.mxu0 0.0
    %417 = vmatprep.subr.mxu0 0.0
    %418 = vmatpush1.msra.mxu0 0.0
    %419 = vmatprep.subr.mxu0 0.0
    %420 = vmatpush1.msra.mxu0 0.0
    %421 = vmatprep.subr.mxu0 0.0
    %422 = vmatpush1.msra.mxu0 0.0
    %423 = vmatprep.subr.mxu0 0.0
    %424 = vmatpush1.msra.mxu0 0.0
    %425 = vmatprep.subr.mxu0 0.0
    %426 = vmatpush1.msra.mxu0 0.0
    %427 = vmatprep.subr.mxu0 0.0
    %428 = vmatpush1.msra.mxu0 0.0
    %429 = vmatprep.subr.mxu0 0.0
    %430 = vmatpush1.msra.mxu0 0.0
    %431 = vmatprep.subr.mxu0 0.0
    %432 = vmatpush1.msra.mxu0 0.0
    %433 = vmatprep.subr.mxu0 0.0
    %434 = vmatpush1.msra.mxu0 0.0
    %435 = vmatprep.subr.mxu0 0.0
    %436 = vmatpush1.msra.mxu0 0.0
    %437 = vmatprep.subr.mxu0 0.0
    %438 = vmatpush1.msra.mxu0 0.0
    %439 = vmatprep.subr.mxu0 0.0
    %440 = vmatpush1.msra.mxu0 0.0
    %441 = vmatprep.subr.mxu0 0.0
    %442 = vmatpush1.msra.mxu0 0.0
    %443 = vmatprep.subr.mxu0 0.0
    %444 = vmatpush1.msra.mxu0 0.0
    %445 = vmatprep.subr.mxu0 0.0
    %446 = vmatpush1.msra.mxu0 0.0
    %447 = vmatprep.mubr.f32.mxu0 0.0
    %448 = vmatmul.mubr.f32.gmra.mrb[0].mxu0 %v381
    %v449 = vpop.f32.mrb[0].mxu0
    %v450 = vadd.f32 %v187, %v449
    %v451 = vpop.f32.mrb[0].mxu0
    %v452 = vadd.f32 %v191, %v451
    %453 = vdwg.mxu0
    %v454 = vld [vmem:[#allocation7 + $0x50] sm:$0xff]
    %v455 = vld [vmem:[#allocation7 + $0x60] sm:$0xff]
    %v456 = vld [vmem:[#allocation7 + $0x70] sm:$0xff]
    %v457 = vld [vmem:[#allocation7 + $0x80] sm:$0xff]
    %v459 = vsel %vm232, %v341, 0
    %461 = vmatprep.subr.mxu0 0.0
    %462 = vmatpush1.msra.mxu0 %v454
    %463 = vmatprep.subr.mxu0 0.0
    %464 = vmatpush1.msra.mxu0 %v455
    %465 = vmatprep.subr.mxu0 0.0
    %466 = vmatpush1.msra.mxu0 %v456
    %467 = vmatprep.subr.mxu0 0.0
    %468 = vmatpush1.msra.mxu0 %v457
    %469 = vmatprep.subr.mxu0 0.0
    %470 = vmatpush1.msra.mxu0 0.0
    %471 = vmatprep.subr.mxu0 0.0
    %472 = vmatpush1.msra.mxu0 0.0
    %473 = vmatprep.subr.mxu0 0.0
    %474 = vmatpush1.msra.mxu0 0.0
    %475 = vmatprep.subr.mxu0 0.0
    %476 = vmatpush1.msra.mxu0 0.0
    %477 = vmatprep.subr.mxu0 0.0
    %478 = vmatpush1.msra.mxu0 0.0
    %479 = vmatprep.subr.mxu0 0.0
    %480 = vmatpush1.msra.mxu0 0.0
    %481 = vmatprep.subr.mxu0 0.0
    %482 = vmatpush1.msra.mxu0 0.0
    %483 = vmatprep.subr.mxu0 0.0
    %484 = vmatpush1.msra.mxu0 0.0
    %485 = vmatprep.subr.mxu0 0.0
    %486 = vmatpush1.msra.mxu0 0.0
    %487 = vmatprep.subr.mxu0 0.0
    %488 = vmatpush1.msra.mxu0 0.0
    %489 = vmatprep.subr.mxu0 0.0
    %490 = vmatpush1.msra.mxu0 0.0
    %491 = vmatprep.subr.mxu0 0.0
    %492 = vmatpush1.msra.mxu0 0.0
    %493 = vmatprep.subr.mxu0 0.0
    %494 = vmatpush1.msra.mxu0 0.0
    %495 = vmatprep.subr.mxu0 0.0
    %496 = vmatpush1.msra.mxu0 0.0
    %497 = vmatprep.subr.mxu0 0.0
    %498 = vmatpush1.msra.mxu0 0.0
    %499 = vmatprep.subr.mxu0 0.0
    %500 = vmatpush1.msra.mxu0 0.0
    %501 = vmatprep.subr.mxu0 0.0
    %502 = vmatpush1.msra.mxu0 0.0
    %503 = vmatprep.subr.mxu0 0.0
    %504 = vmatpush1.msra.mxu0 0.0
    %505 = vmatprep.subr.mxu0 0.0
    %506 = vmatpush1.msra.mxu0 0.0
    %507 = vmatprep.subr.mxu0 0.0
    %508 = vmatpush1.msra.mxu0 0.0
    %509 = vmatprep.subr.mxu0 0.0
    %510 = vmatpush1.msra.mxu0 0.0
    %511 = vmatprep.subr.mxu0 0.0
    %512 = vmatpush1.msra.mxu0 0.0
    %513 = vmatprep.subr.mxu0 0.0
    %514 = vmatpush1.msra.mxu0 0.0
    %515 = vmatprep.subr.mxu0 0.0
    %516 = vmatpush1.msra.mxu0 0.0
    %517 = vmatprep.subr.mxu0 0.0
    %518 = vmatpush1.msra.mxu0 0.0
    %519 = vmatprep.subr.mxu0 0.0
    %520 = vmatpush1.msra.mxu0 0.0
    %521 = vmatprep.subr.mxu0 0.0
    %522 = vmatpush1.msra.mxu0 0.0
    %523 = vmatprep.subr.mxu0 0.0
    %524 = vmatpush1.msra.mxu0 0.0
    %525 = vmatprep.mubr.f32.mxu0 0.0
    %526 = vmatmul.mubr.f32.gmra.mrb[0].mxu0 %v459
    %v527 = vpop.f32.mrb[0].mxu0
    %v528 = vadd.f32 %v194, %v527
    %v529 = vpop.f32.mrb[0].mxu0
    %530 = vdwg.mxu0
    %532 = vrot.lane.b32.xlu0 %v528, 96
    %v533 = vpop.permute.xlu0 %532
    %v535 = vadd.f32 %v450, %v533
    %v536 = vxor.u32 %v535, 2147483648
    %v537 = vmul.f32 %v536, 1.442695
    %v538 = vpow.pop %v537
    %v539 = vadd.f32 %v538, 1.0
    %v540 = vrcp.pop %v539
    %v541 = vmul.f32 1.0, %v540
    %v542 = vadd.f32 %v452, %v533
    %v543 = vxor.u32 %v542, 2147483648
    %v544 = vmul.f32 %v543, 1.442695
    %v545 = vpow.pop %v544
    %v546 = vadd.f32 %v545, 1.0
    %v547 = vrcp.pop %v546
    %v548 = vmul.f32 1.0, %v547
    %549 = vrot.lane.b32.xlu0 %v528, 32
    %v550 = vpop.permute.xlu0 %549
    %v552 = vmul.f32 %v541, %v550
    %554 = vrot.lane.b32.xlu0 %v552, 64
    %v555 = vpop.permute.xlu0 %554
    %v557 = vadd.f32 %v452, %v555
    %v558 = vtanh.pop %v557
    %v559 = vsub.f32 1.0, %v548
    %561 = vrot.lane.b32.xlu0 %v558, 96
    %v562 = vpop.permute.xlu0 %561
    %v564 = vmul.f32 %v559, %v562
    %v565 = vmul.f32 %v548, %v341
    %v566 = vadd.f32 %v564, %v565
    %567 = vst.msk [vmem:[#allocation3 + $0x8] sm:$0xff] %vm232, %v566
    %v568 = vld [vmem:[#allocation2 + $0x10] sm:$0xff]
    %v569 = vadd.f32 %v568, %v450
    %v570 = vxor.u32 %v569, 2147483648
    %v571 = vmul.f32 %v570, 1.442695
    %v572 = vpow.pop %v571
    %v573 = vadd.f32 %v572, 1.0
    %v574 = vrcp.pop %v573
    %v575 = vmul.f32 1.0, %v574
    %577 = vrot.lane.b32.xlu0 %v450, 64
    %v578 = vpop.permute.xlu0 %577
    %v580 = vmul.f32 %v575, %v578
    %582 = vrot.lane.b32.xlu0 %v580, 64
    %v583 = vpop.permute.xlu0 %582
    %v585 = vadd.f32 %v568, %v583
    %v586 = vtanh.pop %v585
    %v587 = vsub.f32 1.0, %v575
    %589 = vrot.lane.b32.xlu0 %v586, 96
    %v590 = vpop.permute.xlu0 %589
    %v592 = vmul.f32 %v587, %v590
    %v593 = vmul.f32 %v575, %v369
    %v594 = vadd.f32 %v592, %v593
    %v595 = vld [vmem:[#allocation7 + $0x10] sm:$0xff]
    %v596 = vld [vmem:[#allocation7 + $0x18] sm:$0xff]
    %v597 = vld [vmem:[#allocation7 + $0x20] sm:$0xff]
    %v598 = vld [vmem:[#allocation7 + $0x28] sm:$0xff]
    %v599 = vld [vmem:[#allocation7 + $0x30] sm:$0xff]
    %v600 = vld [vmem:[#allocation7 + $0x38] sm:$0xff]
    %v601 = vld [vmem:[#allocation7 + $0x40] sm:$0xff]
    %v602 = vld [vmem:[#allocation7 + $0x48] sm:$0xff]
    %604 = vrot.lane.b32.xlu0 %v594, 96
    %v605 = vpop.permute.xlu0 %604
    %v606 = vsel %vm232, %v605, 0
    %608 = vmatprep.subr.mxu0 %v596
    %609 = vmatpush1.msra.mxu0 %v595
    %610 = vmatprep.subr.mxu0 %v598
    %611 = vmatpush1.msra.mxu0 %v597
    %612 = vmatprep.subr.mxu0 %v600
    %613 = vmatpush1.msra.mxu0 %v599
    %614 = vmatprep.subr.mxu0 %v602
    %615 = vmatpush1.msra.mxu0 %v601
    %616 = vmatprep.subr.mxu0 0.0
    %617 = vmatpush1.msra.mxu0 0.0
    %618 = vmatprep.subr.mxu0 0.0
    %619 = vmatpush1.msra.mxu0 0.0
    %620 = vmatprep.subr.mxu0 0.0
    %621 = vmatpush1.msra.mxu0 0.0
    %622 = vmatprep.subr.mxu0 0.0
    %623 = vmatpush1.msra.mxu0 0.0
    %624 = vmatprep.subr.mxu0 0.0
    %625 = vmatpush1.msra.mxu0 0.0
    %626 = vmatprep.subr.mxu0 0.0
    %627 = vmatpush1.msra.mxu0 0.0
    %628 = vmatprep.subr.mxu0 0.0
    %629 = vmatpush1.msra.mxu0 0.0
    %630 = vmatprep.subr.mxu0 0.0
    %631 = vmatpush1.msra.mxu0 0.0
    %632 = vmatprep.subr.mxu0 0.0
    %633 = vmatpush1.msra.mxu0 0.0
    %634 = vmatprep.subr.mxu0 0.0
    %635 = vmatpush1.msra.mxu0 0.0
    %636 = vmatprep.subr.mxu0 0.0
    %637 = vmatpush1.msra.mxu0 0.0
    %638 = vmatprep.subr.mxu0 0.0
    %639 = vmatpush1.msra.mxu0 0.0
    %640 = vmatprep.subr.mxu0 0.0
    %641 = vmatpush1.msra.mxu0 0.0
    %642 = vmatprep.subr.mxu0 0.0
    %643 = vmatpush1.msra.mxu0 0.0
    %644 = vmatprep.subr.mxu0 0.0
    %645 = vmatpush1.msra.mxu0 0.0
    %646 = vmatprep.subr.mxu0 0.0
    %647 = vmatpush1.msra.mxu0 0.0
    %648 = vmatprep.subr.mxu0 0.0
    %649 = vmatpush1.msra.mxu0 0.0
    %650 = vmatprep.subr.mxu0 0.0
    %651 = vmatpush1.msra.mxu0 0.0
    %652 = vmatprep.subr.mxu0 0.0
    %653 = vmatpush1.msra.mxu0 0.0
    %654 = vmatprep.subr.mxu0 0.0
    %655 = vmatpush1.msra.mxu0 0.0
    %656 = vmatprep.subr.mxu0 0.0
    %657 = vmatpush1.msra.mxu0 0.0
    %658 = vmatprep.subr.mxu0 0.0
    %659 = vmatpush1.msra.mxu0 0.0
    %660 = vmatprep.subr.mxu0 0.0
    %661 = vmatpush1.msra.mxu0 0.0
    %662 = vmatprep.subr.mxu0 0.0
    %663 = vmatpush1.msra.mxu0 0.0
    %664 = vmatprep.subr.mxu0 0.0
    %665 = vmatpush1.msra.mxu0 0.0
    %666 = vmatprep.subr.mxu0 0.0
    %667 = vmatpush1.msra.mxu0 0.0
    %668 = vmatprep.subr.mxu0 0.0
    %669 = vmatpush1.msra.mxu0 0.0
    %670 = vmatprep.subr.mxu0 0.0
    %671 = vmatpush1.msra.mxu0 0.0
    %672 = vmatprep.mubr.f32.mxu0 0.0
    %673 = vmatmul.mubr.f32.gmra.mrb[0].mxu0 %v606
    %v674 = vpop.f32.mrb[0].mxu0
    %v675 = vadd.f32 %v187, %v674
    %v676 = vpop.f32.mrb[0].mxu0
    %v677 = vadd.f32 %v191, %v676
    %678 = vdwg.mxu0
    %v679 = vld [vmem:[#allocation7 + $0x50] sm:$0xff]
    %v680 = vld [vmem:[#allocation7 + $0x60] sm:$0xff]
    %v681 = vld [vmem:[#allocation7 + $0x70] sm:$0xff]
    %v682 = vld [vmem:[#allocation7 + $0x80] sm:$0xff]
    %v684 = vsel %vm232, %v566, 0
    %686 = vmatprep.subr.mxu0 0.0
    %687 = vmatpush1.msra.mxu0 %v679
    %688 = vmatprep.subr.mxu0 0.0
    %689 = vmatpush1.msra.mxu0 %v680
    %690 = vmatprep.subr.mxu0 0.0
    %691 = vmatpush1.msra.mxu0 %v681
    %692 = vmatprep.subr.mxu0 0.0
    %693 = vmatpush1.msra.mxu0 %v682
    %694 = vmatprep.subr.mxu0 0.0
    %695 = vmatpush1.msra.mxu0 0.0
    %696 = vmatprep.subr.mxu0 0.0
    %697 = vmatpush1.msra.mxu0 0.0
    %698 = vmatprep.subr.mxu0 0.0
    %699 = vmatpush1.msra.mxu0 0.0
    %700 = vmatprep.subr.mxu0 0.0
    %701 = vmatpush1.msra.mxu0 0.0
    %702 = vmatprep.subr.mxu0 0.0
    %703 = vmatpush1.msra.mxu0 0.0
    %704 = vmatprep.subr.mxu0 0.0
    %705 = vmatpush1.msra.mxu0 0.0
    %706 = vmatprep.subr.mxu0 0.0
    %707 = vmatpush1.msra.mxu0 0.0
    %708 = vmatprep.subr.mxu0 0.0
    %709 = vmatpush1.msra.mxu0 0.0
    %710 = vmatprep.subr.mxu0 0.0
    %711 = vmatpush1.msra.mxu0 0.0
    %712 = vmatprep.subr.mxu0 0.0
    %713 = vmatpush1.msra.mxu0 0.0
    %714 = vmatprep.subr.mxu0 0.0
    %715 = vmatpush1.msra.mxu0 0.0
    %716 = vmatprep.subr.mxu0 0.0
    %717 = vmatpush1.msra.mxu0 0.0
    %718 = vmatprep.subr.mxu0 0.0
    %719 = vmatpush1.msra.mxu0 0.0
    %720 = vmatprep.subr.mxu0 0.0
    %721 = vmatpush1.msra.mxu0 0.0
    %722 = vmatprep.subr.mxu0 0.0
    %723 = vmatpush1.msra.mxu0 0.0
    %724 = vmatprep.subr.mxu0 0.0
    %725 = vmatpush1.msra.mxu0 0.0
    %726 = vmatprep.subr.mxu0 0.0
    %727 = vmatpush1.msra.mxu0 0.0
    %728 = vmatprep.subr.mxu0 0.0
    %729 = vmatpush1.msra.mxu0 0.0
    %730 = vmatprep.subr.mxu0 0.0
    %731 = vmatpush1.msra.mxu0 0.0
    %732 = vmatprep.subr.mxu0 0.0
    %733 = vmatpush1.msra.mxu0 0.0
    %734 = vmatprep.subr.mxu0 0.0
    %735 = vmatpush1.msra.mxu0 0.0
    %736 = vmatprep.subr.mxu0 0.0
    %737 = vmatpush1.msra.mxu0 0.0
    %738 = vmatprep.subr.mxu0 0.0
    %739 = vmatpush1.msra.mxu0 0.0
    %740 = vmatprep.subr.mxu0 0.0
    %741 = vmatpush1.msra.mxu0 0.0
    %742 = vmatprep.subr.mxu0 0.0
    %743 = vmatpush1.msra.mxu0 0.0
    %744 = vmatprep.subr.mxu0 0.0
    %745 = vmatpush1.msra.mxu0 0.0
    %746 = vmatprep.subr.mxu0 0.0
    %747 = vmatpush1.msra.mxu0 0.0
    %748 = vmatprep.subr.mxu0 0.0
    %749 = vmatpush1.msra.mxu0 0.0
    %750 = vmatprep.mubr.f32.mxu0 0.0
    %751 = vmatmul.mubr.f32.gmra.mrb[0].mxu0 %v684
    %v752 = vpop.f32.mrb[0].mxu0
    %v753 = vadd.f32 %v194, %v752
    %v754 = vpop.f32.mrb[0].mxu0
    %755 = vdwg.mxu0
    %757 = vrot.lane.b32.xlu0 %v753, 96
    %v758 = vpop.permute.xlu0 %757
    %v760 = vadd.f32 %v675, %v758
    %v761 = vxor.u32 %v760, 2147483648
    %v762 = vmul.f32 %v761, 1.442695
    %v763 = vpow.pop %v762
    %v764 = vadd.f32 %v763, 1.0
    %v765 = vrcp.pop %v764
    %v766 = vmul.f32 1.0, %v765
    %v767 = vadd.f32 %v677, %v758
    %v768 = vxor.u32 %v767, 2147483648
    %v769 = vmul.f32 %v768, 1.442695
    %v770 = vpow.pop %v769
    %v771 = vadd.f32 %v770, 1.0
    %v772 = vrcp.pop %v771
    %v773 = vmul.f32 1.0, %v772
    %774 = vrot.lane.b32.xlu0 %v753, 32
    %v775 = vpop.permute.xlu0 %774
    %v777 = vmul.f32 %v766, %v775
    %779 = vrot.lane.b32.xlu0 %v777, 64
    %v780 = vpop.permute.xlu0 %779
    %v782 = vadd.f32 %v677, %v780
    %v783 = vtanh.pop %v782
    %v784 = vsub.f32 1.0, %v773
    %786 = vrot.lane.b32.xlu0 %v783, 96
    %v787 = vpop.permute.xlu0 %786
    %v789 = vmul.f32 %v784, %v787
    %v790 = vmul.f32 %v773, %v566
    %v791 = vadd.f32 %v789, %v790
    %792 = vst.msk [vmem:[#allocation3 + $0x10] sm:$0xff] %vm232, %v791
    %v793 = vld [vmem:[#allocation2 + $0x18] sm:$0xff]
    %v794 = vadd.f32 %v793, %v675
    %v795 = vxor.u32 %v794, 2147483648
    %v796 = vmul.f32 %v795, 1.442695
    %v797 = vpow.pop %v796
    %v798 = vadd.f32 %v797, 1.0
    %v799 = vrcp.pop %v798
    %v800 = vmul.f32 1.0, %v799
    %802 = vrot.lane.b32.xlu0 %v675, 64
    %v803 = vpop.permute.xlu0 %802
    %v805 = vmul.f32 %v800, %v803
    %807 = vrot.lane.b32.xlu0 %v805, 64
    %v808 = vpop.permute.xlu0 %807
    %v810 = vadd.f32 %v793, %v808
    %v811 = vtanh.pop %v810
    %v812 = vsub.f32 1.0, %v800
    %814 = vrot.lane.b32.xlu0 %v811, 96
    %v815 = vpop.permute.xlu0 %814
    %v817 = vmul.f32 %v812, %v815
    %v818 = vmul.f32 %v800, %v594
    %v819 = vadd.f32 %v817, %v818
    %v820 = vld [vmem:[#allocation7 + $0x10] sm:$0xff]
    %v821 = vld [vmem:[#allocation7 + $0x18] sm:$0xff]
    %v822 = vld [vmem:[#allocation7 + $0x20] sm:$0xff]
    %v823 = vld [vmem:[#allocation7 + $0x28] sm:$0xff]
    %v824 = vld [vmem:[#allocation7 + $0x30] sm:$0xff]
    %v825 = vld [vmem:[#allocation7 + $0x38] sm:$0xff]
    %v826 = vld [vmem:[#allocation7 + $0x40] sm:$0xff]
    %v827 = vld [vmem:[#allocation7 + $0x48] sm:$0xff]
    %829 = vrot.lane.b32.xlu0 %v819, 96
    %v830 = vpop.permute.xlu0 %829
    %v831 = vsel %vm232, %v830, 0
    %833 = vmatprep.subr.mxu0 %v821
    %834 = vmatpush1.msra.mxu0 %v820
    %835 = vmatprep.subr.mxu0 %v823
    %836 = vmatpush1.msra.mxu0 %v822
    %837 = vmatprep.subr.mxu0 %v825
    %838 = vmatpush1.msra.mxu0 %v824
    %839 = vmatprep.subr.mxu0 %v827
    %840 = vmatpush1.msra.mxu0 %v826
    %841 = vmatprep.subr.mxu0 0.0
    %842 = vmatpush1.msra.mxu0 0.0
    %843 = vmatprep.subr.mxu0 0.0
    %844 = vmatpush1.msra.mxu0 0.0
    %845 = vmatprep.subr.mxu0 0.0
    %846 = vmatpush1.msra.mxu0 0.0
    %847 = vmatprep.subr.mxu0 0.0
    %848 = vmatpush1.msra.mxu0 0.0
    %849 = vmatprep.subr.mxu0 0.0
    %850 = vmatpush1.msra.mxu0 0.0
    %851 = vmatprep.subr.mxu0 0.0
    %852 = vmatpush1.msra.mxu0 0.0
    %853 = vmatprep.subr.mxu0 0.0
    %854 = vmatpush1.msra.mxu0 0.0
    %855 = vmatprep.subr.mxu0 0.0
    %856 = vmatpush1.msra.mxu0 0.0
    %857 = vmatprep.subr.mxu0 0.0
    %858 = vmatpush1.msra.mxu0 0.0
    %859 = vmatprep.subr.mxu0 0.0
    %860 = vmatpush1.msra.mxu0 0.0
    %861 = vmatprep.subr.mxu0 0.0
    %862 = vmatpush1.msra.mxu0 0.0
    %863 = vmatprep.subr.mxu0 0.0
    %864 = vmatpush1.msra.mxu0 0.0
    %865 = vmatprep.subr.mxu0 0.0
    %866 = vmatpush1.msra.mxu0 0.0
    %867 = vmatprep.subr.mxu0 0.0
    %868 = vmatpush1.msra.mxu0 0.0
    %869 = vmatprep.subr.mxu0 0.0
    %870 = vmatpush1.msra.mxu0 0.0
    %871 = vmatprep.subr.mxu0 0.0
    %872 = vmatpush1.msra.mxu0 0.0
    %873 = vmatprep.subr.mxu0 0.0
    %874 = vmatpush1.msra.mxu0 0.0
    %875 = vmatprep.subr.mxu0 0.0
    %876 = vmatpush1.msra.mxu0 0.0
    %877 = vmatprep.subr.mxu0 0.0
    %878 = vmatpush1.msra.mxu0 0.0
    %879 = vmatprep.subr.mxu0 0.0
    %880 = vmatpush1.msra.mxu0 0.0
    %881 = vmatprep.subr.mxu0 0.0
    %882 = vmatpush1.msra.mxu0 0.0
    %883 = vmatprep.subr.mxu0 0.0
    %884 = vmatpush1.msra.mxu0 0.0
    %885 = vmatprep.subr.mxu0 0.0
    %886 = vmatpush1.msra.mxu0 0.0
    %887 = vmatprep.subr.mxu0 0.0
    %888 = vmatpush1.msra.mxu0 0.0
    %889 = vmatprep.subr.mxu0 0.0
    %890 = vmatpush1.msra.mxu0 0.0
    %891 = vmatprep.subr.mxu0 0.0
    %892 = vmatpush1.msra.mxu0 0.0
    %893 = vmatprep.subr.mxu0 0.0
    %894 = vmatpush1.msra.mxu0 0.0
    %895 = vmatprep.subr.mxu0 0.0
    %896 = vmatpush1.msra.mxu0 0.0
    %897 = vmatprep.mubr.f32.mxu0 0.0
    %898 = vmatmul.mubr.f32.gmra.mrb[0].mxu0 %v831
    %v899 = vpop.f32.mrb[0].mxu0
    %v900 = vadd.f32 %v187, %v899
    %v901 = vpop.f32.mrb[0].mxu0
    %v902 = vadd.f32 %v191, %v901
    %903 = vdwg.mxu0
    %v904 = vld [vmem:[#allocation7 + $0x50] sm:$0xff]
    %v905 = vld [vmem:[#allocation7 + $0x60] sm:$0xff]
    %v906 = vld [vmem:[#allocation7 + $0x70] sm:$0xff]
    %v907 = vld [vmem:[#allocation7 + $0x80] sm:$0xff]
    %v909 = vsel %vm232, %v791, 0
    %911 = vmatprep.subr.mxu0 0.0
    %912 = vmatpush1.msra.mxu0 %v904
    %913 = vmatprep.subr.mxu0 0.0
    %914 = vmatpush1.msra.mxu0 %v905
    %915 = vmatprep.subr.mxu0 0.0
    %916 = vmatpush1.msra.mxu0 %v906
    %917 = vmatprep.subr.mxu0 0.0
    %918 = vmatpush1.msra.mxu0 %v907
    %919 = vmatprep.subr.mxu0 0.0
    %920 = vmatpush1.msra.mxu0 0.0
    %921 = vmatprep.subr.mxu0 0.0
    %922 = vmatpush1.msra.mxu0 0.0
    %923 = vmatprep.subr.mxu0 0.0
    %924 = vmatpush1.msra.mxu0 0.0
    %925 = vmatprep.subr.mxu0 0.0
    %926 = vmatpush1.msra.mxu0 0.0
    %927 = vmatprep.subr.mxu0 0.0
    %928 = vmatpush1.msra.mxu0 0.0
    %929 = vmatprep.subr.mxu0 0.0
    %930 = vmatpush1.msra.mxu0 0.0
    %931 = vmatprep.subr.mxu0 0.0
    %932 = vmatpush1.msra.mxu0 0.0
    %933 = vmatprep.subr.mxu0 0.0
    %934 = vmatpush1.msra.mxu0 0.0
    %935 = vmatprep.subr.mxu0 0.0
    %936 = vmatpush1.msra.mxu0 0.0
    %937 = vmatprep.subr.mxu0 0.0
    %938 = vmatpush1.msra.mxu0 0.0
    %939 = vmatprep.subr.mxu0 0.0
    %940 = vmatpush1.msra.mxu0 0.0
    %941 = vmatprep.subr.mxu0 0.0
    %942 = vmatpush1.msra.mxu0 0.0
    %943 = vmatprep.subr.mxu0 0.0
    %944 = vmatpush1.msra.mxu0 0.0
    %945 = vmatprep.subr.mxu0 0.0
    %946 = vmatpush1.msra.mxu0 0.0
    %947 = vmatprep.subr.mxu0 0.0
    %948 = vmatpush1.msra.mxu0 0.0
    %949 = vmatprep.subr.mxu0 0.0
    %950 = vmatpush1.msra.mxu0 0.0
    %951 = vmatprep.subr.mxu0 0.0
    %952 = vmatpush1.msra.mxu0 0.0
    %953 = vmatprep.subr.mxu0 0.0
    %954 = vmatpush1.msra.mxu0 0.0
    %955 = vmatprep.subr.mxu0 0.0
    %956 = vmatpush1.msra.mxu0 0.0
    %957 = vmatprep.subr.mxu0 0.0
    %958 = vmatpush1.msra.mxu0 0.0
    %959 = vmatprep.subr.mxu0 0.0
    %960 = vmatpush1.msra.mxu0 0.0
    %961 = vmatprep.subr.mxu0 0.0
    %962 = vmatpush1.msra.mxu0 0.0
    %963 = vmatprep.subr.mxu0 0.0
    %964 = vmatpush1.msra.mxu0 0.0
    %965 = vmatprep.subr.mxu0 0.0
    %966 = vmatpush1.msra.mxu0 0.0
    %967 = vmatprep.subr.mxu0 0.0
    %968 = vmatpush1.msra.mxu0 0.0
    %969 = vmatprep.subr.mxu0 0.0
    %970 = vmatpush1.msra.mxu0 0.0
    %971 = vmatprep.subr.mxu0 0.0
    %972 = vmatpush1.msra.mxu0 0.0
    %973 = vmatprep.subr.mxu0 0.0
    %974 = vmatpush1.msra.mxu0 0.0
    %975 = vmatprep.mubr.f32.mxu0 0.0
    %976 = vmatmul.mubr.f32.gmra.mrb[0].mxu0 %v909
    %v977 = vpop.f32.mrb[0].mxu0
    %v978 = vadd.f32 %v194, %v977
    %v979 = vpop.f32.mrb[0].mxu0
    %980 = vdwg.mxu0
    %982 = vrot.lane.b32.xlu0 %v978, 96
    %v983 = vpop.permute.xlu0 %982
    %v985 = vadd.f32 %v900, %v983
    %v986 = vxor.u32 %v985, 2147483648
    %v987 = vmul.f32 %v986, 1.442695
    %v988 = vpow.pop %v987
    %v989 = vadd.f32 %v988, 1.0
    %v990 = vrcp.pop %v989
    %v991 = vmul.f32 1.0, %v990
    %v992 = vadd.f32 %v902, %v983
    %v993 = vxor.u32 %v992, 2147483648
    %v994 = vmul.f32 %v993, 1.442695
    %v995 = vpow.pop %v994
    %v996 = vadd.f32 %v995, 1.0
    %v997 = vrcp.pop %v996
    %v998 = vmul.f32 1.0, %v997
    %999 = vrot.lane.b32.xlu0 %v978, 32
    %v1000 = vpop.permute.xlu0 %999
    %v1002 = vmul.f32 %v991, %v1000
    %1004 = vrot.lane.b32.xlu0 %v1002, 64
    %v1005 = vpop.permute.xlu0 %1004
    %v1007 = vadd.f32 %v902, %v1005
    %v1008 = vtanh.pop %v1007
    %v1009 = vsub.f32 1.0, %v998
    %1011 = vrot.lane.b32.xlu0 %v1008, 96
    %v1012 = vpop.permute.xlu0 %1011
    %v1014 = vmul.f32 %v1009, %v1012
    %v1015 = vmul.f32 %v998, %v791
    %v1016 = vadd.f32 %v1014, %v1015
    %1017 = vst.msk [vmem:[#allocation3 + $0x18] sm:$0xff] %vm232, %v1016
    %v1018 = vld [vmem:[#allocation2 + $0x20] sm:$0xff]
    %v1019 = vadd.f32 %v1018, %v900
    %v1020 = vxor.u32 %v1019, 2147483648
    %v1021 = vmul.f32 %v1020, 1.442695
    %v1022 = vpow.pop %v1021
    %v1023 = vadd.f32 %v1022, 1.0
    %v1024 = vrcp.pop %v1023
    %v1025 = vmul.f32 1.0, %v1024
    %1027 = vrot.lane.b32.xlu0 %v900, 64
    %v1028 = vpop.permute.xlu0 %1027
    %v1030 = vmul.f32 %v1025, %v1028
    %1032 = vrot.lane.b32.xlu0 %v1030, 64
    %v1033 = vpop.permute.xlu0 %1032
    %v1035 = vadd.f32 %v1018, %v1033
    %v1036 = vtanh.pop %v1035
    %v1037 = vsub.f32 1.0, %v1025
    %1039 = vrot.lane.b32.xlu0 %v1036, 96
    %v1040 = vpop.permute.xlu0 %1039
    %v1042 = vmul.f32 %v1037, %v1040
    %v1043 = vmul.f32 %v1025, %v819
    %v1044 = vadd.f32 %v1042, %v1043
    %v1045 = vld [vmem:[#allocation7 + $0x10] sm:$0xff]
    %v1046 = vld [vmem:[#allocation7 + $0x18] sm:$0xff]
    %v1047 = vld [vmem:[#allocation7 + $0x20] sm:$0xff]
    %v1048 = vld [vmem:[#allocation7 + $0x28] sm:$0xff]
    %v1049 = vld [vmem:[#allocation7 + $0x30] sm:$0xff]
    %v1050 = vld [vmem:[#allocation7 + $0x38] sm:$0xff]
    %v1051 = vld [vmem:[#allocation7 + $0x40] sm:$0xff]
    %v1052 = vld [vmem:[#allocation7 + $0x48] sm:$0xff]
    %1054 = vrot.lane.b32.xlu0 %v1044, 96
    %v1055 = vpop.permute.xlu0 %1054
    %v1056 = vsel %vm232, %v1055, 0
    %1058 = vmatprep.subr.mxu0 %v1046
    %1059 = vmatpush1.msra.mxu0 %v1045
    %1060 = vmatprep.subr.mxu0 %v1048
    %1061 = vmatpush1.msra.mxu0 %v1047
    %1062 = vmatprep.subr.mxu0 %v1050
    %1063 = vmatpush1.msra.mxu0 %v1049
    %1064 = vmatprep.subr.mxu0 %v1052
    %1065 = vmatpush1.msra.mxu0 %v1051
    %1066 = vmatprep.subr.mxu0 0.0
    %1067 = vmatpush1.msra.mxu0 0.0
    %1068 = vmatprep.subr.mxu0 0.0
    %1069 = vmatpush1.msra.mxu0 0.0
    %1070 = vmatprep.subr.mxu0 0.0
    %1071 = vmatpush1.msra.mxu0 0.0
    %1072 = vmatprep.subr.mxu0 0.0
    %1073 = vmatpush1.msra.mxu0 0.0
    %1074 = vmatprep.subr.mxu0 0.0
    %1075 = vmatpush1.msra.mxu0 0.0
    %1076 = vmatprep.subr.mxu0 0.0
    %1077 = vmatpush1.msra.mxu0 0.0
    %1078 = vmatprep.subr.mxu0 0.0
    %1079 = vmatpush1.msra.mxu0 0.0
    %1080 = vmatprep.subr.mxu0 0.0
    %1081 = vmatpush1.msra.mxu0 0.0
    %1082 = vmatprep.subr.mxu0 0.0
    %1083 = vmatpush1.msra.mxu0 0.0
    %1084 = vmatprep.subr.mxu0 0.0
    %1085 = vmatpush1.msra.mxu0 0.0
    %1086 = vmatprep.subr.mxu0 0.0
    %1087 = vmatpush1.msra.mxu0 0.0
    %1088 = vmatprep.subr.mxu0 0.0
    %1089 = vmatpush1.msra.mxu0 0.0
    %1090 = vmatprep.subr.mxu0 0.0
    %1091 = vmatpush1.msra.mxu0 0.0
    %1092 = vmatprep.subr.mxu0 0.0
    %1093 = vmatpush1.msra.mxu0 0.0
    %1094 = vmatprep.subr.mxu0 0.0
    %1095 = vmatpush1.msra.mxu0 0.0
    %1096 = vmatprep.subr.mxu0 0.0
    %1097 = vmatpush1.msra.mxu0 0.0
    %1098 = vmatprep.subr.mxu0 0.0
    %1099 = vmatpush1.msra.mxu0 0.0
    %1100 = vmatprep.subr.mxu0 0.0
    %1101 = vmatpush1.msra.mxu0 0.0
    %1102 = vmatprep.subr.mxu0 0.0
    %1103 = vmatpush1.msra.mxu0 0.0
    %1104 = vmatprep.subr.mxu0 0.0
    %1105 = vmatpush1.msra.mxu0 0.0
    %1106 = vmatprep.subr.mxu0 0.0
    %1107 = vmatpush1.msra.mxu0 0.0
    %1108 = vmatprep.subr.mxu0 0.0
    %1109 = vmatpush1.msra.mxu0 0.0
    %1110 = vmatprep.subr.mxu0 0.0
    %1111 = vmatpush1.msra.mxu0 0.0
    %1112 = vmatprep.subr.mxu0 0.0
    %1113 = vmatpush1.msra.mxu0 0.0
    %1114 = vmatprep.subr.mxu0 0.0
    %1115 = vmatpush1.msra.mxu0 0.0
    %1116 = vmatprep.subr.mxu0 0.0
    %1117 = vmatpush1.msra.mxu0 0.0
    %1118 = vmatprep.subr.mxu0 0.0
    %1119 = vmatpush1.msra.mxu0 0.0
    %1120 = vmatprep.subr.mxu0 0.0
    %1121 = vmatpush1.msra.mxu0 0.0
    %1122 = vmatprep.mubr.f32.mxu0 0.0
    %1123 = vmatmul.mubr.f32.gmra.mrb[0].mxu0 %v1056
    %v1124 = vpop.f32.mrb[0].mxu0
    %v1125 = vadd.f32 %v187, %v1124
    %v1126 = vpop.f32.mrb[0].mxu0
    %v1127 = vadd.f32 %v191, %v1126
    %1128 = vdwg.mxu0
    %v1129 = vld [vmem:[#allocation7 + $0x50] sm:$0xff]
    %v1130 = vld [vmem:[#allocation7 + $0x60] sm:$0xff]
    %v1131 = vld [vmem:[#allocation7 + $0x70] sm:$0xff]
    %v1132 = vld [vmem:[#allocation7 + $0x80] sm:$0xff]
    %v1134 = vsel %vm232, %v1016, 0
    %1136 = vmatprep.subr.mxu0 0.0
    %1137 = vmatpush1.msra.mxu0 %v1129
    %1138 = vmatprep.subr.mxu0 0.0
    %1139 = vmatpush1.msra.mxu0 %v1130
    %1140 = vmatprep.subr.mxu0 0.0
    %1141 = vmatpush1.msra.mxu0 %v1131
    %1142 = vmatprep.subr.mxu0 0.0
    %1143 = vmatpush1.msra.mxu0 %v1132
    %1144 = vmatprep.subr.mxu0 0.0
    %1145 = vmatpush1.msra.mxu0 0.0
    %1146 = vmatprep.subr.mxu0 0.0
    %1147 = vmatpush1.msra.mxu0 0.0
    %1148 = vmatprep.subr.mxu0 0.0
    %1149 = vmatpush1.msra.mxu0 0.0
    %1150 = vmatprep.subr.mxu0 0.0
    %1151 = vmatpush1.msra.mxu0 0.0
    %1152 = vmatprep.subr.mxu0 0.0
    %1153 = vmatpush1.msra.mxu0 0.0
    %1154 = vmatprep.subr.mxu0 0.0
    %1155 = vmatpush1.msra.mxu0 0.0
    %1156 = vmatprep.subr.mxu0 0.0
    %1157 = vmatpush1.msra.mxu0 0.0
    %1158 = vmatprep.subr.mxu0 0.0
    %1159 = vmatpush1.msra.mxu0 0.0
    %1160 = vmatprep.subr.mxu0 0.0
    %1161 = vmatpush1.msra.mxu0 0.0
    %1162 = vmatprep.subr.mxu0 0.0
    %1163 = vmatpush1.msra.mxu0 0.0
    %1164 = vmatprep.subr.mxu0 0.0
    %1165 = vmatpush1.msra.mxu0 0.0
    %1166 = vmatprep.subr.mxu0 0.0
    %1167 = vmatpush1.msra.mxu0 0.0
    %1168 = vmatprep.subr.mxu0 0.0
    %1169 = vmatpush1.msra.mxu0 0.0
    %1170 = vmatprep.subr.mxu0 0.0
    %1171 = vmatpush1.msra.mxu0 0.0
    %1172 = vmatprep.subr.mxu0 0.0
    %1173 = vmatpush1.msra.mxu0 0.0
    %1174 = vmatprep.subr.mxu0 0.0
    %1175 = vmatpush1.msra.mxu0 0.0
    %1176 = vmatprep.subr.mxu0 0.0
    %1177 = vmatpush1.msra.mxu0 0.0
    %1178 = vmatprep.subr.mxu0 0.0
    %1179 = vmatpush1.msra.mxu0 0.0
    %1180 = vmatprep.subr.mxu0 0.0
    %1181 = vmatpush1.msra.mxu0 0.0
    %1182 = vmatprep.subr.mxu0 0.0
    %1183 = vmatpush1.msra.mxu0 0.0
    %1184 = vmatprep.subr.mxu0 0.0
    %1185 = vmatpush1.msra.mxu0 0.0
    %1186 = vmatprep.subr.mxu0 0.0
    %1187 = vmatpush1.msra.mxu0 0.0
    %1188 = vmatprep.subr.mxu0 0.0
    %1189 = vmatpush1.msra.mxu0 0.0
    %1190 = vmatprep.subr.mxu0 0.0
    %1191 = vmatpush1.msra.mxu0 0.0
    %1192 = vmatprep.subr.mxu0 0.0
    %1193 = vmatpush1.msra.mxu0 0.0
    %1194 = vmatprep.subr.mxu0 0.0
    %1195 = vmatpush1.msra.mxu0 0.0
    %1196 = vmatprep.subr.mxu0 0.0
    %1197 = vmatpush1.msra.mxu0 0.0
    %1198 = vmatprep.subr.mxu0 0.0
    %1199 = vmatpush1.msra.mxu0 0.0
    %1200 = vmatprep.mubr.f32.mxu0 0.0
    %1201 = vmatmul.mubr.f32.gmra.mrb[0].mxu0 %v1134
    %v1202 = vpop.f32.mrb[0].mxu0
    %v1203 = vadd.f32 %v194, %v1202
    %v1204 = vpop.f32.mrb[0].mxu0
    %1205 = vdwg.mxu0
    %1207 = vrot.lane.b32.xlu0 %v1203, 96
    %v1208 = vpop.permute.xlu0 %1207
    %v1210 = vadd.f32 %v1125, %v1208
    %v1211 = vxor.u32 %v1210, 2147483648
    %v1212 = vmul.f32 %v1211, 1.442695
    %v1213 = vpow.pop %v1212
    %v1214 = vadd.f32 %v1213, 1.0
    %v1215 = vrcp.pop %v1214
    %v1216 = vmul.f32 1.0, %v1215
    %v1217 = vadd.f32 %v1127, %v1208
    %v1218 = vxor.u32 %v1217, 2147483648
    %v1219 = vmul.f32 %v1218, 1.442695
    %v1220 = vpow.pop %v1219
    %v1221 = vadd.f32 %v1220, 1.0
    %v1222 = vrcp.pop %v1221
    %v1223 = vmul.f32 1.0, %v1222
    %1224 = vrot.lane.b32.xlu0 %v1203, 32
    %v1225 = vpop.permute.xlu0 %1224
    %v1227 = vmul.f32 %v1216, %v1225
    %1229 = vrot.lane.b32.xlu0 %v1227, 64
    %v1230 = vpop.permute.xlu0 %1229
    %v1232 = vadd.f32 %v1127, %v1230
    %v1233 = vtanh.pop %v1232
    %v1234 = vsub.f32 1.0, %v1223
    %1236 = vrot.lane.b32.xlu0 %v1233, 96
    %v1237 = vpop.permute.xlu0 %1236
    %v1239 = vmul.f32 %v1234, %v1237
    %v1240 = vmul.f32 %v1223, %v1016
    %v1241 = vadd.f32 %v1239, %v1240
    %1242 = vst.msk [vmem:[#allocation3 + $0x20] sm:$0xff] %vm232, %v1241
    %v1243 = vld [vmem:[#allocation2 + $0x28] sm:$0xff]
    %v1244 = vadd.f32 %v1243, %v1125
    %v1245 = vxor.u32 %v1244, 2147483648
    %v1246 = vmul.f32 %v1245, 1.442695
    %v1247 = vpow.pop %v1246
    %v1248 = vadd.f32 %v1247, 1.0
    %v1249 = vrcp.pop %v1248
    %v1250 = vmul.f32 1.0, %v1249
    %1252 = vrot.lane.b32.xlu0 %v1125, 64
    %v1253 = vpop.permute.xlu0 %1252
    %v1255 = vmul.f32 %v1250, %v1253
    %1257 = vrot.lane.b32.xlu0 %v1255, 64
    %v1258 = vpop.permute.xlu0 %1257
    %v1260 = vadd.f32 %v1243, %v1258
    %v1261 = vtanh.pop %v1260
    %v1262 = vsub.f32 1.0, %v1250
    %1264 = vrot.lane.b32.xlu0 %v1261, 96
    %v1265 = vpop.permute.xlu0 %1264
    %v1267 = vmul.f32 %v1262, %v1265
    %v1268 = vmul.f32 %v1250, %v1044
    %v1269 = vadd.f32 %v1267, %v1268
    %v1270 = vld [vmem:[#allocation7 + $0x10] sm:$0xff]
    %v1271 = vld [vmem:[#allocation7 + $0x18] sm:$0xff]
    %v1272 = vld [vmem:[#allocation7 + $0x20] sm:$0xff]
    %v1273 = vld [vmem:[#allocation7 + $0x28] sm:$0xff]
    %v1274 = vld [vmem:[#allocation7 + $0x30] sm:$0xff]
    %v1275 = vld [vmem:[#allocation7 + $0x38] sm:$0xff]
    %v1276 = vld [vmem:[#allocation7 + $0x40] sm:$0xff]
    %v1277 = vld [vmem:[#allocation7 + $0x48] sm:$0xff]
    %1279 = vrot.lane.b32.xlu0 %v1269, 96
    %v1280 = vpop.permute.xlu0 %1279
    %v1281 = vsel %vm232, %v1280, 0
    %1283 = vmatprep.subr.mxu0 %v1271
    %1284 = vmatpush1.msra.mxu0 %v1270
    %1285 = vmatprep.subr.mxu0 %v1273
    %1286 = vmatpush1.msra.mxu0 %v1272
    %1287 = vmatprep.subr.mxu0 %v1275
    %1288 = vmatpush1.msra.mxu0 %v1274
    %1289 = vmatprep.subr.mxu0 %v1277
    %1290 = vmatpush1.msra.mxu0 %v1276
    %1291 = vmatprep.subr.mxu0 0.0
    %1292 = vmatpush1.msra.mxu0 0.0
    %1293 = vmatprep.subr.mxu0 0.0
    %1294 = vmatpush1.msra.mxu0 0.0
    %1295 = vmatprep.subr.mxu0 0.0
    %1296 = vmatpush1.msra.mxu0 0.0
    %1297 = vmatprep.subr.mxu0 0.0
    %1298 = vmatpush1.msra.mxu0 0.0
    %1299 = vmatprep.subr.mxu0 0.0
    %1300 = vmatpush1.msra.mxu0 0.0
    %1301 = vmatprep.subr.mxu0 0.0
    %1302 = vmatpush1.msra.mxu0 0.0
    %1303 = vmatprep.subr.mxu0 0.0
    %1304 = vmatpush1.msra.mxu0 0.0
    %1305 = vmatprep.subr.mxu0 0.0
    %1306 = vmatpush1.msra.mxu0 0.0
    %1307 = vmatprep.subr.mxu0 0.0
    %1308 = vmatpush1.msra.mxu0 0.0
    %1309 = vmatprep.subr.mxu0 0.0
    %1310 = vmatpush1.msra.mxu0 0.0
    %1311 = vmatprep.subr.mxu0 0.0
    %1312 = vmatpush1.msra.mxu0 0.0
    %1313 = vmatprep.subr.mxu0 0.0
    %1314 = vmatpush1.msra.mxu0 0.0
    %1315 = vmatprep.subr.mxu0 0.0
    %1316 = vmatpush1.msra.mxu0 0.0
    %1317 = vmatprep.subr.mxu0 0.0
    %1318 = vmatpush1.msra.mxu0 0.0
    %1319 = vmatprep.subr.mxu0 0.0
    %1320 = vmatpush1.msra.mxu0 0.0
    %1321 = vmatprep.subr.mxu0 0.0
    %1322 = vmatpush1.msra.mxu0 0.0
    %1323 = vmatprep.subr.mxu0 0.0
    %1324 = vmatpush1.msra.mxu0 0.0
    %1325 = vmatprep.subr.mxu0 0.0
    %1326 = vmatpush1.msra.mxu0 0.0
    %1327 = vmatprep.subr.mxu0 0.0
    %1328 = vmatpush1.msra.mxu0 0.0
    %1329 = vmatprep.subr.mxu0 0.0
    %1330 = vmatpush1.msra.mxu0 0.0
    %1331 = vmatprep.subr.mxu0 0.0
    %1332 = vmatpush1.msra.mxu0 0.0
    %1333 = vmatprep.subr.mxu0 0.0
    %1334 = vmatpush1.msra.mxu0 0.0
    %1335 = vmatprep.subr.mxu0 0.0
    %1336 = vmatpush1.msra.mxu0 0.0
    %1337 = vmatprep.subr.mxu0 0.0
    %1338 = vmatpush1.msra.mxu0 0.0
    %1339 = vmatprep.subr.mxu0 0.0
    %1340 = vmatpush1.msra.mxu0 0.0
    %1341 = vmatprep.subr.mxu0 0.0
    %1342 = vmatpush1.msra.mxu0 0.0
    %1343 = vmatprep.subr.mxu0 0.0
    %1344 = vmatpush1.msra.mxu0 0.0
    %1345 = vmatprep.subr.mxu0 0.0
    %1346 = vmatpush1.msra.mxu0 0.0
    %1347 = vmatprep.mubr.f32.mxu0 0.0
    %1348 = vmatmul.mubr.f32.gmra.mrb[0].mxu0 %v1281
    %v1349 = vpop.f32.mrb[0].mxu0
    %v1350 = vadd.f32 %v187, %v1349
    %v1351 = vpop.f32.mrb[0].mxu0
    %v1352 = vadd.f32 %v191, %v1351
    %1353 = vdwg.mxu0
    %v1354 = vld [vmem:[#allocation7 + $0x50] sm:$0xff]
    %v1355 = vld [vmem:[#allocation7 + $0x60] sm:$0xff]
    %v1356 = vld [vmem:[#allocation7 + $0x70] sm:$0xff]
    %v1357 = vld [vmem:[#allocation7 + $0x80] sm:$0xff]
    %v1359 = vsel %vm232, %v1241, 0
    %1361 = vmatprep.subr.mxu0 0.0
    %1362 = vmatpush1.msra.mxu0 %v1354
    %1363 = vmatprep.subr.mxu0 0.0
    %1364 = vmatpush1.msra.mxu0 %v1355
    %1365 = vmatprep.subr.mxu0 0.0
    %1366 = vmatpush1.msra.mxu0 %v1356
    %1367 = vmatprep.subr.mxu0 0.0
    %1368 = vmatpush1.msra.mxu0 %v1357
    %1369 = vmatprep.subr.mxu0 0.0
    %1370 = vmatpush1.msra.mxu0 0.0
    %1371 = vmatprep.subr.mxu0 0.0
    %1372 = vmatpush1.msra.mxu0 0.0
    %1373 = vmatprep.subr.mxu0 0.0
    %1374 = vmatpush1.msra.mxu0 0.0
    %1375 = vmatprep.subr.mxu0 0.0
    %1376 = vmatpush1.msra.mxu0 0.0
    %1377 = vmatprep.subr.mxu0 0.0
    %1378 = vmatpush1.msra.mxu0 0.0
    %1379 = vmatprep.subr.mxu0 0.0
    %1380 = vmatpush1.msra.mxu0 0.0
    %1381 = vmatprep.subr.mxu0 0.0
    %1382 = vmatpush1.msra.mxu0 0.0
    %1383 = vmatprep.subr.mxu0 0.0
    %1384 = vmatpush1.msra.mxu0 0.0
    %1385 = vmatprep.subr.mxu0 0.0
    %1386 = vmatpush1.msra.mxu0 0.0
    %1387 = vmatprep.subr.mxu0 0.0
    %1388 = vmatpush1.msra.mxu0 0.0
    %1389 = vmatprep.subr.mxu0 0.0
    %1390 = vmatpush1.msra.mxu0 0.0
    %1391 = vmatprep.subr.mxu0 0.0
    %1392 = vmatpush1.msra.mxu0 0.0
    %1393 = vmatprep.subr.mxu0 0.0
    %1394 = vmatpush1.msra.mxu0 0.0
    %1395 = vmatprep.subr.mxu0 0.0
    %1396 = vmatpush1.msra.mxu0 0.0
    %1397 = vmatprep.subr.mxu0 0.0
    %1398 = vmatpush1.msra.mxu0 0.0
    %1399 = vmatprep.subr.mxu0 0.0
    %1400 = vmatpush1.msra.mxu0 0.0
    %1401 = vmatprep.subr.mxu0 0.0
    %1402 = vmatpush1.msra.mxu0 0.0
    %1403 = vmatprep.subr.mxu0 0.0
    %1404 = vmatpush1.msra.mxu0 0.0
    %1405 = vmatprep.subr.mxu0 0.0
    %1406 = vmatpush1.msra.mxu0 0.0
    %1407 = vmatprep.subr.mxu0 0.0
    %1408 = vmatpush1.msra.mxu0 0.0
    %1409 = vmatprep.subr.mxu0 0.0
    %1410 = vmatpush1.msra.mxu0 0.0
    %1411 = vmatprep.subr.mxu0 0.0
    %1412 = vmatpush1.msra.mxu0 0.0
    %1413 = vmatprep.subr.mxu0 0.0
    %1414 = vmatpush1.msra.mxu0 0.0
    %1415 = vmatprep.subr.mxu0 0.0
    %1416 = vmatpush1.msra.mxu0 0.0
    %1417 = vmatprep.subr.mxu0 0.0
    %1418 = vmatpush1.msra.mxu0 0.0
    %1419 = vmatprep.subr.mxu0 0.0
    %1420 = vmatpush1.msra.mxu0 0.0
    %1421 = vmatprep.subr.mxu0 0.0
    %1422 = vmatpush1.msra.mxu0 0.0
    %1423 = vmatprep.subr.mxu0 0.0
    %1424 = vmatpush1.msra.mxu0 0.0
    %1425 = vmatprep.mubr.f32.mxu0 0.0
    %1426 = vmatmul.mubr.f32.gmra.mrb[0].mxu0 %v1359
    %v1427 = vpop.f32.mrb[0].mxu0
    %v1428 = vadd.f32 %v194, %v1427
    %v1429 = vpop.f32.mrb[0].mxu0
    %1430 = vdwg.mxu0
    %1432 = vrot.lane.b32.xlu0 %v1428, 96
    %v1433 = vpop.permute.xlu0 %1432
    %v1435 = vadd.f32 %v1350, %v1433
    %v1436 = vxor.u32 %v1435, 2147483648
    %v1437 = vmul.f32 %v1436, 1.442695
    %v1438 = vpow.pop %v1437
    %v1439 = vadd.f32 %v1438, 1.0
    %v1440 = vrcp.pop %v1439
    %v1441 = vmul.f32 1.0, %v1440
    %v1442 = vadd.f32 %v1352, %v1433
    %v1443 = vxor.u32 %v1442, 2147483648
    %v1444 = vmul.f32 %v1443, 1.442695
    %v1445 = vpow.pop %v1444
    %v1446 = vadd.f32 %v1445, 1.0
    %v1447 = vrcp.pop %v1446
    %v1448 = vmul.f32 1.0, %v1447
    %1449 = vrot.lane.b32.xlu0 %v1428, 32
    %v1450 = vpop.permute.xlu0 %1449
    %v1452 = vmul.f32 %v1441, %v1450
    %1454 = vrot.lane.b32.xlu0 %v1452, 64
    %v1455 = vpop.permute.xlu0 %1454
    %v1457 = vadd.f32 %v1352, %v1455
    %v1458 = vtanh.pop %v1457
    %v1459 = vsub.f32 1.0, %v1448
    %1461 = vrot.lane.b32.xlu0 %v1458, 96
    %v1462 = vpop.permute.xlu0 %1461
    %v1464 = vmul.f32 %v1459, %v1462
    %v1465 = vmul.f32 %v1448, %v1241
    %v1466 = vadd.f32 %v1464, %v1465
    %1467 = vst.msk [vmem:[#allocation3 + $0x28] sm:$0xff] %vm232, %v1466
    %v1468 = vld [vmem:[#allocation2 + $0x30] sm:$0xff]
    %v1469 = vadd.f32 %v1468, %v1350
    %v1470 = vxor.u32 %v1469, 2147483648
    %v1471 = vmul.f32 %v1470, 1.442695
    %v1472 = vpow.pop %v1471
    %v1473 = vadd.f32 %v1472, 1.0
    %v1474 = vrcp.pop %v1473
    %v1475 = vmul.f32 1.0, %v1474
    %1477 = vrot.lane.b32.xlu0 %v1350, 64
    %v1478 = vpop.permute.xlu0 %1477
    %v1480 = vmul.f32 %v1475, %v1478
    %1482 = vrot.lane.b32.xlu0 %v1480, 64
    %v1483 = vpop.permute.xlu0 %1482
    %v1485 = vadd.f32 %v1468, %v1483
    %v1486 = vtanh.pop %v1485
    %v1487 = vsub.f32 1.0, %v1475
    %1489 = vrot.lane.b32.xlu0 %v1486, 96
    %v1490 = vpop.permute.xlu0 %1489
    %v1492 = vmul.f32 %v1487, %v1490
    %v1493 = vmul.f32 %v1475, %v1269
    %v1494 = vadd.f32 %v1492, %v1493
    %v1495 = vld [vmem:[#allocation7 + $0x10] sm:$0xff]
    %v1496 = vld [vmem:[#allocation7 + $0x18] sm:$0xff]
    %v1497 = vld [vmem:[#allocation7 + $0x20] sm:$0xff]
    %v1498 = vld [vmem:[#allocation7 + $0x28] sm:$0xff]
    %v1499 = vld [vmem:[#allocation7 + $0x30] sm:$0xff]
    %v1500 = vld [vmem:[#allocation7 + $0x38] sm:$0xff]
    %v1501 = vld [vmem:[#allocation7 + $0x40] sm:$0xff]
    %v1502 = vld [vmem:[#allocation7 + $0x48] sm:$0xff]
    %1504 = vrot.lane.b32.xlu0 %v1494, 96
    %v1505 = vpop.permute.xlu0 %1504
    %v1506 = vsel %vm232, %v1505, 0
    %1508 = vmatprep.subr.mxu0 %v1496
    %1509 = vmatpush1.msra.mxu0 %v1495
    %1510 = vmatprep.subr.mxu0 %v1498
    %1511 = vmatpush1.msra.mxu0 %v1497
    %1512 = vmatprep.subr.mxu0 %v1500
    %1513 = vmatpush1.msra.mxu0 %v1499
    %1514 = vmatprep.subr.mxu0 %v1502
    %1515 = vmatpush1.msra.mxu0 %v1501
    %1516 = vmatprep.subr.mxu0 0.0
    %1517 = vmatpush1.msra.mxu0 0.0
    %1518 = vmatprep.subr.mxu0 0.0
    %1519 = vmatpush1.msra.mxu0 0.0
    %1520 = vmatprep.subr.mxu0 0.0
    %1521 = vmatpush1.msra.mxu0 0.0
    %1522 = vmatprep.subr.mxu0 0.0
    %1523 = vmatpush1.msra.mxu0 0.0
    %1524 = vmatprep.subr.mxu0 0.0
    %1525 = vmatpush1.msra.mxu0 0.0
    %1526 = vmatprep.subr.mxu0 0.0
    %1527 = vmatpush1.msra.mxu0 0.0
    %1528 = vmatprep.subr.mxu0 0.0
    %1529 = vmatpush1.msra.mxu0 0.0
    %1530 = vmatprep.subr.mxu0 0.0
    %1531 = vmatpush1.msra.mxu0 0.0
    %1532 = vmatprep.subr.mxu0 0.0
    %1533 = vmatpush1.msra.mxu0 0.0
    %1534 = vmatprep.subr.mxu0 0.0
    %1535 = vmatpush1.msra.mxu0 0.0
    %1536 = vmatprep.subr.mxu0 0.0
    %1537 = vmatpush1.msra.mxu0 0.0
    %1538 = vmatprep.subr.mxu0 0.0
    %1539 = vmatpush1.msra.mxu0 0.0
    %1540 = vmatprep.subr.mxu0 0.0
    %1541 = vmatpush1.msra.mxu0 0.0
    %1542 = vmatprep.subr.mxu0 0.0
    %1543 = vmatpush1.msra.mxu0 0.0
    %1544 = vmatprep.subr.mxu0 0.0
    %1545 = vmatpush1.msra.mxu0 0.0
    %1546 = vmatprep.subr.mxu0 0.0
    %1547 = vmatpush1.msra.mxu0 0.0
    %1548 = vmatprep.subr.mxu0 0.0
    %1549 = vmatpush1.msra.mxu0 0.0
    %1550 = vmatprep.subr.mxu0 0.0
    %1551 = vmatpush1.msra.mxu0 0.0
    %1552 = vmatprep.subr.mxu0 0.0
    %1553 = vmatpush1.msra.mxu0 0.0
    %1554 = vmatprep.subr.mxu0 0.0
    %1555 = vmatpush1.msra.mxu0 0.0
    %1556 = vmatprep.subr.mxu0 0.0
    %1557 = vmatpush1.msra.mxu0 0.0
    %1558 = vmatprep.subr.mxu0 0.0
    %1559 = vmatpush1.msra.mxu0 0.0
    %1560 = vmatprep.subr.mxu0 0.0
    %1561 = vmatpush1.msra.mxu0 0.0
    %1562 = vmatprep.subr.mxu0 0.0
    %1563 = vmatpush1.msra.mxu0 0.0
    %1564 = vmatprep.subr.mxu0 0.0
    %1565 = vmatpush1.msra.mxu0 0.0
    %1566 = vmatprep.subr.mxu0 0.0
    %1567 = vmatpush1.msra.mxu0 0.0
    %1568 = vmatprep.subr.mxu0 0.0
    %1569 = vmatpush1.msra.mxu0 0.0
    %1570 = vmatprep.subr.mxu0 0.0
    %1571 = vmatpush1.msra.mxu0 0.0
    %1572 = vmatprep.mubr.f32.mxu0 0.0
    %1573 = vmatmul.mubr.f32.gmra.mrb[0].mxu0 %v1506
    %v1574 = vpop.f32.mrb[0].mxu0
    %v1575 = vadd.f32 %v187, %v1574
    %v1576 = vpop.f32.mrb[0].mxu0
    %v1577 = vadd.f32 %v191, %v1576
    %1578 = vdwg.mxu0
    %v1579 = vld [vmem:[#allocation7 + $0x50] sm:$0xff]
    %v1580 = vld [vmem:[#allocation7 + $0x60] sm:$0xff]
    %v1581 = vld [vmem:[#allocation7 + $0x70] sm:$0xff]
    %v1582 = vld [vmem:[#allocation7 + $0x80] sm:$0xff]
    %v1584 = vsel %vm232, %v1466, 0
    %1586 = vmatprep.subr.mxu0 0.0
    %1587 = vmatpush1.msra.mxu0 %v1579
    %1588 = vmatprep.subr.mxu0 0.0
    %1589 = vmatpush1.msra.mxu0 %v1580
    %1590 = vmatprep.subr.mxu0 0.0
    %1591 = vmatpush1.msra.mxu0 %v1581
    %1592 = vmatprep.subr.mxu0 0.0
    %1593 = vmatpush1.msra.mxu0 %v1582
    %1594 = vmatprep.subr.mxu0 0.0
    %1595 = vmatpush1.msra.mxu0 0.0
    %1596 = vmatprep.subr.mxu0 0.0
    %1597 = vmatpush1.msra.mxu0 0.0
    %1598 = vmatprep.subr.mxu0 0.0
    %1599 = vmatpush1.msra.mxu0 0.0
    %1600 = vmatprep.subr.mxu0 0.0
    %1601 = vmatpush1.msra.mxu0 0.0
    %1602 = vmatprep.subr.mxu0 0.0
    %1603 = vmatpush1.msra.mxu0 0.0
    %1604 = vmatprep.subr.mxu0 0.0
    %1605 = vmatpush1.msra.mxu0 0.0
    %1606 = vmatprep.subr.mxu0 0.0
    %1607 = vmatpush1.msra.mxu0 0.0
    %1608 = vmatprep.subr.mxu0 0.0
    %1609 = vmatpush1.msra.mxu0 0.0
    %1610 = vmatprep.subr.mxu0 0.0
    %1611 = vmatpush1.msra.mxu0 0.0
    %1612 = vmatprep.subr.mxu0 0.0
    %1613 = vmatpush1.msra.mxu0 0.0
    %1614 = vmatprep.subr.mxu0 0.0
    %1615 = vmatpush1.msra.mxu0 0.0
    %1616 = vmatprep.subr.mxu0 0.0
    %1617 = vmatpush1.msra.mxu0 0.0
    %1618 = vmatprep.subr.mxu0 0.0
    %1619 = vmatpush1.msra.mxu0 0.0
    %1620 = vmatprep.subr.mxu0 0.0
    %1621 = vmatpush1.msra.mxu0 0.0
    %1622 = vmatprep.subr.mxu0 0.0
    %1623 = vmatpush1.msra.mxu0 0.0
    %1624 = vmatprep.subr.mxu0 0.0
    %1625 = vmatpush1.msra.mxu0 0.0
    %1626 = vmatprep.subr.mxu0 0.0
    %1627 = vmatpush1.msra.mxu0 0.0
    %1628 = vmatprep.subr.mxu0 0.0
    %1629 = vmatpush1.msra.mxu0 0.0
    %1630 = vmatprep.subr.mxu0 0.0
    %1631 = vmatpush1.msra.mxu0 0.0
    %1632 = vmatprep.subr.mxu0 0.0
    %1633 = vmatpush1.msra.mxu0 0.0
    %1634 = vmatprep.subr.mxu0 0.0
    %1635 = vmatpush1.msra.mxu0 0.0
    %1636 = vmatprep.subr.mxu0 0.0
    %1637 = vmatpush1.msra.mxu0 0.0
    %1638 = vmatprep.subr.mxu0 0.0
    %1639 = vmatpush1.msra.mxu0 0.0
    %1640 = vmatprep.subr.mxu0 0.0
    %1641 = vmatpush1.msra.mxu0 0.0
    %1642 = vmatprep.subr.mxu0 0.0
    %1643 = vmatpush1.msra.mxu0 0.0
    %1644 = vmatprep.subr.mxu0 0.0
    %1645 = vmatpush1.msra.mxu0 0.0
    %1646 = vmatprep.subr.mxu0 0.0
    %1647 = vmatpush1.msra.mxu0 0.0
    %1648 = vmatprep.subr.mxu0 0.0
    %1649 = vmatpush1.msra.mxu0 0.0
    %1650 = vmatprep.mubr.f32.mxu0 0.0
    %1651 = vmatmul.mubr.f32.gmra.mrb[0].mxu0 %v1584
    %v1652 = vpop.f32.mrb[0].mxu0
    %v1653 = vadd.f32 %v194, %v1652
    %v1654 = vpop.f32.mrb[0].mxu0
    %1655 = vdwg.mxu0
    %1657 = vrot.lane.b32.xlu0 %v1653, 96
    %v1658 = vpop.permute.xlu0 %1657
    %v1660 = vadd.f32 %v1575, %v1658
    %v1661 = vxor.u32 %v1660, 2147483648
    %v1662 = vmul.f32 %v1661, 1.442695
    %v1663 = vpow.pop %v1662
    %v1664 = vadd.f32 %v1663, 1.0
    %v1665 = vrcp.pop %v1664
    %v1666 = vmul.f32 1.0, %v1665
    %v1667 = vadd.f32 %v1577, %v1658
    %v1668 = vxor.u32 %v1667, 2147483648
    %v1669 = vmul.f32 %v1668, 1.442695
    %v1670 = vpow.pop %v1669
    %v1671 = vadd.f32 %v1670, 1.0
    %v1672 = vrcp.pop %v1671
    %v1673 = vmul.f32 1.0, %v1672
    %1674 = vrot.lane.b32.xlu0 %v1653, 32
    %v1675 = vpop.permute.xlu0 %1674
    %v1677 = vmul.f32 %v1666, %v1675
    %1679 = vrot.lane.b32.xlu0 %v1677, 64
    %v1680 = vpop.permute.xlu0 %1679
    %v1682 = vadd.f32 %v1577, %v1680
    %v1683 = vtanh.pop %v1682
    %v1684 = vsub.f32 1.0, %v1673
    %1686 = vrot.lane.b32.xlu0 %v1683, 96
    %v1687 = vpop.permute.xlu0 %1686
    %v1689 = vmul.f32 %v1684, %v1687
    %v1690 = vmul.f32 %v1673, %v1466
    %v1691 = vadd.f32 %v1689, %v1690
    %1692 = vst.msk [vmem:[#allocation3 + $0x30] sm:$0xff] %vm232, %v1691
    %v1693 = vld [vmem:[#allocation2 + $0x38] sm:$0xff]
    %v1694 = vadd.f32 %v1693, %v1575
    %v1695 = vxor.u32 %v1694, 2147483648
    %v1696 = vmul.f32 %v1695, 1.442695
    %v1697 = vpow.pop %v1696
    %v1698 = vadd.f32 %v1697, 1.0
    %v1699 = vrcp.pop %v1698
    %v1700 = vmul.f32 1.0, %v1699
    %1702 = vrot.lane.b32.xlu0 %v1575, 64
    %v1703 = vpop.permute.xlu0 %1702
    %v1705 = vmul.f32 %v1700, %v1703
    %1707 = vrot.lane.b32.xlu0 %v1705, 64
    %v1708 = vpop.permute.xlu0 %1707
    %v1710 = vadd.f32 %v1693, %v1708
    %v1711 = vtanh.pop %v1710
    %v1712 = vsub.f32 1.0, %v1700
    %1714 = vrot.lane.b32.xlu0 %v1711, 96
    %v1715 = vpop.permute.xlu0 %1714
    %v1717 = vmul.f32 %v1712, %v1715
    %v1718 = vmul.f32 %v1700, %v1494
    %v1719 = vadd.f32 %v1717, %v1718
    %v1720 = vld [vmem:[#allocation7 + $0x10] sm:$0xff]
    %v1721 = vld [vmem:[#allocation7 + $0x18] sm:$0xff]
    %v1722 = vld [vmem:[#allocation7 + $0x20] sm:$0xff]
    %v1723 = vld [vmem:[#allocation7 + $0x28] sm:$0xff]
    %v1724 = vld [vmem:[#allocation7 + $0x30] sm:$0xff]
    %v1725 = vld [vmem:[#allocation7 + $0x38] sm:$0xff]
    %v1726 = vld [vmem:[#allocation7 + $0x40] sm:$0xff]
    %v1727 = vld [vmem:[#allocation7 + $0x48] sm:$0xff]
    %1729 = vrot.lane.b32.xlu0 %v1719, 96
    %v1730 = vpop.permute.xlu0 %1729
    %v1731 = vsel %vm232, %v1730, 0
    %1733 = vmatprep.subr.mxu0 %v1721
    %1734 = vmatpush1.msra.mxu0 %v1720
    %1735 = vmatprep.subr.mxu0 %v1723
    %1736 = vmatpush1.msra.mxu0 %v1722
    %1737 = vmatprep.subr.mxu0 %v1725
    %1738 = vmatpush1.msra.mxu0 %v1724
    %1739 = vmatprep.subr.mxu0 %v1727
    %1740 = vmatpush1.msra.mxu0 %v1726
    %1741 = vmatprep.subr.mxu0 0.0
    %1742 = vmatpush1.msra.mxu0 0.0
    %1743 = vmatprep.subr.mxu0 0.0
    %1744 = vmatpush1.msra.mxu0 0.0
    %1745 = vmatprep.subr.mxu0 0.0
    %1746 = vmatpush1.msra.mxu0 0.0
    %1747 = vmatprep.subr.mxu0 0.0
    %1748 = vmatpush1.msra.mxu0 0.0
    %1749 = vmatprep.subr.mxu0 0.0
    %1750 = vmatpush1.msra.mxu0 0.0
    %1751 = vmatprep.subr.mxu0 0.0
    %1752 = vmatpush1.msra.mxu0 0.0
    %1753 = vmatprep.subr.mxu0 0.0
    %1754 = vmatpush1.msra.mxu0 0.0
    %1755 = vmatprep.subr.mxu0 0.0
    %1756 = vmatpush1.msra.mxu0 0.0
    %1757 = vmatprep.subr.mxu0 0.0
    %1758 = vmatpush1.msra.mxu0 0.0
    %1759 = vmatprep.subr.mxu0 0.0
    %1760 = vmatpush1.msra.mxu0 0.0
    %1761 = vmatprep.subr.mxu0 0.0
    %1762 = vmatpush1.msra.mxu0 0.0
    %1763 = vmatprep.subr.mxu0 0.0
    %1764 = vmatpush1.msra.mxu0 0.0
    %1765 = vmatprep.subr.mxu0 0.0
    %1766 = vmatpush1.msra.mxu0 0.0
    %1767 = vmatprep.subr.mxu0 0.0
    %1768 = vmatpush1.msra.mxu0 0.0
    %1769 = vmatprep.subr.mxu0 0.0
    %1770 = vmatpush1.msra.mxu0 0.0
    %1771 = vmatprep.subr.mxu0 0.0
    %1772 = vmatpush1.msra.mxu0 0.0
    %1773 = vmatprep.subr.mxu0 0.0
    %1774 = vmatpush1.msra.mxu0 0.0
    %1775 = vmatprep.subr.mxu0 0.0
    %1776 = vmatpush1.msra.mxu0 0.0
    %1777 = vmatprep.subr.mxu0 0.0
    %1778 = vmatpush1.msra.mxu0 0.0
    %1779 = vmatprep.subr.mxu0 0.0
    %1780 = vmatpush1.msra.mxu0 0.0
    %1781 = vmatprep.subr.mxu0 0.0
    %1782 = vmatpush1.msra.mxu0 0.0
    %1783 = vmatprep.subr.mxu0 0.0
    %1784 = vmatpush1.msra.mxu0 0.0
    %1785 = vmatprep.subr.mxu0 0.0
    %1786 = vmatpush1.msra.mxu0 0.0
    %1787 = vmatprep.subr.mxu0 0.0
    %1788 = vmatpush1.msra.mxu0 0.0
    %1789 = vmatprep.subr.mxu0 0.0
    %1790 = vmatpush1.msra.mxu0 0.0
    %1791 = vmatprep.subr.mxu0 0.0
    %1792 = vmatpush1.msra.mxu0 0.0
    %1793 = vmatprep.subr.mxu0 0.0
    %1794 = vmatpush1.msra.mxu0 0.0
    %1795 = vmatprep.subr.mxu0 0.0
    %1796 = vmatpush1.msra.mxu0 0.0
    %1797 = vmatprep.mubr.f32.mxu0 0.0
    %1798 = vmatmul.mubr.f32.gmra.mrb[0].mxu0 %v1731
    %v1799 = vpop.f32.mrb[0].mxu0
    %v1800 = vadd.f32 %v187, %v1799
    %v1801 = vpop.f32.mrb[0].mxu0
    %v1802 = vadd.f32 %v191, %v1801
    %1803 = vdwg.mxu0
    %v1804 = vld [vmem:[#allocation7 + $0x50] sm:$0xff]
    %v1805 = vld [vmem:[#allocation7 + $0x60] sm:$0xff]
    %v1806 = vld [vmem:[#allocation7 + $0x70] sm:$0xff]
    %v1807 = vld [vmem:[#allocation7 + $0x80] sm:$0xff]
    %v1809 = vsel %vm232, %v1691, 0
    %1811 = vmatprep.subr.mxu0 0.0
    %1812 = vmatpush1.msra.mxu0 %v1804
    %1813 = vmatprep.subr.mxu0 0.0
    %1814 = vmatpush1.msra.mxu0 %v1805
    %1815 = vmatprep.subr.mxu0 0.0
    %1816 = vmatpush1.msra.mxu0 %v1806
    %1817 = vmatprep.subr.mxu0 0.0
    %1818 = vmatpush1.msra.mxu0 %v1807
    %1819 = vmatprep.subr.mxu0 0.0
    %1820 = vmatpush1.msra.mxu0 0.0
    %1821 = vmatprep.subr.mxu0 0.0
    %1822 = vmatpush1.msra.mxu0 0.0
    %1823 = vmatprep.subr.mxu0 0.0
    %1824 = vmatpush1.msra.mxu0 0.0
    %1825 = vmatprep.subr.mxu0 0.0
    %1826 = vmatpush1.msra.mxu0 0.0
    %1827 = vmatprep.subr.mxu0 0.0
    %1828 = vmatpush1.msra.mxu0 0.0
    %1829 = vmatprep.subr.mxu0 0.0
    %1830 = vmatpush1.msra.mxu0 0.0
    %1831 = vmatprep.subr.mxu0 0.0
    %1832 = vmatpush1.msra.mxu0 0.0
    %1833 = vmatprep.subr.mxu0 0.0
    %1834 = vmatpush1.msra.mxu0 0.0
    %1835 = vmatprep.subr.mxu0 0.0
    %1836 = vmatpush1.msra.mxu0 0.0
    %1837 = vmatprep.subr.mxu0 0.0
    %1838 = vmatpush1.msra.mxu0 0.0
    %1839 = vmatprep.subr.mxu0 0.0
    %1840 = vmatpush1.msra.mxu0 0.0
    %1841 = vmatprep.subr.mxu0 0.0
    %1842 = vmatpush1.msra.mxu0 0.0
    %1843 = vmatprep.subr.mxu0 0.0
    %1844 = vmatpush1.msra.mxu0 0.0
    %1845 = vmatprep.subr.mxu0 0.0
    %1846 = vmatpush1.msra.mxu0 0.0
    %1847 = vmatprep.subr.mxu0 0.0
    %1848 = vmatpush1.msra.mxu0 0.0
    %1849 = vmatprep.subr.mxu0 0.0
    %1850 = vmatpush1.msra.mxu0 0.0
    %1851 = vmatprep.subr.mxu0 0.0
    %1852 = vmatpush1.msra.mxu0 0.0
    %1853 = vmatprep.subr.mxu0 0.0
    %1854 = vmatpush1.msra.mxu0 0.0
    %1855 = vmatprep.subr.mxu0 0.0
    %1856 = vmatpush1.msra.mxu0 0.0
    %1857 = vmatprep.subr.mxu0 0.0
    %1858 = vmatpush1.msra.mxu0 0.0
    %1859 = vmatprep.subr.mxu0 0.0
    %1860 = vmatpush1.msra.mxu0 0.0
    %1861 = vmatprep.subr.mxu0 0.0
    %1862 = vmatpush1.msra.mxu0 0.0
    %1863 = vmatprep.subr.mxu0 0.0
    %1864 = vmatpush1.msra.mxu0 0.0
    %1865 = vmatprep.subr.mxu0 0.0
    %1866 = vmatpush1.msra.mxu0 0.0
    %1867 = vmatprep.subr.mxu0 0.0
    %1868 = vmatpush1.msra.mxu0 0.0
    %1869 = vmatprep.subr.mxu0 0.0
    %1870 = vmatpush1.msra.mxu0 0.0
    %1871 = vmatprep.subr.mxu0 0.0
    %1872 = vmatpush1.msra.mxu0 0.0
    %1873 = vmatprep.subr.mxu0 0.0
    %1874 = vmatpush1.msra.mxu0 0.0
    %1875 = vmatprep.mubr.f32.mxu0 0.0
    %1876 = vmatmul.mubr.f32.gmra.mrb[0].mxu0 %v1809
    %v1877 = vpop.f32.mrb[0].mxu0
    %v1878 = vadd.f32 %v194, %v1877
    %v1879 = vpop.f32.mrb[0].mxu0
    %1880 = vdwg.mxu0
    %1882 = vrot.lane.b32.xlu0 %v1878, 96
    %v1883 = vpop.permute.xlu0 %1882
    %v1885 = vadd.f32 %v1800, %v1883
    %v1886 = vxor.u32 %v1885, 2147483648
    %v1887 = vmul.f32 %v1886, 1.442695
    %v1888 = vpow.pop %v1887
    %v1889 = vadd.f32 %v1888, 1.0
    %v1890 = vrcp.pop %v1889
    %v1891 = vmul.f32 1.0, %v1890
    %v1892 = vadd.f32 %v1802, %v1883
    %v1893 = vxor.u32 %v1892, 2147483648
    %v1894 = vmul.f32 %v1893, 1.442695
    %v1895 = vpow.pop %v1894
    %v1896 = vadd.f32 %v1895, 1.0
    %v1897 = vrcp.pop %v1896
    %v1898 = vmul.f32 1.0, %v1897
    %1899 = vrot.lane.b32.xlu0 %v1878, 32
    %v1900 = vpop.permute.xlu0 %1899
    %v1902 = vmul.f32 %v1891, %v1900
    %1904 = vrot.lane.b32.xlu0 %v1902, 64
    %v1905 = vpop.permute.xlu0 %1904
    %v1907 = vadd.f32 %v1802, %v1905
    %v1908 = vtanh.pop %v1907
    %v1909 = vsub.f32 1.0, %v1898
    %1911 = vrot.lane.b32.xlu0 %v1908, 96
    %v1912 = vpop.permute.xlu0 %1911
    %v1914 = vmul.f32 %v1909, %v1912
    %v1915 = vmul.f32 %v1898, %v1691
    %v1916 = vadd.f32 %v1914, %v1915
    %1917 = vst.msk [vmem:[#allocation3 + $0x38] sm:$0xff] %vm232, %v1916
    %v1918 = vld [vmem:[#allocation7 + $0x90] sm:$0xff]
    %v1919 = vld [vmem:[#allocation7 + $0xa0] sm:$0xff]
    %v1920 = vld [vmem:[#allocation7 + $0xb0] sm:$0xff]
    %v1921 = vld [vmem:[#allocation7 + $0xc0] sm:$0xff]
    %v1922 = vld [vmem:[#allocation7 + $0x210] ss:$0 sm:$0xff]
    %v1924 = vsel %vm232, %v1916, 0
    %1926 = vmatprep.subr.mxu0 0.0
    %1927 = vmatpush1.msra.mxu0 %v1918
    %1928 = vmatprep.subr.mxu0 0.0
    %1929 = vmatpush1.msra.mxu0 %v1919
    %1930 = vmatprep.subr.mxu0 0.0
    %1931 = vmatpush1.msra.mxu0 %v1920
    %1932 = vmatprep.subr.mxu0 0.0
    %1933 = vmatpush1.msra.mxu0 %v1921
    %1934 = vmatprep.subr.mxu0 0.0
    %1935 = vmatpush1.msra.mxu0 0.0
    %1936 = vmatprep.subr.mxu0 0.0
    %1937 = vmatpush1.msra.mxu0 0.0
    %1938 = vmatprep.subr.mxu0 0.0
    %1939 = vmatpush1.msra.mxu0 0.0
    %1940 = vmatprep.subr.mxu0 0.0
    %1941 = vmatpush1.msra.mxu0 0.0
    %1942 = vmatprep.subr.mxu0 0.0
    %1943 = vmatpush1.msra.mxu0 0.0
    %1944 = vmatprep.subr.mxu0 0.0
    %1945 = vmatpush1.msra.mxu0 0.0
    %1946 = vmatprep.subr.mxu0 0.0
    %1947 = vmatpush1.msra.mxu0 0.0
    %1948 = vmatprep.subr.mxu0 0.0
    %1949 = vmatpush1.msra.mxu0 0.0
    %1950 = vmatprep.subr.mxu0 0.0
    %1951 = vmatpush1.msra.mxu0 0.0
    %1952 = vmatprep.subr.mxu0 0.0
    %1953 = vmatpush1.msra.mxu0 0.0
    %1954 = vmatprep.subr.mxu0 0.0
    %1955 = vmatpush1.msra.mxu0 0.0
    %1956 = vmatprep.subr.mxu0 0.0
    %1957 = vmatpush1.msra.mxu0 0.0
    %1958 = vmatprep.subr.mxu0 0.0
    %1959 = vmatpush1.msra.mxu0 0.0
    %1960 = vmatprep.subr.mxu0 0.0
    %1961 = vmatpush1.msra.mxu0 0.0
    %1962 = vmatprep.subr.mxu0 0.0
    %1963 = vmatpush1.msra.mxu0 0.0
    %1964 = vmatprep.subr.mxu0 0.0
    %1965 = vmatpush1.msra.mxu0 0.0
    %1966 = vmatprep.subr.mxu0 0.0
    %1967 = vmatpush1.msra.mxu0 0.0
    %1968 = vmatprep.subr.mxu0 0.0
    %1969 = vmatpush1.msra.mxu0 0.0
    %1970 = vmatprep.subr.mxu0 0.0
    %1971 = vmatpush1.msra.mxu0 0.0
    %1972 = vmatprep.subr.mxu0 0.0
    %1973 = vmatpush1.msra.mxu0 0.0
    %1974 = vmatprep.subr.mxu0 0.0
    %1975 = vmatpush1.msra.mxu0 0.0
    %1976 = vmatprep.subr.mxu0 0.0
    %1977 = vmatpush1.msra.mxu0 0.0
    %1978 = vmatprep.subr.mxu0 0.0
    %1979 = vmatpush1.msra.mxu0 0.0
    %1980 = vmatprep.subr.mxu0 0.0
    %1981 = vmatpush1.msra.mxu0 0.0
    %1982 = vmatprep.subr.mxu0 0.0
    %1983 = vmatpush1.msra.mxu0 0.0
    %1984 = vmatprep.subr.mxu0 0.0
    %1985 = vmatpush1.msra.mxu0 0.0
    %1986 = vmatprep.subr.mxu0 0.0
    %1987 = vmatpush1.msra.mxu0 0.0
    %1988 = vmatprep.subr.mxu0 0.0
    %1989 = vmatpush1.msra.mxu0 0.0
    %1990 = vmatprep.mubr.f32.mxu0 0.0
    %1991 = vmatmul.mubr.f32.gmra.mrb[0].mxu0 %v1924
    %v1992 = vpop.f32.mrb[0].mxu0
    %v1993 = vadd.f32 %v1922, %v1992
    %v1994 = vpop.f32.mrb[0].mxu0
    %1995 = vdwg.mxu0
    %v1996 = vld [vmem:[#allocation3] sm:$0xff]
    %v1997 = vld [vmem:[#allocation3 + $0x8] sm:$0xff]
    %v1998 = vld [vmem:[#allocation3 + $0x10] sm:$0xff]
    %v1999 = vld [vmem:[#allocation3 + $0x18] sm:$0xff]
    %v2000 = vld [vmem:[#allocation3 + $0x20] sm:$0xff]
    %v2001 = vld [vmem:[#allocation3 + $0x28] sm:$0xff]
    %v2002 = vld [vmem:[#allocation3 + $0x30] sm:$0xff]
    %v2003 = vld [vmem:[#allocation3 + $0x38] sm:$0xff]
    %v2004 = vld [vmem:[#allocation7 + $0xd0] sm:$0xff]
    %v2005 = vld [vmem:[#allocation7 + $0xe0] sm:$0xff]
    %v2006 = vld [vmem:[#allocation7 + $0xf0] sm:$0xff]
    %v2007 = vld [vmem:[#allocation7 + $0x100] sm:$0xff]
    %v2009 = vsel %vm232, %v1996, 0
    %v2012 = vsel %vm232, %v1997, 0
    %v2015 = vsel %vm232, %v1998, 0
    %v2018 = vsel %vm232, %v1999, 0
    %v2021 = vsel %vm232, %v2000, 0
    %v2024 = vsel %vm232, %v2001, 0
    %v2027 = vsel %vm232, %v2002, 0
    %v2030 = vsel %vm232, %v2003, 0
    %2032 = vmatprep.subr.mxu0 0.0
    %2033 = vmatpush1.msra.mxu0 %v2004
    %2034 = vmatprep.subr.mxu0 0.0
    %2035 = vmatpush1.msra.mxu0 %v2005
    %2036 = vmatprep.subr.mxu0 0.0
    %2037 = vmatpush1.msra.mxu0 %v2006
    %2038 = vmatprep.subr.mxu0 0.0
    %2039 = vmatpush1.msra.mxu0 %v2007
    %2040 = vmatprep.subr.mxu0 0.0
    %2041 = vmatpush1.msra.mxu0 0.0
    %2042 = vmatprep.subr.mxu0 0.0
    %2043 = vmatpush1.msra.mxu0 0.0
    %2044 = vmatprep.subr.mxu0 0.0
    %2045 = vmatpush1.msra.mxu0 0.0
    %2046 = vmatprep.subr.mxu0 0.0
    %2047 = vmatpush1.msra.mxu0 0.0
    %2048 = vmatprep.subr.mxu0 0.0
    %2049 = vmatpush1.msra.mxu0 0.0
    %2050 = vmatprep.subr.mxu0 0.0
    %2051 = vmatpush1.msra.mxu0 0.0
    %2052 = vmatprep.subr.mxu0 0.0
    %2053 = vmatpush1.msra.mxu0 0.0
    %2054 = vmatprep.subr.mxu0 0.0
    %2055 = vmatpush1.msra.mxu0 0.0
    %2056 = vmatprep.subr.mxu0 0.0
    %2057 = vmatpush1.msra.mxu0 0.0
    %2058 = vmatprep.subr.mxu0 0.0
    %2059 = vmatpush1.msra.mxu0 0.0
    %2060 = vmatprep.subr.mxu0 0.0
    %2061 = vmatpush1.msra.mxu0 0.0
    %2062 = vmatprep.subr.mxu0 0.0
    %2063 = vmatpush1.msra.mxu0 0.0
    %2064 = vmatprep.subr.mxu0 0.0
    %2065 = vmatpush1.msra.mxu0 0.0
    %2066 = vmatprep.subr.mxu0 0.0
    %2067 = vmatpush1.msra.mxu0 0.0
    %2068 = vmatprep.subr.mxu0 0.0
    %2069 = vmatpush1.msra.mxu0 0.0
    %2070 = vmatprep.subr.mxu0 0.0
    %2071 = vmatpush1.msra.mxu0 0.0
    %2072 = vmatprep.subr.mxu0 0.0
    %2073 = vmatpush1.msra.mxu0 0.0
    %2074 = vmatprep.subr.mxu0 0.0
    %2075 = vmatpush1.msra.mxu0 0.0
    %2076 = vmatprep.subr.mxu0 0.0
    %2077 = vmatpush1.msra.mxu0 0.0
    %2078 = vmatprep.subr.mxu0 0.0
    %2079 = vmatpush1.msra.mxu0 0.0
    %2080 = vmatprep.subr.mxu0 0.0
    %2081 = vmatpush1.msra.mxu0 0.0
    %2082 = vmatprep.subr.mxu0 0.0
    %2083 = vmatpush1.msra.mxu0 0.0
    %2084 = vmatprep.subr.mxu0 0.0
    %2085 = vmatpush1.msra.mxu0 0.0
    %2086 = vmatprep.subr.mxu0 0.0
    %2087 = vmatpush1.msra.mxu0 0.0
    %2088 = vmatprep.subr.mxu0 0.0
    %2089 = vmatpush1.msra.mxu0 0.0
    %2090 = vmatprep.subr.mxu0 0.0
    %2091 = vmatpush1.msra.mxu0 0.0
    %2092 = vmatprep.subr.mxu0 0.0
    %2093 = vmatpush1.msra.mxu0 0.0
    %2094 = vmatprep.subr.mxu0 0.0
    %2095 = vmatpush1.msra.mxu0 0.0
    %2096 = vmatprep.mubr.f32.mxu0 0.0
    %2097 = vmatmul.mubr.f32.gmra.mrb[0].mxu0 %v2009
    %v2098 = vpop.f32.mrb[0].mxu0
    %v2099 = vadd.f32 0.0, %v2098
    %v2100 = vpop.f32.mrb[0].mxu0
    %2101 = vmatprep.mubr.f32.mxu0 0.0
    %2102 = vmatmul.mubr.f32.gmra.mrb[0].mxu0 %v2012
    %v2103 = vpop.f32.mrb[0].mxu0
    %v2104 = vadd.f32 0.0, %v2103
    %v2105 = vpop.f32.mrb[0].mxu0
    %2106 = vmatprep.mubr.f32.mxu0 0.0
    %2107 = vmatmul.mubr.f32.gmra.mrb[0].mxu0 %v2015
    %v2108 = vpop.f32.mrb[0].mxu0
    %v2109 = vadd.f32 0.0, %v2108
    %v2110 = vpop.f32.mrb[0].mxu0
    %2111 = vmatprep.mubr.f32.mxu0 0.0
    %2112 = vmatmul.mubr.f32.gmra.mrb[0].mxu0 %v2018
    %v2113 = vpop.f32.mrb[0].mxu0
    %v2114 = vadd.f32 0.0, %v2113
    %v2115 = vpop.f32.mrb[0].mxu0
    %2116 = vmatprep.mubr.f32.mxu0 0.0
    %2117 = vmatmul.mubr.f32.gmra.mrb[0].mxu0 %v2021
    %v2118 = vpop.f32.mrb[0].mxu0
    %v2119 = vadd.f32 0.0, %v2118
    %v2120 = vpop.f32.mrb[0].mxu0
    %2121 = vmatprep.mubr.f32.mxu0 0.0
    %2122 = vmatmul.mubr.f32.gmra.mrb[0].mxu0 %v2024
    %v2123 = vpop.f32.mrb[0].mxu0
    %v2124 = vadd.f32 0.0, %v2123
    %v2125 = vpop.f32.mrb[0].mxu0
    %2126 = vmatprep.mubr.f32.mxu0 0.0
    %2127 = vmatmul.mubr.f32.gmra.mrb[0].mxu0 %v2027
    %v2128 = vpop.f32.mrb[0].mxu0
    %v2129 = vadd.f32 0.0, %v2128
    %v2130 = vpop.f32.mrb[0].mxu0
    %2131 = vmatprep.mubr.f32.mxu0 0.0
    %2132 = vmatmul.mubr.f32.gmra.mrb[0].mxu0 %v2030
    %v2133 = vpop.f32.mrb[0].mxu0
    %v2134 = vadd.f32 0.0, %v2133
    %v2135 = vpop.f32.mrb[0].mxu0
    %2136 = vdwg.mxu0
    %2137 = vst.msk [vmem:[#allocation5] sm:$0xff] %vm232, %v2099
    %2138 = vst.msk [vmem:[#allocation5 + $0x8] sm:$0xff] %vm232, %v2104
    %2139 = vst.msk [vmem:[#allocation5 + $0x10] sm:$0xff] %vm232, %v2109
    %2140 = vst.msk [vmem:[#allocation5 + $0x18] sm:$0xff] %vm232, %v2114
    %2141 = vst.msk [vmem:[#allocation5 + $0x20] sm:$0xff] %vm232, %v2119
    %2142 = vst.msk [vmem:[#allocation5 + $0x28] sm:$0xff] %vm232, %v2124
    %2143 = vst.msk [vmem:[#allocation5 + $0x30] sm:$0xff] %vm232, %v2129
    %2144 = vst.msk [vmem:[#allocation5 + $0x38] sm:$0xff] %vm232, %v2134
    %v2145 = vld [vmem:[#allocation7 + $0x110] sm:$0xff]
    %v2146 = vld [vmem:[#allocation7 + $0x120] sm:$0xff]
    %v2147 = vld [vmem:[#allocation7 + $0x130] sm:$0xff]
    %v2148 = vld [vmem:[#allocation7 + $0x140] sm:$0xff]
    %2149 = vmatprep.subr.mxu0 0.0
    %2150 = vmatpush1.msra.mxu0 %v2145
    %2151 = vmatprep.subr.mxu0 0.0
    %2152 = vmatpush1.msra.mxu0 %v2146
    %2153 = vmatprep.subr.mxu0 0.0
    %2154 = vmatpush1.msra.mxu0 %v2147
    %2155 = vmatprep.subr.mxu0 0.0
    %2156 = vmatpush1.msra.mxu0 %v2148
    %2157 = vmatprep.subr.mxu0 0.0
    %2158 = vmatpush1.msra.mxu0 0.0
    %2159 = vmatprep.subr.mxu0 0.0
    %2160 = vmatpush1.msra.mxu0 0.0
    %2161 = vmatprep.subr.mxu0 0.0
    %2162 = vmatpush1.msra.mxu0 0.0
    %2163 = vmatprep.subr.mxu0 0.0
    %2164 = vmatpush1.msra.mxu0 0.0
    %2165 = vmatprep.subr.mxu0 0.0
    %2166 = vmatpush1.msra.mxu0 0.0
    %2167 = vmatprep.subr.mxu0 0.0
    %2168 = vmatpush1.msra.mxu0 0.0
    %2169 = vmatprep.subr.mxu0 0.0
    %2170 = vmatpush1.msra.mxu0 0.0
    %2171 = vmatprep.subr.mxu0 0.0
    %2172 = vmatpush1.msra.mxu0 0.0
    %2173 = vmatprep.subr.mxu0 0.0
    %2174 = vmatpush1.msra.mxu0 0.0
    %2175 = vmatprep.subr.mxu0 0.0
    %2176 = vmatpush1.msra.mxu0 0.0
    %2177 = vmatprep.subr.mxu0 0.0
    %2178 = vmatpush1.msra.mxu0 0.0
    %2179 = vmatprep.subr.mxu0 0.0
    %2180 = vmatpush1.msra.mxu0 0.0
    %2181 = vmatprep.subr.mxu0 0.0
    %2182 = vmatpush1.msra.mxu0 0.0
    %2183 = vmatprep.subr.mxu0 0.0
    %2184 = vmatpush1.msra.mxu0 0.0
    %2185 = vmatprep.subr.mxu0 0.0
    %2186 = vmatpush1.msra.mxu0 0.0
    %2187 = vmatprep.subr.mxu0 0.0
    %2188 = vmatpush1.msra.mxu0 0.0
    %2189 = vmatprep.subr.mxu0 0.0
    %2190 = vmatpush1.msra.mxu0 0.0
    %2191 = vmatprep.subr.mxu0 0.0
    %2192 = vmatpush1.msra.mxu0 0.0
    %2193 = vmatprep.subr.mxu0 0.0
    %2194 = vmatpush1.msra.mxu0 0.0
    %2195 = vmatprep.subr.mxu0 0.0
    %2196 = vmatpush1.msra.mxu0 0.0
    %2197 = vmatprep.subr.mxu0 0.0
    %2198 = vmatpush1.msra.mxu0 0.0
    %2199 = vmatprep.subr.mxu0 0.0
    %2200 = vmatpush1.msra.mxu0 0.0
    %2201 = vmatprep.subr.mxu0 0.0
    %2202 = vmatpush1.msra.mxu0 0.0
    %2203 = vmatprep.subr.mxu0 0.0
    %2204 = vmatpush1.msra.mxu0 0.0
    %2205 = vmatprep.subr.mxu0 0.0
    %2206 = vmatpush1.msra.mxu0 0.0
    %2207 = vmatprep.subr.mxu0 0.0
    %2208 = vmatpush1.msra.mxu0 0.0
    %2209 = vmatprep.subr.mxu0 0.0
    %2210 = vmatpush1.msra.mxu0 0.0
    %2211 = vmatprep.subr.mxu0 0.0
    %2212 = vmatpush1.msra.mxu0 0.0
    %2213 = vmatprep.mubr.f32.mxu0 0.0
    %2214 = vmatmul.mubr.f32.gmra.mrb[0].mxu0 %v2009
    %v2215 = vpop.f32.mrb[0].mxu0
    %v2216 = vadd.f32 0.0, %v2215
    %v2217 = vpop.f32.mrb[0].mxu0
    %2218 = vmatprep.mubr.f32.mxu0 0.0
    %2219 = vmatmul.mubr.f32.gmra.mrb[0].mxu0 %v2012
    %v2220 = vpop.f32.mrb[0].mxu0
    %v2221 = vadd.f32 0.0, %v2220
    %v2222 = vpop.f32.mrb[0].mxu0
    %2223 = vmatprep.mubr.f32.mxu0 0.0
    %2224 = vmatmul.mubr.f32.gmra.mrb[0].mxu0 %v2015
    %v2225 = vpop.f32.mrb[0].mxu0
    %v2226 = vadd.f32 0.0, %v2225
    %v2227 = vpop.f32.mrb[0].mxu0
    %2228 = vmatprep.mubr.f32.mxu0 0.0
    %2229 = vmatmul.mubr.f32.gmra.mrb[0].mxu0 %v2018
    %v2230 = vpop.f32.mrb[0].mxu0
    %v2231 = vadd.f32 0.0, %v2230
    %v2232 = vpop.f32.mrb[0].mxu0
    %2233 = vmatprep.mubr.f32.mxu0 0.0
    %2234 = vmatmul.mubr.f32.gmra.mrb[0].mxu0 %v2021
    %v2235 = vpop.f32.mrb[0].mxu0
    %v2236 = vadd.f32 0.0, %v2235
    %v2237 = vpop.f32.mrb[0].mxu0
    %2238 = vmatprep.mubr.f32.mxu0 0.0
    %2239 = vmatmul.mubr.f32.gmra.mrb[0].mxu0 %v2024
    %v2240 = vpop.f32.mrb[0].mxu0
    %v2241 = vadd.f32 0.0, %v2240
    %v2242 = vpop.f32.mrb[0].mxu0
    %2243 = vmatprep.mubr.f32.mxu0 0.0
    %2244 = vmatmul.mubr.f32.gmra.mrb[0].mxu0 %v2027
    %v2245 = vpop.f32.mrb[0].mxu0
    %v2246 = vadd.f32 0.0, %v2245
    %v2247 = vpop.f32.mrb[0].mxu0
    %2248 = vmatprep.mubr.f32.mxu0 0.0
    %2249 = vmatmul.mubr.f32.gmra.mrb[0].mxu0 %v2030
    %v2250 = vpop.f32.mrb[0].mxu0
    %v2251 = vadd.f32 0.0, %v2250
    %v2252 = vpop.f32.mrb[0].mxu0
    %2253 = vdwg.mxu0
    %2254 = vst.msk [vmem:[#allocation6] sm:$0xff] %vm232, %v2216
    %2255 = vst.msk [vmem:[#allocation6 + $0x8] sm:$0xff] %vm232, %v2221
    %2256 = vst.msk [vmem:[#allocation6 + $0x10] sm:$0xff] %vm232, %v2226
    %2257 = vst.msk [vmem:[#allocation6 + $0x18] sm:$0xff] %vm232, %v2231
    %2258 = vst.msk [vmem:[#allocation6 + $0x20] sm:$0xff] %vm232, %v2236
    %2259 = vst.msk [vmem:[#allocation6 + $0x28] sm:$0xff] %vm232, %v2241
    %2260 = vst.msk [vmem:[#allocation6 + $0x30] sm:$0xff] %vm232, %v2246
    %2261 = vst.msk [vmem:[#allocation6 + $0x38] sm:$0xff] %vm232, %v2251
    %v2262 = vld [vmem:[%s1] sm:$0xff]
    %v2263 = vld [vmem:[%s1 + $0x8] sm:$0xff]
    %v2264 = vld [vmem:[%s1 + $0x10] sm:$0xff]
    %v2265 = vld [vmem:[%s1 + $0x18] sm:$0xff]
    %v2266 = vld [vmem:[#allocation7 + $0x1d0] sm:$0xf]
    %v2267 = vld [vmem:[#allocation7 + $0x230] ss:$0 sm:$0xff]
    %vm2268 = vcmask 31744
    %v2270 = vsel %vm2268, %v2262, 0
    %v2273 = vsel %vm2268, %v2263, 0
    %v2276 = vsel %vm2268, %v2264, 0
    %v2279 = vsel %vm2268, %v2265, 0
    %vm2281 = vcmask 1043456
    %v2283 = vsel %vm2281, %v2266, 0
    %2285 = vmatprep.subr.mxu0 0.0
    %2286 = vmatpush1.msra.mxu0 %v2283
    %2287 = vmatprep.subr.mxu0 0.0
    %2288 = vmatpush1.msra.mxu0 0.0
    %2289 = vmatprep.subr.mxu0 0.0
    %2290 = vmatpush1.msra.mxu0 0.0
    %2291 = vmatprep.subr.mxu0 0.0
    %2292 = vmatpush1.msra.mxu0 0.0
    %2293 = vmatprep.subr.mxu0 0.0
    %2294 = vmatpush1.msra.mxu0 0.0
    %2295 = vmatprep.subr.mxu0 0.0
    %2296 = vmatpush1.msra.mxu0 0.0
    %2297 = vmatprep.subr.mxu0 0.0
    %2298 = vmatpush1.msra.mxu0 0.0
    %2299 = vmatprep.subr.mxu0 0.0
    %2300 = vmatpush1.msra.mxu0 0.0
    %2301 = vmatprep.subr.mxu0 0.0
    %2302 = vmatpush1.msra.mxu0 0.0
    %2303 = vmatprep.subr.mxu0 0.0
    %2304 = vmatpush1.msra.mxu0 0.0
    %2305 = vmatprep.subr.mxu0 0.0
    %2306 = vmatpush1.msra.mxu0 0.0
    %2307 = vmatprep.subr.mxu0 0.0
    %2308 = vmatpush1.msra.mxu0 0.0
    %2309 = vmatprep.subr.mxu0 0.0
    %2310 = vmatpush1.msra.mxu0 0.0
    %2311 = vmatprep.subr.mxu0 0.0
    %2312 = vmatpush1.msra.mxu0 0.0
    %2313 = vmatprep.subr.mxu0 0.0
    %2314 = vmatpush1.msra.mxu0 0.0
    %2315 = vmatprep.subr.mxu0 0.0
    %2316 = vmatpush1.msra.mxu0 0.0
    %2317 = vmatprep.subr.mxu0 0.0
    %2318 = vmatpush1.msra.mxu0 0.0
    %2319 = vmatprep.subr.mxu0 0.0
    %2320 = vmatpush1.msra.mxu0 0.0
    %2321 = vmatprep.subr.mxu0 0.0
    %2322 = vmatpush1.msra.mxu0 0.0
    %2323 = vmatprep.subr.mxu0 0.0
    %2324 = vmatpush1.msra.mxu0 0.0
    %2325 = vmatprep.subr.mxu0 0.0
    %2326 = vmatpush1.msra.mxu0 0.0
    %2327 = vmatprep.subr.mxu0 0.0
    %2328 = vmatpush1.msra.mxu0 0.0
    %2329 = vmatprep.subr.mxu0 0.0
    %2330 = vmatpush1.msra.mxu0 0.0
    %2331 = vmatprep.subr.mxu0 0.0
    %2332 = vmatpush1.msra.mxu0 0.0
    %2333 = vmatprep.subr.mxu0 0.0
    %2334 = vmatpush1.msra.mxu0 0.0
    %2335 = vmatprep.subr.mxu0 0.0
    %2336 = vmatpush1.msra.mxu0 0.0
    %2337 = vmatprep.subr.mxu0 0.0
    %2338 = vmatpush1.msra.mxu0 0.0
    %2339 = vmatprep.subr.mxu0 0.0
    %2340 = vmatpush1.msra.mxu0 0.0
    %2341 = vmatprep.subr.mxu0 0.0
    %2342 = vmatpush1.msra.mxu0 0.0
    %2343 = vmatprep.subr.mxu0 0.0
    %2344 = vmatpush1.msra.mxu0 0.0
    %2345 = vmatprep.subr.mxu0 0.0
    %2346 = vmatpush1.msra.mxu0 0.0
    %2347 = vmatprep.subr.mxu0 0.0
    %2348 = vmatpush1.msra.mxu0 0.0
    %2349 = vmatprep.mubr.f32.mxu0 0.0
    %2350 = vmatmul.mubr.f32.gmra.mrb[0].mxu0 %v2270
    %v2351 = vpop.f32.mrb[0].mxu0
    %v2352 = vadd.f32 %v2267, %v2351
    %v2353 = vpop.f32.mrb[0].mxu0
    %2354 = vmatprep.mubr.f32.mxu0 0.0
    %2355 = vmatmul.mubr.f32.gmra.mrb[0].mxu0 %v2273
    %v2356 = vpop.f32.mrb[0].mxu0
    %v2357 = vadd.f32 %v2267, %v2356
    %v2358 = vpop.f32.mrb[0].mxu0
    %2359 = vmatprep.mubr.f32.mxu0 0.0
    %2360 = vmatmul.mubr.f32.gmra.mrb[0].mxu0 %v2276
    %v2361 = vpop.f32.mrb[0].mxu0
    %v2362 = vadd.f32 %v2267, %v2361
    %v2363 = vpop.f32.mrb[0].mxu0
    %2364 = vmatprep.mubr.f32.mxu0 0.0
    %2365 = vmatmul.mubr.f32.gmra.mrb[0].mxu0 %v2279
    %v2366 = vpop.f32.mrb[0].mxu0
    %v2367 = vadd.f32 %v2267, %v2366
    %v2368 = vpop.f32.mrb[0].mxu0
    %2369 = vdwg.mxu0
    %2370 = vst.msk [vmem:[#allocation4] sm:$0xff] %vm172, %v2352
    %2371 = vst.msk [vmem:[#allocation4 + $0x8] sm:$0xff] %vm172, %v2357
    %2372 = vst.msk [vmem:[#allocation4 + $0x10] sm:$0xff] %vm172, %v2362
    %2373 = vst.msk [vmem:[#allocation4 + $0x18] sm:$0xff] %vm172, %v2367
    %v2374 = vlaneseq
    %v2375 = vand.u32 %v2374, 127
    %v2376 = vlaneseq
    %v2377 = vshrl.u32 %v2376, 7
    %v2378 = vsub.s32 %v2375, %v2377
    %vm2379 = vcmp.eq.s32.totalorder %v2378, 0
    %vm2380 = vcmp.eq.s32.totalorder %v2378, 8
    %vm2381 = vmor %vm2379, %vm2380
    %vm2382 = vcmp.eq.s32.totalorder %v2378, 16
    %vm2383 = vmor %vm2381, %vm2382
    %vm2384 = vcmp.eq.s32.totalorder %v2378, 24
    %vm2385 = vmor %vm2383, %vm2384
    %vm2386 = vcmp.eq.s32.totalorder %v2378, 32
    %vm2387 = vmor %vm2385, %vm2386
    %vm2388 = vcmp.eq.s32.totalorder %v2378, 40
    %vm2389 = vmor %vm2387, %vm2388
    %vm2390 = vcmp.eq.s32.totalorder %v2378, 48
    %vm2391 = vmor %vm2389, %vm2390
    %vm2392 = vcmp.eq.s32.totalorder %v2378, 56
    %vm2393 = vmor %vm2391, %vm2392
    %v2394 = vsel %vm2393, 0.0, -1e+30
    %v2395 = vld [vmem:[#allocation7 + $0x220] ss:$0 sm:$0xff]
    %v2396 = vld [vmem:[#allocation7 + $0x240] ss:$0 sm:$0xff]
    %v2397 = vld [vmem:[#allocation7 + $0x250] ss:$0 sm:$0xff]
    %v2398 = vld [vmem:[#allocation7 + $0x260] ss:$0 sm:$0xff]
    %v2399 = vld [vmem:[%s0 + $0x38] sm:$0xff]
    %v2400 = vld [vmem:[#allocation7 + $0x150] sm:$0xff]
    %v2401 = vld [vmem:[#allocation7 + $0x160] sm:$0xff]
    %v2402 = vld [vmem:[#allocation7 + $0x170] sm:$0xff]
    %v2403 = vld [vmem:[#allocation7 + $0x180] sm:$0xff]
    %v2405 = vsel %vm232, %v1993, 0
    %2407 = vmatprep.subr.mxu0 0.0
    %2408 = vmatpush1.msra.mxu0 %v2400
    %2409 = vmatprep.subr.mxu0 0.0
    %2410 = vmatpush1.msra.mxu0 %v2401
    %2411 = vmatprep.subr.mxu0 0.0
    %2412 = vmatpush1.msra.mxu0 %v2402
    %2413 = vmatprep.subr.mxu0 0.0
    %2414 = vmatpush1.msra.mxu0 %v2403
    %2415 = vmatprep.subr.mxu0 0.0
    %2416 = vmatpush1.msra.mxu0 0.0
    %2417 = vmatprep.subr.mxu0 0.0
    %2418 = vmatpush1.msra.mxu0 0.0
    %2419 = vmatprep.subr.mxu0 0.0
    %2420 = vmatpush1.msra.mxu0 0.0
    %2421 = vmatprep.subr.mxu0 0.0
    %2422 = vmatpush1.msra.mxu0 0.0
    %2423 = vmatprep.subr.mxu0 0.0
    %2424 = vmatpush1.msra.mxu0 0.0
    %2425 = vmatprep.subr.mxu0 0.0
    %2426 = vmatpush1.msra.mxu0 0.0
    %2427 = vmatprep.subr.mxu0 0.0
    %2428 = vmatpush1.msra.mxu0 0.0
    %2429 = vmatprep.subr.mxu0 0.0
    %2430 = vmatpush1.msra.mxu0 0.0
    %2431 = vmatprep.subr.mxu0 0.0
    %2432 = vmatpush1.msra.mxu0 0.0
    %2433 = vmatprep.subr.mxu0 0.0
    %2434 = vmatpush1.msra.mxu0 0.0
    %2435 = vmatprep.subr.mxu0 0.0
    %2436 = vmatpush1.msra.mxu0 0.0
    %2437 = vmatprep.subr.mxu0 0.0
    %2438 = vmatpush1.msra.mxu0 0.0
    %2439 = vmatprep.subr.mxu0 0.0
    %2440 = vmatpush1.msra.mxu0 0.0
    %2441 = vmatprep.subr.mxu0 0.0
    %2442 = vmatpush1.msra.mxu0 0.0
    %2443 = vmatprep.subr.mxu0 0.0
    %2444 = vmatpush1.msra.mxu0 0.0
    %2445 = vmatprep.subr.mxu0 0.0
    %2446 = vmatpush1.msra.mxu0 0.0
    %2447 = vmatprep.subr.mxu0 0.0
    %2448 = vmatpush1.msra.mxu0 0.0
    %2449 = vmatprep.subr.mxu0 0.0
    %2450 = vmatpush1.msra.mxu0 0.0
    %2451 = vmatprep.subr.mxu0 0.0
    %2452 = vmatpush1.msra.mxu0 0.0
    %2453 = vmatprep.subr.mxu0 0.0
    %2454 = vmatpush1.msra.mxu0 0.0
    %2455 = vmatprep.subr.mxu0 0.0
    %2456 = vmatpush1.msra.mxu0 0.0
    %2457 = vmatprep.subr.mxu0 0.0
    %2458 = vmatpush1.msra.mxu0 0.0
    %2459 = vmatprep.subr.mxu0 0.0
    %2460 = vmatpush1.msra.mxu0 0.0
    %2461 = vmatprep.subr.mxu0 0.0
    %2462 = vmatpush1.msra.mxu0 0.0
    %2463 = vmatprep.subr.mxu0 0.0
    %2464 = vmatpush1.msra.mxu0 0.0
    %2465 = vmatprep.subr.mxu0 0.0
    %2466 = vmatpush1.msra.mxu0 0.0
    %2467 = vmatprep.subr.mxu0 0.0
    %2468 = vmatpush1.msra.mxu0 0.0
    %2469 = vmatprep.subr.mxu0 0.0
    %2470 = vmatpush1.msra.mxu0 0.0
    %2471 = vmatprep.mubr.f32.mxu0 0.0
    %2472 = vmatmul.mubr.f32.gmra.mrb[0].mxu0 %v2405
    %v2473 = vpop.f32.mrb[0].mxu0
    %v2474 = vadd.f32 %v2395, %v2473
    %v2475 = vpop.f32.mrb[0].mxu0
    %2476 = vdwg.mxu0
    %v2477 = vld [vmem:[#allocation5] sm:$0xff]
    %v2478 = vld [vmem:[#allocation5 + $0x8] sm:$0xff]
    %v2479 = vld [vmem:[#allocation5 + $0x10] sm:$0xff]
    %v2480 = vld [vmem:[#allocation5 + $0x18] sm:$0xff]
    %v2481 = vld [vmem:[#allocation5 + $0x20] sm:$0xff]
    %v2482 = vld [vmem:[#allocation5 + $0x28] sm:$0xff]
    %v2483 = vld [vmem:[#allocation5 + $0x30] sm:$0xff]
    %v2484 = vld [vmem:[#allocation5 + $0x38] sm:$0xff]
    %v2486 = vsel %vm232, %v2474, 0
    %v2489 = vsel %vm232, %v2477, 0
    %v2492 = vsel %vm232, %v2478, 0
    %v2495 = vsel %vm232, %v2479, 0
    %v2498 = vsel %vm232, %v2480, 0
    %v2501 = vsel %vm232, %v2481, 0
    %v2504 = vsel %vm232, %v2482, 0
    %v2507 = vsel %vm232, %v2483, 0
    %v2510 = vsel %vm232, %v2484, 0
    %2512 = vmatprep.subr.mxu0 0.0
    %2513 = vmatpush1.xpose.msra.mxu0 %v2489
    %2514 = vmatprep.subr.mxu0 0.0
    %2515 = vmatpush1.xpose.msra.mxu0 %v2492
    %2516 = vmatprep.subr.mxu0 0.0
    %2517 = vmatpush1.xpose.msra.mxu0 %v2495
    %2518 = vmatprep.subr.mxu0 0.0
    %2519 = vmatpush1.xpose.msra.mxu0 %v2498
    %2520 = vmatprep.subr.mxu0 0.0
    %2521 = vmatpush1.xpose.msra.mxu0 %v2501
    %2522 = vmatprep.subr.mxu0 0.0
    %2523 = vmatpush1.xpose.msra.mxu0 %v2504
    %2524 = vmatprep.subr.mxu0 0.0
    %2525 = vmatpush1.xpose.msra.mxu0 %v2507
    %2526 = vmatprep.subr.mxu0 0.0
    %2527 = vmatpush1.xpose.msra.mxu0 %v2510
    %2528 = vmatprep.subr.mxu0 0.0
    %2529 = vmatpush1.xpose.msra.mxu0 0.0
    %2530 = vmatprep.subr.mxu0 0.0
    %2531 = vmatpush1.xpose.msra.mxu0 0.0
    %2532 = vmatprep.subr.mxu0 0.0
    %2533 = vmatpush1.xpose.msra.mxu0 0.0
    %2534 = vmatprep.subr.mxu0 0.0
    %2535 = vmatpush1.xpose.msra.mxu0 0.0
    %2536 = vmatprep.subr.mxu0 0.0
    %2537 = vmatpush1.xpose.msra.mxu0 0.0
    %2538 = vmatprep.subr.mxu0 0.0
    %2539 = vmatpush1.xpose.msra.mxu0 0.0
    %2540 = vmatprep.subr.mxu0 0.0
    %2541 = vmatpush1.xpose.msra.mxu0 0.0
    %2542 = vmatprep.subr.mxu0 0.0
    %2543 = vmatpush1.xpose.msra.mxu0 0.0
    %2544 = vmatprep.subr.mxu0 0.0
    %2545 = vmatpush1.xpose.msra.mxu0 0.0
    %2546 = vmatprep.subr.mxu0 0.0
    %2547 = vmatpush1.xpose.msra.mxu0 0.0
    %2548 = vmatprep.subr.mxu0 0.0
    %2549 = vmatpush1.xpose.msra.mxu0 0.0
    %2550 = vmatprep.subr.mxu0 0.0
    %2551 = vmatpush1.xpose.msra.mxu0 0.0
    %2552 = vmatprep.subr.mxu0 0.0
    %2553 = vmatpush1.xpose.msra.mxu0 0.0
    %2554 = vmatprep.subr.mxu0 0.0
    %2555 = vmatpush1.xpose.msra.mxu0 0.0
    %2556 = vmatprep.subr.mxu0 0.0
    %2557 = vmatpush1.xpose.msra.mxu0 0.0
    %2558 = vmatprep.subr.mxu0 0.0
    %2559 = vmatpush1.xpose.msra.mxu0 0.0
    %2560 = vmatprep.subr.mxu0 0.0
    %2561 = vmatpush1.xpose.msra.mxu0 0.0
    %2562 = vmatprep.subr.mxu0 0.0
    %2563 = vmatpush1.xpose.msra.mxu0 0.0
    %2564 = vmatprep.subr.mxu0 0.0
    %2565 = vmatpush1.xpose.msra.mxu0 0.0
    %2566 = vmatprep.subr.mxu0 0.0
    %2567 = vmatpush1.xpose.msra.mxu0 0.0
    %2568 = vmatprep.subr.mxu0 0.0
    %2569 = vmatpush1.xpose.msra.mxu0 0.0
    %2570 = vmatprep.subr.mxu0 0.0
    %2571 = vmatpush1.xpose.msra.mxu0 0.0
    %2572 = vmatprep.subr.mxu0 0.0
    %2573 = vmatpush1.xpose.msra.mxu0 0.0
    %2574 = vmatprep.subr.mxu0 0.0
    %2575 = vmatpush1.xpose.msra.mxu0 0.0
    %2576 = vmatprep.mubr.f32.mxu0 0.0
    %2577 = vmatmul.mubr.f32.gmra.mrb[0].mxu0 %v2486
    %v2578 = vpop.f32.mrb[0].mxu0
    %v2579 = vadd.f32 %v2394, %v2578
    %v2580 = vpop.f32.mrb[0].mxu0
    %2581 = vdwg.mxu0
    %vm2582 = vcmask 523264
    %v2583 = vsel %vm2582, %v2579, -inf
    %2584 = vmax.xlane.f32.xlu0 %v2583
    %v2585 = vpop.xlane.xlu0 %2584
    %v2586 = vsub.f32 %v2579, %v2585
    %v2587 = vmul.f32 %v2586, 1.442695
    %v2588 = vpow.pop %v2587
    %v2589 = vsel %vm2582, %v2588, 0.0
    %2590 = vadd.xlane.f32.xlu0 %v2589
    %v2591 = vpop.xlane.xlu0 %2590
    %v2592 = vrcp.pop %v2591
    %v2593 = vmul.f32 %v2588, %v2592
    %v2594 = vld [vmem:[#allocation6] sm:$0xff]
    %v2595 = vld [vmem:[#allocation6 + $0x8] sm:$0xff]
    %v2596 = vld [vmem:[#allocation6 + $0x10] sm:$0xff]
    %v2597 = vld [vmem:[#allocation6 + $0x18] sm:$0xff]
    %v2598 = vld [vmem:[#allocation6 + $0x20] sm:$0xff]
    %v2599 = vld [vmem:[#allocation6 + $0x28] sm:$0xff]
    %v2600 = vld [vmem:[#allocation6 + $0x30] sm:$0xff]
    %v2601 = vld [vmem:[#allocation6 + $0x38] sm:$0xff]
    %v2603 = vsel %vm2582, %v2593, 0
    %2605 = vmatprep.subr.mxu0 0.0
    %2606 = vmatpush1.msra.mxu0 %v2594
    %2607 = vmatprep.subr.mxu0 0.0
    %2608 = vmatpush1.msra.mxu0 %v2595
    %2609 = vmatprep.subr.mxu0 0.0
    %2610 = vmatpush1.msra.mxu0 %v2596
    %2611 = vmatprep.subr.mxu0 0.0
    %2612 = vmatpush1.msra.mxu0 %v2597
    %2613 = vmatprep.subr.mxu0 0.0
    %2614 = vmatpush1.msra.mxu0 %v2598
    %2615 = vmatprep.subr.mxu0 0.0
    %2616 = vmatpush1.msra.mxu0 %v2599
    %2617 = vmatprep.subr.mxu0 0.0
    %2618 = vmatpush1.msra.mxu0 %v2600
    %2619 = vmatprep.subr.mxu0 0.0
    %2620 = vmatpush1.msra.mxu0 %v2601
    %2621 = vmatprep.subr.mxu0 0.0
    %2622 = vmatpush1.msra.mxu0 0.0
    %2623 = vmatprep.subr.mxu0 0.0
    %2624 = vmatpush1.msra.mxu0 0.0
    %2625 = vmatprep.subr.mxu0 0.0
    %2626 = vmatpush1.msra.mxu0 0.0
    %2627 = vmatprep.subr.mxu0 0.0
    %2628 = vmatpush1.msra.mxu0 0.0
    %2629 = vmatprep.subr.mxu0 0.0
    %2630 = vmatpush1.msra.mxu0 0.0
    %2631 = vmatprep.subr.mxu0 0.0
    %2632 = vmatpush1.msra.mxu0 0.0
    %2633 = vmatprep.subr.mxu0 0.0
    %2634 = vmatpush1.msra.mxu0 0.0
    %2635 = vmatprep.subr.mxu0 0.0
    %2636 = vmatpush1.msra.mxu0 0.0
    %2637 = vmatprep.subr.mxu0 0.0
    %2638 = vmatpush1.msra.mxu0 0.0
    %2639 = vmatprep.subr.mxu0 0.0
    %2640 = vmatpush1.msra.mxu0 0.0
    %2641 = vmatprep.subr.mxu0 0.0
    %2642 = vmatpush1.msra.mxu0 0.0
    %2643 = vmatprep.subr.mxu0 0.0
    %2644 = vmatpush1.msra.mxu0 0.0
    %2645 = vmatprep.subr.mxu0 0.0
    %2646 = vmatpush1.msra.mxu0 0.0
    %2647 = vmatprep.subr.mxu0 0.0
    %2648 = vmatpush1.msra.mxu0 0.0
    %2649 = vmatprep.subr.mxu0 0.0
    %2650 = vmatpush1.msra.mxu0 0.0
    %2651 = vmatprep.subr.mxu0 0.0
    %2652 = vmatpush1.msra.mxu0 0.0
    %2653 = vmatprep.subr.mxu0 0.0
    %2654 = vmatpush1.msra.mxu0 0.0
    %2655 = vmatprep.subr.mxu0 0.0
    %2656 = vmatpush1.msra.mxu0 0.0
    %2657 = vmatprep.subr.mxu0 0.0
    %2658 = vmatpush1.msra.mxu0 0.0
    %2659 = vmatprep.subr.mxu0 0.0
    %2660 = vmatpush1.msra.mxu0 0.0
    %2661 = vmatprep.subr.mxu0 0.0
    %2662 = vmatpush1.msra.mxu0 0.0
    %2663 = vmatprep.subr.mxu0 0.0
    %2664 = vmatpush1.msra.mxu0 0.0
    %2665 = vmatprep.subr.mxu0 0.0
    %2666 = vmatpush1.msra.mxu0 0.0
    %2667 = vmatprep.subr.mxu0 0.0
    %2668 = vmatpush1.msra.mxu0 0.0
    %2669 = vmatprep.mubr.f32.mxu0 0.0
    %2670 = vmatmul.mubr.f32.gmra.mrb[0].mxu0 %v2603
    %v2671 = vpop.f32.mrb[0].mxu0
    %v2672 = vadd.f32 0.0, %v2671
    %v2673 = vpop.f32.mrb[0].mxu0
    %2674 = vdwg.mxu0
    %2676 = vset.pattern.permute.xlu0 0
    %2677 = vperm.xlu0 %2676, %v2399
    %v2678 = vpop.permute.xlu0 %2677
    %v2680 = vmul.f32 %v2678, %v2396
    %v2681 = vld [vmem:[#allocation4] sm:$0xff]
    %v2682 = vadd.f32 %v2680, %v2681
    %v2683 = vld [vmem:[#allocation7 + $0x190] sm:$0xff]
    %v2684 = vld [vmem:[#allocation7 + $0x1a0] sm:$0xff]
    %v2685 = vld [vmem:[#allocation7 + $0x1b0] sm:$0xff]
    %v2686 = vld [vmem:[#allocation7 + $0x1c0] sm:$0xff]
    %v2688 = vsel %vm232, %v2672, 0
    %2690 = vmatprep.subr.mxu0 0.0
    %2691 = vmatpush1.msra.mxu0 %v2683
    %2692 = vmatprep.subr.mxu0 0.0
    %2693 = vmatpush1.msra.mxu0 %v2684
    %2694 = vmatprep.subr.mxu0 0.0
    %2695 = vmatpush1.msra.mxu0 %v2685
    %2696 = vmatprep.subr.mxu0 0.0
    %2697 = vmatpush1.msra.mxu0 %v2686
    %2698 = vmatprep.subr.mxu0 0.0
    %2699 = vmatpush1.msra.mxu0 0.0
    %2700 = vmatprep.subr.mxu0 0.0
    %2701 = vmatpush1.msra.mxu0 0.0
    %2702 = vmatprep.subr.mxu0 0.0
    %2703 = vmatpush1.msra.mxu0 0.0
    %2704 = vmatprep.subr.mxu0 0.0
    %2705 = vmatpush1.msra.mxu0 0.0
    %2706 = vmatprep.subr.mxu0 0.0
    %2707 = vmatpush1.msra.mxu0 0.0
    %2708 = vmatprep.subr.mxu0 0.0
    %2709 = vmatpush1.msra.mxu0 0.0
    %2710 = vmatprep.subr.mxu0 0.0
    %2711 = vmatpush1.msra.mxu0 0.0
    %2712 = vmatprep.subr.mxu0 0.0
    %2713 = vmatpush1.msra.mxu0 0.0
    %2714 = vmatprep.subr.mxu0 0.0
    %2715 = vmatpush1.msra.mxu0 0.0
    %2716 = vmatprep.subr.mxu0 0.0
    %2717 = vmatpush1.msra.mxu0 0.0
    %2718 = vmatprep.subr.mxu0 0.0
    %2719 = vmatpush1.msra.mxu0 0.0
    %2720 = vmatprep.subr.mxu0 0.0
    %2721 = vmatpush1.msra.mxu0 0.0
    %2722 = vmatprep.subr.mxu0 0.0
    %2723 = vmatpush1.msra.mxu0 0.0
    %2724 = vmatprep.subr.mxu0 0.0
    %2725 = vmatpush1.msra.mxu0 0.0
    %2726 = vmatprep.subr.mxu0 0.0
    %2727 = vmatpush1.msra.mxu0 0.0
    %2728 = vmatprep.subr.mxu0 0.0
    %2729 = vmatpush1.msra.mxu0 0.0
    %2730 = vmatprep.subr.mxu0 0.0
    %2731 = vmatpush1.msra.mxu0 0.0
    %2732 = vmatprep.subr.mxu0 0.0
    %2733 = vmatpush1.msra.mxu0 0.0
    %2734 = vmatprep.subr.mxu0 0.0
    %2735 = vmatpush1.msra.mxu0 0.0
    %2736 = vmatprep.subr.mxu0 0.0
    %2737 = vmatpush1.msra.mxu0 0.0
    %2738 = vmatprep.subr.mxu0 0.0
    %2739 = vmatpush1.msra.mxu0 0.0
    %2740 = vmatprep.subr.mxu0 0.0
    %2741 = vmatpush1.msra.mxu0 0.0
    %2742 = vmatprep.subr.mxu0 0.0
    %2743 = vmatpush1.msra.mxu0 0.0
    %2744 = vmatprep.subr.mxu0 0.0
    %2745 = vmatpush1.msra.mxu0 0.0
    %2746 = vmatprep.subr.mxu0 0.0
    %2747 = vmatpush1.msra.mxu0 0.0
    %2748 = vmatprep.subr.mxu0 0.0
    %2749 = vmatpush1.msra.mxu0 0.0
    %2750 = vmatprep.subr.mxu0 0.0
    %2751 = vmatpush1.msra.mxu0 0.0
    %2752 = vmatprep.subr.mxu0 0.0
    %2753 = vmatpush1.msra.mxu0 0.0
    %2754 = vmatprep.mubr.f32.mxu0 0.0
    %2755 = vmatmul.mubr.f32.gmra.mrb[0].mxu0 %v2688
    %v2756 = vpop.f32.mrb[0].mxu0
    %v2757 = vadd.f32 0.0, %v2756
    %v2758 = vpop.f32.mrb[0].mxu0
    %2759 = vdwg.mxu0
    %v2760 = vadd.f32 %v2682, %v2757
    %2761 = vrot.lane.b32.xlu0 %v2474, 96
    %v2762 = vpop.permute.xlu0 %2761
    %v2764 = vadd.f32 %v2760, %v2762
    %v2765 = vxor.u32 %v2764, 2147483648
    %v2766 = vmul.f32 %v2765, 1.442695
    %v2767 = vpow.pop %v2766
    %v2768 = vadd.f32 %v2767, 1.0
    %v2769 = vrcp.pop %v2768
    %v2770 = vmul.f32 1.0, %v2769
    %2771 = vrot.lane.b32.xlu0 %v2474, 32
    %v2772 = vpop.permute.xlu0 %2771
    %v2774 = vmul.f32 %v2770, %v2772
    %2776 = vrot.lane.b32.xlu0 %v2774, 64
    %v2777 = vpop.permute.xlu0 %2776
    %v2779 = vadd.f32 %v2760, %v2777
    %v2780 = vtanh.pop %v2779
    %v2781 = vsub.f32 1.0, %v2770
    %2783 = vrot.lane.b32.xlu0 %v2780, 96
    %v2784 = vpop.permute.xlu0 %2783
    %v2786 = vmul.f32 %v2781, %v2784
    %2787 = vrot.lane.b32.xlu0 %v1993, 32
    %v2788 = vpop.permute.xlu0 %2787
    %v2790 = vmul.f32 %v2770, %v2788
    %v2791 = vadd.f32 %v2786, %v2790
    %2793 = vrot.lane.b32.xlu0 %v2397, 32
    %v2794 = vpop.permute.xlu0 %2793
    %v2796 = vmul.f32 %v2791, %v2794
    %2798 = vrot.lane.b32.xlu0 %v2796, 96
    %v2799 = vpop.permute.xlu0 %2798
    %v2801 = vsel %vm232, %v2799, 0.0
    %2802 = vadd.xlane.f32.xlu0 %v2801
    %v2803 = vpop.xlane.xlu0 %2802
    %v2804 = vadd.f32 %v2803, %v2398
    %vm2805 = vcmp.eq.s32.totalorder %v2375, 0
    %2807 = vset.pattern.permute.xlu0 0
    %2808 = vperm.xlu0 %2807, %v2804
    %v2809 = vpop.permute.xlu0 %2808
    %v2811 = vsel %vm2805, %v2809, 0.0
    %2813 = vrot.lane.b32.xlu0 %v2791, 96
    %v2814 = vpop.permute.xlu0 %2813
    %v2815 = vsel %vm232, %v2814, 0
    %2817 = vmatprep.subr.mxu0 0.0
    %2818 = vmatpush1.msra.mxu0 %v2400
    %2819 = vmatprep.subr.mxu0 0.0
    %2820 = vmatpush1.msra.mxu0 %v2401
    %2821 = vmatprep.subr.mxu0 0.0
    %2822 = vmatpush1.msra.mxu0 %v2402
    %2823 = vmatprep.subr.mxu0 0.0
    %2824 = vmatpush1.msra.mxu0 %v2403
    %2825 = vmatprep.subr.mxu0 0.0
    %2826 = vmatpush1.msra.mxu0 0.0
    %2827 = vmatprep.subr.mxu0 0.0
    %2828 = vmatpush1.msra.mxu0 0.0
    %2829 = vmatprep.subr.mxu0 0.0
    %2830 = vmatpush1.msra.mxu0 0.0
    %2831 = vmatprep.subr.mxu0 0.0
    %2832 = vmatpush1.msra.mxu0 0.0
    %2833 = vmatprep.subr.mxu0 0.0
    %2834 = vmatpush1.msra.mxu0 0.0
    %2835 = vmatprep.subr.mxu0 0.0
    %2836 = vmatpush1.msra.mxu0 0.0
    %2837 = vmatprep.subr.mxu0 0.0
    %2838 = vmatpush1.msra.mxu0 0.0
    %2839 = vmatprep.subr.mxu0 0.0
    %2840 = vmatpush1.msra.mxu0 0.0
    %2841 = vmatprep.subr.mxu0 0.0
    %2842 = vmatpush1.msra.mxu0 0.0
    %2843 = vmatprep.subr.mxu0 0.0
    %2844 = vmatpush1.msra.mxu0 0.0
    %2845 = vmatprep.subr.mxu0 0.0
    %2846 = vmatpush1.msra.mxu0 0.0
    %2847 = vmatprep.subr.mxu0 0.0
    %2848 = vmatpush1.msra.mxu0 0.0
    %2849 = vmatprep.subr.mxu0 0.0
    %2850 = vmatpush1.msra.mxu0 0.0
    %2851 = vmatprep.subr.mxu0 0.0
    %2852 = vmatpush1.msra.mxu0 0.0
    %2853 = vmatprep.subr.mxu0 0.0
    %2854 = vmatpush1.msra.mxu0 0.0
    %2855 = vmatprep.subr.mxu0 0.0
    %2856 = vmatpush1.msra.mxu0 0.0
    %2857 = vmatprep.subr.mxu0 0.0
    %2858 = vmatpush1.msra.mxu0 0.0
    %2859 = vmatprep.subr.mxu0 0.0
    %2860 = vmatpush1.msra.mxu0 0.0
    %2861 = vmatprep.subr.mxu0 0.0
    %2862 = vmatpush1.msra.mxu0 0.0
    %2863 = vmatprep.subr.mxu0 0.0
    %2864 = vmatpush1.msra.mxu0 0.0
    %2865 = vmatprep.subr.mxu0 0.0
    %2866 = vmatpush1.msra.mxu0 0.0
    %2867 = vmatprep.subr.mxu0 0.0
    %2868 = vmatpush1.msra.mxu0 0.0
    %2869 = vmatprep.subr.mxu0 0.0
    %2870 = vmatpush1.msra.mxu0 0.0
    %2871 = vmatprep.subr.mxu0 0.0
    %2872 = vmatpush1.msra.mxu0 0.0
    %2873 = vmatprep.subr.mxu0 0.0
    %2874 = vmatpush1.msra.mxu0 0.0
    %2875 = vmatprep.subr.mxu0 0.0
    %2876 = vmatpush1.msra.mxu0 0.0
    %2877 = vmatprep.subr.mxu0 0.0
    %2878 = vmatpush1.msra.mxu0 0.0
    %2879 = vmatprep.subr.mxu0 0.0
    %2880 = vmatpush1.msra.mxu0 0.0
    %2881 = vmatprep.mubr.f32.mxu0 0.0
    %2882 = vmatmul.mubr.f32.gmra.mrb[0].mxu0 %v2815
    %v2883 = vpop.f32.mrb[0].mxu0
    %v2884 = vadd.f32 %v2395, %v2883
    %v2885 = vpop.f32.mrb[0].mxu0
    %2886 = vdwg.mxu0
    %v2888 = vsel %vm232, %v2884, 0
    %2890 = vmatprep.subr.mxu0 0.0
    %2891 = vmatpush1.xpose.msra.mxu0 %v2489
    %2892 = vmatprep.subr.mxu0 0.0
    %2893 = vmatpush1.xpose.msra.mxu0 %v2492
    %2894 = vmatprep.subr.mxu0 0.0
    %2895 = vmatpush1.xpose.msra.mxu0 %v2495
    %2896 = vmatprep.subr.mxu0 0.0
    %2897 = vmatpush1.xpose.msra.mxu0 %v2498
    %2898 = vmatprep.subr.mxu0 0.0
    %2899 = vmatpush1.xpose.msra.mxu0 %v2501
    %2900 = vmatprep.subr.mxu0 0.0
    %2901 = vmatpush1.xpose.msra.mxu0 %v2504
    %2902 = vmatprep.subr.mxu0 0.0
    %2903 = vmatpush1.xpose.msra.mxu0 %v2507
    %2904 = vmatprep.subr.mxu0 0.0
    %2905 = vmatpush1.xpose.msra.mxu0 %v2510
    %2906 = vmatprep.subr.mxu0 0.0
    %2907 = vmatpush1.xpose.msra.mxu0 0.0
    %2908 = vmatprep.subr.mxu0 0.0
    %2909 = vmatpush1.xpose.msra.mxu0 0.0
    %2910 = vmatprep.subr.mxu0 0.0
    %2911 = vmatpush1.xpose.msra.mxu0 0.0
    %2912 = vmatprep.subr.mxu0 0.0
    %2913 = vmatpush1.xpose.msra.mxu0 0.0
    %2914 = vmatprep.subr.mxu0 0.0
    %2915 = vmatpush1.xpose.msra.mxu0 0.0
    %2916 = vmatprep.subr.mxu0 0.0
    %2917 = vmatpush1.xpose.msra.mxu0 0.0
    %2918 = vmatprep.subr.mxu0 0.0
    %2919 = vmatpush1.xpose.msra.mxu0 0.0
    %2920 = vmatprep.subr.mxu0 0.0
    %2921 = vmatpush1.xpose.msra.mxu0 0.0
    %2922 = vmatprep.subr.mxu0 0.0
    %2923 = vmatpush1.xpose.msra.mxu0 0.0
    %2924 = vmatprep.subr.mxu0 0.0
    %2925 = vmatpush1.xpose.msra.mxu0 0.0
    %2926 = vmatprep.subr.mxu0 0.0
    %2927 = vmatpush1.xpose.msra.mxu0 0.0
    %2928 = vmatprep.subr.mxu0 0.0
    %2929 = vmatpush1.xpose.msra.mxu0 0.0
    %2930 = vmatprep.subr.mxu0 0.0
    %2931 = vmatpush1.xpose.msra.mxu0 0.0
    %2932 = vmatprep.subr.mxu0 0.0
    %2933 = vmatpush1.xpose.msra.mxu0 0.0
    %2934 = vmatprep.subr.mxu0 0.0
    %2935 = vmatpush1.xpose.msra.mxu0 0.0
    %2936 = vmatprep.subr.mxu0 0.0
    %2937 = vmatpush1.xpose.msra.mxu0 0.0
    %2938 = vmatprep.subr.mxu0 0.0
    %2939 = vmatpush1.xpose.msra.mxu0 0.0
    %2940 = vmatprep.subr.mxu0 0.0
    %2941 = vmatpush1.xpose.msra.mxu0 0.0
    %2942 = vmatprep.subr.mxu0 0.0
    %2943 = vmatpush1.xpose.msra.mxu0 0.0
    %2944 = vmatprep.subr.mxu0 0.0
    %2945 = vmatpush1.xpose.msra.mxu0 0.0
    %2946 = vmatprep.subr.mxu0 0.0
    %2947 = vmatpush1.xpose.msra.mxu0 0.0
    %2948 = vmatprep.subr.mxu0 0.0
    %2949 = vmatpush1.xpose.msra.mxu0 0.0
    %2950 = vmatprep.subr.mxu0 0.0
    %2951 = vmatpush1.xpose.msra.mxu0 0.0
    %2952 = vmatprep.subr.mxu0 0.0
    %2953 = vmatpush1.xpose.msra.mxu0 0.0
    %2954 = vmatprep.mubr.f32.mxu0 0.0
    %2955 = vmatmul.mubr.f32.gmra.mrb[0].mxu0 %v2888
    %v2956 = vpop.f32.mrb[0].mxu0
    %v2957 = vadd.f32 %v2394, %v2956
    %v2958 = vpop.f32.mrb[0].mxu0
    %2959 = vdwg.mxu0
    %v2960 = vsel %vm2582, %v2957, -inf
    %2961 = vmax.xlane.f32.xlu0 %v2960
    %v2962 = vpop.xlane.xlu0 %2961
    %v2963 = vsub.f32 %v2957, %v2962
    %v2964 = vmul.f32 %v2963, 1.442695
    %v2965 = vpow.pop %v2964
    %v2966 = vsel %vm2582, %v2965, 0.0
    %2967 = vadd.xlane.f32.xlu0 %v2966
    %v2968 = vpop.xlane.xlu0 %2967
    %v2969 = vrcp.pop %v2968
    %v2970 = vmul.f32 %v2965, %v2969
    %v2972 = vsel %vm2582, %v2970, 0
    %2974 = vmatprep.subr.mxu0 0.0
    %2975 = vmatpush1.msra.mxu0 %v2594
    %2976 = vmatprep.subr.mxu0 0.0
    %2977 = vmatpush1.msra.mxu0 %v2595
    %2978 = vmatprep.subr.mxu0 0.0
    %2979 = vmatpush1.msra.mxu0 %v2596
    %2980 = vmatprep.subr.mxu0 0.0
    %2981 = vmatpush1.msra.mxu0 %v2597
    %2982 = vmatprep.subr.mxu0 0.0
    %2983 = vmatpush1.msra.mxu0 %v2598
    %2984 = vmatprep.subr.mxu0 0.0
    %2985 = vmatpush1.msra.mxu0 %v2599
    %2986 = vmatprep.subr.mxu0 0.0
    %2987 = vmatpush1.msra.mxu0 %v2600
    %2988 = vmatprep.subr.mxu0 0.0
    %2989 = vmatpush1.msra.mxu0 %v2601
    %2990 = vmatprep.subr.mxu0 0.0
    %2991 = vmatpush1.msra.mxu0 0.0
    %2992 = vmatprep.subr.mxu0 0.0
    %2993 = vmatpush1.msra.mxu0 0.0
    %2994 = vmatprep.subr.mxu0 0.0
    %2995 = vmatpush1.msra.mxu0 0.0
    %2996 = vmatprep.subr.mxu0 0.0
    %2997 = vmatpush1.msra.mxu0 0.0
    %2998 = vmatprep.subr.mxu0 0.0
    %2999 = vmatpush1.msra.mxu0 0.0
    %3000 = vmatprep.subr.mxu0 0.0
    %3001 = vmatpush1.msra.mxu0 0.0
    %3002 = vmatprep.subr.mxu0 0.0
    %3003 = vmatpush1.msra.mxu0 0.0
    %3004 = vmatprep.subr.mxu0 0.0
    %3005 = vmatpush1.msra.mxu0 0.0
    %3006 = vmatprep.subr.mxu0 0.0
    %3007 = vmatpush1.msra.mxu0 0.0
    %3008 = vmatprep.subr.mxu0 0.0
    %3009 = vmatpush1.msra.mxu0 0.0
    %3010 = vmatprep.subr.mxu0 0.0
    %3011 = vmatpush1.msra.mxu0 0.0
    %3012 = vmatprep.subr.mxu0 0.0
    %3013 = vmatpush1.msra.mxu0 0.0
    %3014 = vmatprep.subr.mxu0 0.0
    %3015 = vmatpush1.msra.mxu0 0.0
    %3016 = vmatprep.subr.mxu0 0.0
    %3017 = vmatpush1.msra.mxu0 0.0
    %3018 = vmatprep.subr.mxu0 0.0
    %3019 = vmatpush1.msra.mxu0 0.0
    %3020 = vmatprep.subr.mxu0 0.0
    %3021 = vmatpush1.msra.mxu0 0.0
    %3022 = vmatprep.subr.mxu0 0.0
    %3023 = vmatpush1.msra.mxu0 0.0
    %3024 = vmatprep.subr.mxu0 0.0
    %3025 = vmatpush1.msra.mxu0 0.0
    %3026 = vmatprep.subr.mxu0 0.0
    %3027 = vmatpush1.msra.mxu0 0.0
    %3028 = vmatprep.subr.mxu0 0.0
    %3029 = vmatpush1.msra.mxu0 0.0
    %3030 = vmatprep.subr.mxu0 0.0
    %3031 = vmatpush1.msra.mxu0 0.0
    %3032 = vmatprep.subr.mxu0 0.0
    %3033 = vmatpush1.msra.mxu0 0.0
    %3034 = vmatprep.subr.mxu0 0.0
    %3035 = vmatpush1.msra.mxu0 0.0
    %3036 = vmatprep.subr.mxu0 0.0
    %3037 = vmatpush1.msra.mxu0 0.0
    %3038 = vmatprep.mubr.f32.mxu0 0.0
    %3039 = vmatmul.mubr.f32.gmra.mrb[0].mxu0 %v2972
    %v3040 = vpop.f32.mrb[0].mxu0
    %v3041 = vadd.f32 0.0, %v3040
    %v3042 = vpop.f32.mrb[0].mxu0
    %3043 = vdwg.mxu0
    %v3044 = vmul.f32 %v2809, %v2396
    %v3045 = vld [vmem:[#allocation4 + $0x8] sm:$0xff]
    %v3046 = vadd.f32 %v3044, %v3045
    %v3048 = vsel %vm232, %v3041, 0
    %3050 = vmatprep.subr.mxu0 0.0
    %3051 = vmatpush1.msra.mxu0 %v2683
    %3052 = vmatprep.subr.mxu0 0.0
    %3053 = vmatpush1.msra.mxu0 %v2684
    %3054 = vmatprep.subr.mxu0 0.0
    %3055 = vmatpush1.msra.mxu0 %v2685
    %3056 = vmatprep.subr.mxu0 0.0
    %3057 = vmatpush1.msra.mxu0 %v2686
    %3058 = vmatprep.subr.mxu0 0.0
    %3059 = vmatpush1.msra.mxu0 0.0
    %3060 = vmatprep.subr.mxu0 0.0
    %3061 = vmatpush1.msra.mxu0 0.0
    %3062 = vmatprep.subr.mxu0 0.0
    %3063 = vmatpush1.msra.mxu0 0.0
    %3064 = vmatprep.subr.mxu0 0.0
    %3065 = vmatpush1.msra.mxu0 0.0
    %3066 = vmatprep.subr.mxu0 0.0
    %3067 = vmatpush1.msra.mxu0 0.0
    %3068 = vmatprep.subr.mxu0 0.0
    %3069 = vmatpush1.msra.mxu0 0.0
    %3070 = vmatprep.subr.mxu0 0.0
    %3071 = vmatpush1.msra.mxu0 0.0
    %3072 = vmatprep.subr.mxu0 0.0
    %3073 = vmatpush1.msra.mxu0 0.0
    %3074 = vmatprep.subr.mxu0 0.0
    %3075 = vmatpush1.msra.mxu0 0.0
    %3076 = vmatprep.subr.mxu0 0.0
    %3077 = vmatpush1.msra.mxu0 0.0
    %3078 = vmatprep.subr.mxu0 0.0
    %3079 = vmatpush1.msra.mxu0 0.0
    %3080 = vmatprep.subr.mxu0 0.0
    %3081 = vmatpush1.msra.mxu0 0.0
    %3082 = vmatprep.subr.mxu0 0.0
    %3083 = vmatpush1.msra.mxu0 0.0
    %3084 = vmatprep.subr.mxu0 0.0
    %3085 = vmatpush1.msra.mxu0 0.0
    %3086 = vmatprep.subr.mxu0 0.0
    %3087 = vmatpush1.msra.mxu0 0.0
    %3088 = vmatprep.subr.mxu0 0.0
    %3089 = vmatpush1.msra.mxu0 0.0
    %3090 = vmatprep.subr.mxu0 0.0
    %3091 = vmatpush1.msra.mxu0 0.0
    %3092 = vmatprep.subr.mxu0 0.0
    %3093 = vmatpush1.msra.mxu0 0.0
    %3094 = vmatprep.subr.mxu0 0.0
    %3095 = vmatpush1.msra.mxu0 0.0
    %3096 = vmatprep.subr.mxu0 0.0
    %3097 = vmatpush1.msra.mxu0 0.0
    %3098 = vmatprep.subr.mxu0 0.0
    %3099 = vmatpush1.msra.mxu0 0.0
    %3100 = vmatprep.subr.mxu0 0.0
    %3101 = vmatpush1.msra.mxu0 0.0
    %3102 = vmatprep.subr.mxu0 0.0
    %3103 = vmatpush1.msra.mxu0 0.0
    %3104 = vmatprep.subr.mxu0 0.0
    %3105 = vmatpush1.msra.mxu0 0.0
    %3106 = vmatprep.subr.mxu0 0.0
    %3107 = vmatpush1.msra.mxu0 0.0
    %3108 = vmatprep.subr.mxu0 0.0
    %3109 = vmatpush1.msra.mxu0 0.0
    %3110 = vmatprep.subr.mxu0 0.0
    %3111 = vmatpush1.msra.mxu0 0.0
    %3112 = vmatprep.subr.mxu0 0.0
    %3113 = vmatpush1.msra.mxu0 0.0
    %3114 = vmatprep.mubr.f32.mxu0 0.0
    %3115 = vmatmul.mubr.f32.gmra.mrb[0].mxu0 %v3048
    %v3116 = vpop.f32.mrb[0].mxu0
    %v3117 = vadd.f32 0.0, %v3116
    %v3118 = vpop.f32.mrb[0].mxu0
    %3119 = vdwg.mxu0
    %v3120 = vadd.f32 %v3046, %v3117
    %3121 = vrot.lane.b32.xlu0 %v2884, 96
    %v3122 = vpop.permute.xlu0 %3121
    %v3124 = vadd.f32 %v3120, %v3122
    %v3125 = vxor.u32 %v3124, 2147483648
    %v3126 = vmul.f32 %v3125, 1.442695
    %v3127 = vpow.pop %v3126
    %v3128 = vadd.f32 %v3127, 1.0
    %v3129 = vrcp.pop %v3128
    %v3130 = vmul.f32 1.0, %v3129
    %3131 = vrot.lane.b32.xlu0 %v2884, 32
    %v3132 = vpop.permute.xlu0 %3131
    %v3134 = vmul.f32 %v3130, %v3132
    %3136 = vrot.lane.b32.xlu0 %v3134, 64
    %v3137 = vpop.permute.xlu0 %3136
    %v3139 = vadd.f32 %v3120, %v3137
    %v3140 = vtanh.pop %v3139
    %v3141 = vsub.f32 1.0, %v3130
    %3143 = vrot.lane.b32.xlu0 %v3140, 96
    %v3144 = vpop.permute.xlu0 %3143
    %v3146 = vmul.f32 %v3141, %v3144
    %v3147 = vmul.f32 %v3130, %v2791
    %v3148 = vadd.f32 %v3146, %v3147
    %v3149 = vmul.f32 %v3148, %v2794
    %3151 = vrot.lane.b32.xlu0 %v3149, 96
    %v3152 = vpop.permute.xlu0 %3151
    %v3154 = vsel %vm232, %v3152, 0.0
    %3155 = vadd.xlane.f32.xlu0 %v3154
    %v3156 = vpop.xlane.xlu0 %3155
    %v3157 = vadd.f32 %v3156, %v2398
    %vm3158 = vcmp.eq.s32.totalorder %v2375, 1
    %3160 = vset.pattern.permute.xlu0 0
    %3161 = vperm.xlu0 %3160, %v3157
    %v3162 = vpop.permute.xlu0 %3161
    %v3164 = vsel %vm3158, %v3162, %v2811
    %3166 = vrot.lane.b32.xlu0 %v3148, 96
    %v3167 = vpop.permute.xlu0 %3166
    %v3168 = vsel %vm232, %v3167, 0
    %3170 = vmatprep.subr.mxu0 0.0
    %3171 = vmatpush1.msra.mxu0 %v2400
    %3172 = vmatprep.subr.mxu0 0.0
    %3173 = vmatpush1.msra.mxu0 %v2401
    %3174 = vmatprep.subr.mxu0 0.0
    %3175 = vmatpush1.msra.mxu0 %v2402
    %3176 = vmatprep.subr.mxu0 0.0
    %3177 = vmatpush1.msra.mxu0 %v2403
    %3178 = vmatprep.subr.mxu0 0.0
    %3179 = vmatpush1.msra.mxu0 0.0
    %3180 = vmatprep.subr.mxu0 0.0
    %3181 = vmatpush1.msra.mxu0 0.0
    %3182 = vmatprep.subr.mxu0 0.0
    %3183 = vmatpush1.msra.mxu0 0.0
    %3184 = vmatprep.subr.mxu0 0.0
    %3185 = vmatpush1.msra.mxu0 0.0
    %3186 = vmatprep.subr.mxu0 0.0
    %3187 = vmatpush1.msra.mxu0 0.0
    %3188 = vmatprep.subr.mxu0 0.0
    %3189 = vmatpush1.msra.mxu0 0.0
    %3190 = vmatprep.subr.mxu0 0.0
    %3191 = vmatpush1.msra.mxu0 0.0
    %3192 = vmatprep.subr.mxu0 0.0
    %3193 = vmatpush1.msra.mxu0 0.0
    %3194 = vmatprep.subr.mxu0 0.0
    %3195 = vmatpush1.msra.mxu0 0.0
    %3196 = vmatprep.subr.mxu0 0.0
    %3197 = vmatpush1.msra.mxu0 0.0
    %3198 = vmatprep.subr.mxu0 0.0
    %3199 = vmatpush1.msra.mxu0 0.0
    %3200 = vmatprep.subr.mxu0 0.0
    %3201 = vmatpush1.msra.mxu0 0.0
    %3202 = vmatprep.subr.mxu0 0.0
    %3203 = vmatpush1.msra.mxu0 0.0
    %3204 = vmatprep.subr.mxu0 0.0
    %3205 = vmatpush1.msra.mxu0 0.0
    %3206 = vmatprep.subr.mxu0 0.0
    %3207 = vmatpush1.msra.mxu0 0.0
    %3208 = vmatprep.subr.mxu0 0.0
    %3209 = vmatpush1.msra.mxu0 0.0
    %3210 = vmatprep.subr.mxu0 0.0
    %3211 = vmatpush1.msra.mxu0 0.0
    %3212 = vmatprep.subr.mxu0 0.0
    %3213 = vmatpush1.msra.mxu0 0.0
    %3214 = vmatprep.subr.mxu0 0.0
    %3215 = vmatpush1.msra.mxu0 0.0
    %3216 = vmatprep.subr.mxu0 0.0
    %3217 = vmatpush1.msra.mxu0 0.0
    %3218 = vmatprep.subr.mxu0 0.0
    %3219 = vmatpush1.msra.mxu0 0.0
    %3220 = vmatprep.subr.mxu0 0.0
    %3221 = vmatpush1.msra.mxu0 0.0
    %3222 = vmatprep.subr.mxu0 0.0
    %3223 = vmatpush1.msra.mxu0 0.0
    %3224 = vmatprep.subr.mxu0 0.0
    %3225 = vmatpush1.msra.mxu0 0.0
    %3226 = vmatprep.subr.mxu0 0.0
    %3227 = vmatpush1.msra.mxu0 0.0
    %3228 = vmatprep.subr.mxu0 0.0
    %3229 = vmatpush1.msra.mxu0 0.0
    %3230 = vmatprep.subr.mxu0 0.0
    %3231 = vmatpush1.msra.mxu0 0.0
    %3232 = vmatprep.subr.mxu0 0.0
    %3233 = vmatpush1.msra.mxu0 0.0
    %3234 = vmatprep.mubr.f32.mxu0 0.0
    %3235 = vmatmul.mubr.f32.gmra.mrb[0].mxu0 %v3168
    %v3236 = vpop.f32.mrb[0].mxu0
    %v3237 = vadd.f32 %v2395, %v3236
    %v3238 = vpop.f32.mrb[0].mxu0
    %3239 = vdwg.mxu0
    %v3241 = vsel %vm232, %v3237, 0
    %3243 = vmatprep.subr.mxu0 0.0
    %3244 = vmatpush1.xpose.msra.mxu0 %v2489
    %3245 = vmatprep.subr.mxu0 0.0
    %3246 = vmatpush1.xpose.msra.mxu0 %v2492
    %3247 = vmatprep.subr.mxu0 0.0
    %3248 = vmatpush1.xpose.msra.mxu0 %v2495
    %3249 = vmatprep.subr.mxu0 0.0
    %3250 = vmatpush1.xpose.msra.mxu0 %v2498
    %3251 = vmatprep.subr.mxu0 0.0
    %3252 = vmatpush1.xpose.msra.mxu0 %v2501
    %3253 = vmatprep.subr.mxu0 0.0
    %3254 = vmatpush1.xpose.msra.mxu0 %v2504
    %3255 = vmatprep.subr.mxu0 0.0
    %3256 = vmatpush1.xpose.msra.mxu0 %v2507
    %3257 = vmatprep.subr.mxu0 0.0
    %3258 = vmatpush1.xpose.msra.mxu0 %v2510
    %3259 = vmatprep.subr.mxu0 0.0
    %3260 = vmatpush1.xpose.msra.mxu0 0.0
    %3261 = vmatprep.subr.mxu0 0.0
    %3262 = vmatpush1.xpose.msra.mxu0 0.0
    %3263 = vmatprep.subr.mxu0 0.0
    %3264 = vmatpush1.xpose.msra.mxu0 0.0
    %3265 = vmatprep.subr.mxu0 0.0
    %3266 = vmatpush1.xpose.msra.mxu0 0.0
    %3267 = vmatprep.subr.mxu0 0.0
    %3268 = vmatpush1.xpose.msra.mxu0 0.0
    %3269 = vmatprep.subr.mxu0 0.0
    %3270 = vmatpush1.xpose.msra.mxu0 0.0
    %3271 = vmatprep.subr.mxu0 0.0
    %3272 = vmatpush1.xpose.msra.mxu0 0.0
    %3273 = vmatprep.subr.mxu0 0.0
    %3274 = vmatpush1.xpose.msra.mxu0 0.0
    %3275 = vmatprep.subr.mxu0 0.0
    %3276 = vmatpush1.xpose.msra.mxu0 0.0
    %3277 = vmatprep.subr.mxu0 0.0
    %3278 = vmatpush1.xpose.msra.mxu0 0.0
    %3279 = vmatprep.subr.mxu0 0.0
    %3280 = vmatpush1.xpose.msra.mxu0 0.0
    %3281 = vmatprep.subr.mxu0 0.0
    %3282 = vmatpush1.xpose.msra.mxu0 0.0
    %3283 = vmatprep.subr.mxu0 0.0
    %3284 = vmatpush1.xpose.msra.mxu0 0.0
    %3285 = vmatprep.subr.mxu0 0.0
    %3286 = vmatpush1.xpose.msra.mxu0 0.0
    %3287 = vmatprep.subr.mxu0 0.0
    %3288 = vmatpush1.xpose.msra.mxu0 0.0
    %3289 = vmatprep.subr.mxu0 0.0
    %3290 = vmatpush1.xpose.msra.mxu0 0.0
    %3291 = vmatprep.subr.mxu0 0.0
    %3292 = vmatpush1.xpose.msra.mxu0 0.0
    %3293 = vmatprep.subr.mxu0 0.0
    %3294 = vmatpush1.xpose.msra.mxu0 0.0
    %3295 = vmatprep.subr.mxu0 0.0
    %3296 = vmatpush1.xpose.msra.mxu0 0.0
    %3297 = vmatprep.subr.mxu0 0.0
    %3298 = vmatpush1.xpose.msra.mxu0 0.0
    %3299 = vmatprep.subr.mxu0 0.0
    %3300 = vmatpush1.xpose.msra.mxu0 0.0
    %3301 = vmatprep.subr.mxu0 0.0
    %3302 = vmatpush1.xpose.msra.mxu0 0.0
    %3303 = vmatprep.subr.mxu0 0.0
    %3304 = vmatpush1.xpose.msra.mxu0 0.0
    %3305 = vmatprep.subr.mxu0 0.0
    %3306 = vmatpush1.xpose.msra.mxu0 0.0
    %3307 = vmatprep.mubr.f32.mxu0 0.0
    %3308 = vmatmul.mubr.f32.gmra.mrb[0].mxu0 %v3241
    %v3309 = vpop.f32.mrb[0].mxu0
    %v3310 = vadd.f32 %v2394, %v3309
    %v3311 = vpop.f32.mrb[0].mxu0
    %3312 = vdwg.mxu0
    %v3313 = vsel %vm2582, %v3310, -inf
    %3314 = vmax.xlane.f32.xlu0 %v3313
    %v3315 = vpop.xlane.xlu0 %3314
    %v3316 = vsub.f32 %v3310, %v3315
    %v3317 = vmul.f32 %v3316, 1.442695
    %v3318 = vpow.pop %v3317
    %v3319 = vsel %vm2582, %v3318, 0.0
    %3320 = vadd.xlane.f32.xlu0 %v3319
    %v3321 = vpop.xlane.xlu0 %3320
    %v3322 = vrcp.pop %v3321
    %v3323 = vmul.f32 %v3318, %v3322
    %v3325 = vsel %vm2582, %v3323, 0
    %3327 = vmatprep.subr.mxu0 0.0
    %3328 = vmatpush1.msra.mxu0 %v2594
    %3329 = vmatprep.subr.mxu0 0.0
    %3330 = vmatpush1.msra.mxu0 %v2595
    %3331 = vmatprep.subr.mxu0 0.0
    %3332 = vmatpush1.msra.mxu0 %v2596
    %3333 = vmatprep.subr.mxu0 0.0
    %3334 = vmatpush1.msra.mxu0 %v2597
    %3335 = vmatprep.subr.mxu0 0.0
    %3336 = vmatpush1.msra.mxu0 %v2598
    %3337 = vmatprep.subr.mxu0 0.0
    %3338 = vmatpush1.msra.mxu0 %v2599
    %3339 = vmatprep.subr.mxu0 0.0
    %3340 = vmatpush1.msra.mxu0 %v2600
    %3341 = vmatprep.subr.mxu0 0.0
    %3342 = vmatpush1.msra.mxu0 %v2601
    %3343 = vmatprep.subr.mxu0 0.0
    %3344 = vmatpush1.msra.mxu0 0.0
    %3345 = vmatprep.subr.mxu0 0.0
    %3346 = vmatpush1.msra.mxu0 0.0
    %3347 = vmatprep.subr.mxu0 0.0
    %3348 = vmatpush1.msra.mxu0 0.0
    %3349 = vmatprep.subr.mxu0 0.0
    %3350 = vmatpush1.msra.mxu0 0.0
    %3351 = vmatprep.subr.mxu0 0.0
    %3352 = vmatpush1.msra.mxu0 0.0
    %3353 = vmatprep.subr.mxu0 0.0
    %3354 = vmatpush1.msra.mxu0 0.0
    %3355 = vmatprep.subr.mxu0 0.0
    %3356 = vmatpush1.msra.mxu0 0.0
    %3357 = vmatprep.subr.mxu0 0.0
    %3358 = vmatpush1.msra.mxu0 0.0
    %3359 = vmatprep.subr.mxu0 0.0
    %3360 = vmatpush1.msra.mxu0 0.0
    %3361 = vmatprep.subr.mxu0 0.0
    %3362 = vmatpush1.msra.mxu0 0.0
    %3363 = vmatprep.subr.mxu0 0.0
    %3364 = vmatpush1.msra.mxu0 0.0
    %3365 = vmatprep.subr.mxu0 0.0
    %3366 = vmatpush1.msra.mxu0 0.0
    %3367 = vmatprep.subr.mxu0 0.0
    %3368 = vmatpush1.msra.mxu0 0.0
    %3369 = vmatprep.subr.mxu0 0.0
    %3370 = vmatpush1.msra.mxu0 0.0
    %3371 = vmatprep.subr.mxu0 0.0
    %3372 = vmatpush1.msra.mxu0 0.0
    %3373 = vmatprep.subr.mxu0 0.0
    %3374 = vmatpush1.msra.mxu0 0.0
    %3375 = vmatprep.subr.mxu0 0.0
    %3376 = vmatpush1.msra.mxu0 0.0
    %3377 = vmatprep.subr.mxu0 0.0
    %3378 = vmatpush1.msra.mxu0 0.0
    %3379 = vmatprep.subr.mxu0 0.0
    %3380 = vmatpush1.msra.mxu0 0.0
    %3381 = vmatprep.subr.mxu0 0.0
    %3382 = vmatpush1.msra.mxu0 0.0
    %3383 = vmatprep.subr.mxu0 0.0
    %3384 = vmatpush1.msra.mxu0 0.0
    %3385 = vmatprep.subr.mxu0 0.0
    %3386 = vmatpush1.msra.mxu0 0.0
    %3387 = vmatprep.subr.mxu0 0.0
    %3388 = vmatpush1.msra.mxu0 0.0
    %3389 = vmatprep.subr.mxu0 0.0
    %3390 = vmatpush1.msra.mxu0 0.0
    %3391 = vmatprep.mubr.f32.mxu0 0.0
    %3392 = vmatmul.mubr.f32.gmra.mrb[0].mxu0 %v3325
    %v3393 = vpop.f32.mrb[0].mxu0
    %v3394 = vadd.f32 0.0, %v3393
    %v3395 = vpop.f32.mrb[0].mxu0
    %3396 = vdwg.mxu0
    %v3397 = vmul.f32 %v3162, %v2396
    %v3398 = vld [vmem:[#allocation4 + $0x10] sm:$0xff]
    %v3399 = vadd.f32 %v3397, %v3398
    %v3401 = vsel %vm232, %v3394, 0
    %3403 = vmatprep.subr.mxu0 0.0
    %3404 = vmatpush1.msra.mxu0 %v2683
    %3405 = vmatprep.subr.mxu0 0.0
    %3406 = vmatpush1.msra.mxu0 %v2684
    %3407 = vmatprep.subr.mxu0 0.0
    %3408 = vmatpush1.msra.mxu0 %v2685
    %3409 = vmatprep.subr.mxu0 0.0
    %3410 = vmatpush1.msra.mxu0 %v2686
    %3411 = vmatprep.subr.mxu0 0.0
    %3412 = vmatpush1.msra.mxu0 0.0
    %3413 = vmatprep.subr.mxu0 0.0
    %3414 = vmatpush1.msra.mxu0 0.0
    %3415 = vmatprep.subr.mxu0 0.0
    %3416 = vmatpush1.msra.mxu0 0.0
    %3417 = vmatprep.subr.mxu0 0.0
    %3418 = vmatpush1.msra.mxu0 0.0
    %3419 = vmatprep.subr.mxu0 0.0
    %3420 = vmatpush1.msra.mxu0 0.0
    %3421 = vmatprep.subr.mxu0 0.0
    %3422 = vmatpush1.msra.mxu0 0.0
    %3423 = vmatprep.subr.mxu0 0.0
    %3424 = vmatpush1.msra.mxu0 0.0
    %3425 = vmatprep.subr.mxu0 0.0
    %3426 = vmatpush1.msra.mxu0 0.0
    %3427 = vmatprep.subr.mxu0 0.0
    %3428 = vmatpush1.msra.mxu0 0.0
    %3429 = vmatprep.subr.mxu0 0.0
    %3430 = vmatpush1.msra.mxu0 0.0
    %3431 = vmatprep.subr.mxu0 0.0
    %3432 = vmatpush1.msra.mxu0 0.0
    %3433 = vmatprep.subr.mxu0 0.0
    %3434 = vmatpush1.msra.mxu0 0.0
    %3435 = vmatprep.subr.mxu0 0.0
    %3436 = vmatpush1.msra.mxu0 0.0
    %3437 = vmatprep.subr.mxu0 0.0
    %3438 = vmatpush1.msra.mxu0 0.0
    %3439 = vmatprep.subr.mxu0 0.0
    %3440 = vmatpush1.msra.mxu0 0.0
    %3441 = vmatprep.subr.mxu0 0.0
    %3442 = vmatpush1.msra.mxu0 0.0
    %3443 = vmatprep.subr.mxu0 0.0
    %3444 = vmatpush1.msra.mxu0 0.0
    %3445 = vmatprep.subr.mxu0 0.0
    %3446 = vmatpush1.msra.mxu0 0.0
    %3447 = vmatprep.subr.mxu0 0.0
    %3448 = vmatpush1.msra.mxu0 0.0
    %3449 = vmatprep.subr.mxu0 0.0
    %3450 = vmatpush1.msra.mxu0 0.0
    %3451 = vmatprep.subr.mxu0 0.0
    %3452 = vmatpush1.msra.mxu0 0.0
    %3453 = vmatprep.subr.mxu0 0.0
    %3454 = vmatpush1.msra.mxu0 0.0
    %3455 = vmatprep.subr.mxu0 0.0
    %3456 = vmatpush1.msra.mxu0 0.0
    %3457 = vmatprep.subr.mxu0 0.0
    %3458 = vmatpush1.msra.mxu0 0.0
    %3459 = vmatprep.subr.mxu0 0.0
    %3460 = vmatpush1.msra.mxu0 0.0
    %3461 = vmatprep.subr.mxu0 0.0
    %3462 = vmatpush1.msra.mxu0 0.0
    %3463 = vmatprep.subr.mxu0 0.0
    %3464 = vmatpush1.msra.mxu0 0.0
    %3465 = vmatprep.subr.mxu0 0.0
    %3466 = vmatpush1.msra.mxu0 0.0
    %3467 = vmatprep.mubr.f32.mxu0 0.0
    %3468 = vmatmul.mubr.f32.gmra.mrb[0].mxu0 %v3401
    %v3469 = vpop.f32.mrb[0].mxu0
    %v3470 = vadd.f32 0.0, %v3469
    %v3471 = vpop.f32.mrb[0].mxu0
    %3472 = vdwg.mxu0
    %v3473 = vadd.f32 %v3399, %v3470
    %3474 = vrot.lane.b32.xlu0 %v3237, 96
    %v3475 = vpop.permute.xlu0 %3474
    %v3477 = vadd.f32 %v3473, %v3475
    %v3478 = vxor.u32 %v3477, 2147483648
    %v3479 = vmul.f32 %v3478, 1.442695
    %v3480 = vpow.pop %v3479
    %v3481 = vadd.f32 %v3480, 1.0
    %v3482 = vrcp.pop %v3481
    %v3483 = vmul.f32 1.0, %v3482
    %3484 = vrot.lane.b32.xlu0 %v3237, 32
    %v3485 = vpop.permute.xlu0 %3484
    %v3487 = vmul.f32 %v3483, %v3485
    %3489 = vrot.lane.b32.xlu0 %v3487, 64
    %v3490 = vpop.permute.xlu0 %3489
    %v3492 = vadd.f32 %v3473, %v3490
    %v3493 = vtanh.pop %v3492
    %v3494 = vsub.f32 1.0, %v3483
    %3496 = vrot.lane.b32.xlu0 %v3493, 96
    %v3497 = vpop.permute.xlu0 %3496
    %v3499 = vmul.f32 %v3494, %v3497
    %v3500 = vmul.f32 %v3483, %v3148
    %v3501 = vadd.f32 %v3499, %v3500
    %v3502 = vmul.f32 %v3501, %v2794
    %3504 = vrot.lane.b32.xlu0 %v3502, 96
    %v3505 = vpop.permute.xlu0 %3504
    %v3507 = vsel %vm232, %v3505, 0.0
    %3508 = vadd.xlane.f32.xlu0 %v3507
    %v3509 = vpop.xlane.xlu0 %3508
    %v3510 = vadd.f32 %v3509, %v2398
    %vm3511 = vcmp.eq.s32.totalorder %v2375, 2
    %3513 = vset.pattern.permute.xlu0 0
    %3514 = vperm.xlu0 %3513, %v3510
    %v3515 = vpop.permute.xlu0 %3514
    %v3517 = vsel %vm3511, %v3515, %v3164
    %3519 = vrot.lane.b32.xlu0 %v3501, 96
    %v3520 = vpop.permute.xlu0 %3519
    %v3521 = vsel %vm232, %v3520, 0
    %3523 = vmatprep.subr.mxu0 0.0
    %3524 = vmatpush1.msra.mxu0 %v2400
    %3525 = vmatprep.subr.mxu0 0.0
    %3526 = vmatpush1.msra.mxu0 %v2401
    %3527 = vmatprep.subr.mxu0 0.0
    %3528 = vmatpush1.msra.mxu0 %v2402
    %3529 = vmatprep.subr.mxu0 0.0
    %3530 = vmatpush1.msra.mxu0 %v2403
    %3531 = vmatprep.subr.mxu0 0.0
    %3532 = vmatpush1.msra.mxu0 0.0
    %3533 = vmatprep.subr.mxu0 0.0
    %3534 = vmatpush1.msra.mxu0 0.0
    %3535 = vmatprep.subr.mxu0 0.0
    %3536 = vmatpush1.msra.mxu0 0.0
    %3537 = vmatprep.subr.mxu0 0.0
    %3538 = vmatpush1.msra.mxu0 0.0
    %3539 = vmatprep.subr.mxu0 0.0
    %3540 = vmatpush1.msra.mxu0 0.0
    %3541 = vmatprep.subr.mxu0 0.0
    %3542 = vmatpush1.msra.mxu0 0.0
    %3543 = vmatprep.subr.mxu0 0.0
    %3544 = vmatpush1.msra.mxu0 0.0
    %3545 = vmatprep.subr.mxu0 0.0
    %3546 = vmatpush1.msra.mxu0 0.0
    %3547 = vmatprep.subr.mxu0 0.0
    %3548 = vmatpush1.msra.mxu0 0.0
    %3549 = vmatprep.subr.mxu0 0.0
    %3550 = vmatpush1.msra.mxu0 0.0
    %3551 = vmatprep.subr.mxu0 0.0
    %3552 = vmatpush1.msra.mxu0 0.0
    %3553 = vmatprep.subr.mxu0 0.0
    %3554 = vmatpush1.msra.mxu0 0.0
    %3555 = vmatprep.subr.mxu0 0.0
    %3556 = vmatpush1.msra.mxu0 0.0
    %3557 = vmatprep.subr.mxu0 0.0
    %3558 = vmatpush1.msra.mxu0 0.0
    %3559 = vmatprep.subr.mxu0 0.0
    %3560 = vmatpush1.msra.mxu0 0.0
    %3561 = vmatprep.subr.mxu0 0.0
    %3562 = vmatpush1.msra.mxu0 0.0
    %3563 = vmatprep.subr.mxu0 0.0
    %3564 = vmatpush1.msra.mxu0 0.0
    %3565 = vmatprep.subr.mxu0 0.0
    %3566 = vmatpush1.msra.mxu0 0.0
    %3567 = vmatprep.subr.mxu0 0.0
    %3568 = vmatpush1.msra.mxu0 0.0
    %3569 = vmatprep.subr.mxu0 0.0
    %3570 = vmatpush1.msra.mxu0 0.0
    %3571 = vmatprep.subr.mxu0 0.0
    %3572 = vmatpush1.msra.mxu0 0.0
    %3573 = vmatprep.subr.mxu0 0.0
    %3574 = vmatpush1.msra.mxu0 0.0
    %3575 = vmatprep.subr.mxu0 0.0
    %3576 = vmatpush1.msra.mxu0 0.0
    %3577 = vmatprep.subr.mxu0 0.0
    %3578 = vmatpush1.msra.mxu0 0.0
    %3579 = vmatprep.subr.mxu0 0.0
    %3580 = vmatpush1.msra.mxu0 0.0
    %3581 = vmatprep.subr.mxu0 0.0
    %3582 = vmatpush1.msra.mxu0 0.0
    %3583 = vmatprep.subr.mxu0 0.0
    %3584 = vmatpush1.msra.mxu0 0.0
    %3585 = vmatprep.subr.mxu0 0.0
    %3586 = vmatpush1.msra.mxu0 0.0
    %3587 = vmatprep.mubr.f32.mxu0 0.0
    %3588 = vmatmul.mubr.f32.gmra.mrb[0].mxu0 %v3521
    %v3589 = vpop.f32.mrb[0].mxu0
    %v3590 = vadd.f32 %v2395, %v3589
    %v3591 = vpop.f32.mrb[0].mxu0
    %3592 = vdwg.mxu0
    %v3594 = vsel %vm232, %v3590, 0
    %3596 = vmatprep.subr.mxu0 0.0
    %3597 = vmatpush1.xpose.msra.mxu0 %v2489
    %3598 = vmatprep.subr.mxu0 0.0
    %3599 = vmatpush1.xpose.msra.mxu0 %v2492
    %3600 = vmatprep.subr.mxu0 0.0
    %3601 = vmatpush1.xpose.msra.mxu0 %v2495
    %3602 = vmatprep.subr.mxu0 0.0
    %3603 = vmatpush1.xpose.msra.mxu0 %v2498
    %3604 = vmatprep.subr.mxu0 0.0
    %3605 = vmatpush1.xpose.msra.mxu0 %v2501
    %3606 = vmatprep.subr.mxu0 0.0
    %3607 = vmatpush1.xpose.msra.mxu0 %v2504
    %3608 = vmatprep.subr.mxu0 0.0
    %3609 = vmatpush1.xpose.msra.mxu0 %v2507
    %3610 = vmatprep.subr.mxu0 0.0
    %3611 = vmatpush1.xpose.msra.mxu0 %v2510
    %3612 = vmatprep.subr.mxu0 0.0
    %3613 = vmatpush1.xpose.msra.mxu0 0.0
    %3614 = vmatprep.subr.mxu0 0.0
    %3615 = vmatpush1.xpose.msra.mxu0 0.0
    %3616 = vmatprep.subr.mxu0 0.0
    %3617 = vmatpush1.xpose.msra.mxu0 0.0
    %3618 = vmatprep.subr.mxu0 0.0
    %3619 = vmatpush1.xpose.msra.mxu0 0.0
    %3620 = vmatprep.subr.mxu0 0.0
    %3621 = vmatpush1.xpose.msra.mxu0 0.0
    %3622 = vmatprep.subr.mxu0 0.0
    %3623 = vmatpush1.xpose.msra.mxu0 0.0
    %3624 = vmatprep.subr.mxu0 0.0
    %3625 = vmatpush1.xpose.msra.mxu0 0.0
    %3626 = vmatprep.subr.mxu0 0.0
    %3627 = vmatpush1.xpose.msra.mxu0 0.0
    %3628 = vmatprep.subr.mxu0 0.0
    %3629 = vmatpush1.xpose.msra.mxu0 0.0
    %3630 = vmatprep.subr.mxu0 0.0
    %3631 = vmatpush1.xpose.msra.mxu0 0.0
    %3632 = vmatprep.subr.mxu0 0.0
    %3633 = vmatpush1.xpose.msra.mxu0 0.0
    %3634 = vmatprep.subr.mxu0 0.0
    %3635 = vmatpush1.xpose.msra.mxu0 0.0
    %3636 = vmatprep.subr.mxu0 0.0
    %3637 = vmatpush1.xpose.msra.mxu0 0.0
    %3638 = vmatprep.subr.mxu0 0.0
    %3639 = vmatpush1.xpose.msra.mxu0 0.0
    %3640 = vmatprep.subr.mxu0 0.0
    %3641 = vmatpush1.xpose.msra.mxu0 0.0
    %3642 = vmatprep.subr.mxu0 0.0
    %3643 = vmatpush1.xpose.msra.mxu0 0.0
    %3644 = vmatprep.subr.mxu0 0.0
    %3645 = vmatpush1.xpose.msra.mxu0 0.0
    %3646 = vmatprep.subr.mxu0 0.0
    %3647 = vmatpush1.xpose.msra.mxu0 0.0
    %3648 = vmatprep.subr.mxu0 0.0
    %3649 = vmatpush1.xpose.msra.mxu0 0.0
    %3650 = vmatprep.subr.mxu0 0.0
    %3651 = vmatpush1.xpose.msra.mxu0 0.0
    %3652 = vmatprep.subr.mxu0 0.0
    %3653 = vmatpush1.xpose.msra.mxu0 0.0
    %3654 = vmatprep.subr.mxu0 0.0
    %3655 = vmatpush1.xpose.msra.mxu0 0.0
    %3656 = vmatprep.subr.mxu0 0.0
    %3657 = vmatpush1.xpose.msra.mxu0 0.0
    %3658 = vmatprep.subr.mxu0 0.0
    %3659 = vmatpush1.xpose.msra.mxu0 0.0
    %3660 = vmatprep.mubr.f32.mxu0 0.0
    %3661 = vmatmul.mubr.f32.gmra.mrb[0].mxu0 %v3594
    %v3662 = vpop.f32.mrb[0].mxu0
    %v3663 = vadd.f32 %v2394, %v3662
    %v3664 = vpop.f32.mrb[0].mxu0
    %3665 = vdwg.mxu0
    %v3666 = vsel %vm2582, %v3663, -inf
    %3667 = vmax.xlane.f32.xlu0 %v3666
    %v3668 = vpop.xlane.xlu0 %3667
    %v3669 = vsub.f32 %v3663, %v3668
    %v3670 = vmul.f32 %v3669, 1.442695
    %v3671 = vpow.pop %v3670
    %v3672 = vsel %vm2582, %v3671, 0.0
    %3673 = vadd.xlane.f32.xlu0 %v3672
    %v3674 = vpop.xlane.xlu0 %3673
    %v3675 = vrcp.pop %v3674
    %v3676 = vmul.f32 %v3671, %v3675
    %v3678 = vsel %vm2582, %v3676, 0
    %3680 = vmatprep.subr.mxu0 0.0
    %3681 = vmatpush1.msra.mxu0 %v2594
    %3682 = vmatprep.subr.mxu0 0.0
    %3683 = vmatpush1.msra.mxu0 %v2595
    %3684 = vmatprep.subr.mxu0 0.0
    %3685 = vmatpush1.msra.mxu0 %v2596
    %3686 = vmatprep.subr.mxu0 0.0
    %3687 = vmatpush1.msra.mxu0 %v2597
    %3688 = vmatprep.subr.mxu0 0.0
    %3689 = vmatpush1.msra.mxu0 %v2598
    %3690 = vmatprep.subr.mxu0 0.0
    %3691 = vmatpush1.msra.mxu0 %v2599
    %3692 = vmatprep.subr.mxu0 0.0
    %3693 = vmatpush1.msra.mxu0 %v2600
    %3694 = vmatprep.subr.mxu0 0.0
    %3695 = vmatpush1.msra.mxu0 %v2601
    %3696 = vmatprep.subr.mxu0 0.0
    %3697 = vmatpush1.msra.mxu0 0.0
    %3698 = vmatprep.subr.mxu0 0.0
    %3699 = vmatpush1.msra.mxu0 0.0
    %3700 = vmatprep.subr.mxu0 0.0
    %3701 = vmatpush1.msra.mxu0 0.0
    %3702 = vmatprep.subr.mxu0 0.0
    %3703 = vmatpush1.msra.mxu0 0.0
    %3704 = vmatprep.subr.mxu0 0.0
    %3705 = vmatpush1.msra.mxu0 0.0
    %3706 = vmatprep.subr.mxu0 0.0
    %3707 = vmatpush1.msra.mxu0 0.0
    %3708 = vmatprep.subr.mxu0 0.0
    %3709 = vmatpush1.msra.mxu0 0.0
    %3710 = vmatprep.subr.mxu0 0.0
    %3711 = vmatpush1.msra.mxu0 0.0
    %3712 = vmatprep.subr.mxu0 0.0
    %3713 = vmatpush1.msra.mxu0 0.0
    %3714 = vmatprep.subr.mxu0 0.0
    %3715 = vmatpush1.msra.mxu0 0.0
    %3716 = vmatprep.subr.mxu0 0.0
    %3717 = vmatpush1.msra.mxu0 0.0
    %3718 = vmatprep.subr.mxu0 0.0
    %3719 = vmatpush1.msra.mxu0 0.0
    %3720 = vmatprep.subr.mxu0 0.0
    %3721 = vmatpush1.msra.mxu0 0.0
    %3722 = vmatprep.subr.mxu0 0.0
    %3723 = vmatpush1.msra.mxu0 0.0
    %3724 = vmatprep.subr.mxu0 0.0
    %3725 = vmatpush1.msra.mxu0 0.0
    %3726 = vmatprep.subr.mxu0 0.0
    %3727 = vmatpush1.msra.mxu0 0.0
    %3728 = vmatprep.subr.mxu0 0.0
    %3729 = vmatpush1.msra.mxu0 0.0
    %3730 = vmatprep.subr.mxu0 0.0
    %3731 = vmatpush1.msra.mxu0 0.0
    %3732 = vmatprep.subr.mxu0 0.0
    %3733 = vmatpush1.msra.mxu0 0.0
    %3734 = vmatprep.subr.mxu0 0.0
    %3735 = vmatpush1.msra.mxu0 0.0
    %3736 = vmatprep.subr.mxu0 0.0
    %3737 = vmatpush1.msra.mxu0 0.0
    %3738 = vmatprep.subr.mxu0 0.0
    %3739 = vmatpush1.msra.mxu0 0.0
    %3740 = vmatprep.subr.mxu0 0.0
    %3741 = vmatpush1.msra.mxu0 0.0
    %3742 = vmatprep.subr.mxu0 0.0
    %3743 = vmatpush1.msra.mxu0 0.0
    %3744 = vmatprep.mubr.f32.mxu0 0.0
    %3745 = vmatmul.mubr.f32.gmra.mrb[0].mxu0 %v3678
    %v3746 = vpop.f32.mrb[0].mxu0
    %v3747 = vadd.f32 0.0, %v3746
    %v3748 = vpop.f32.mrb[0].mxu0
    %3749 = vdwg.mxu0
    %v3750 = vmul.f32 %v3515, %v2396
    %v3751 = vld [vmem:[#allocation4 + $0x18] sm:$0xff]
    %v3752 = vadd.f32 %v3750, %v3751
    %v3754 = vsel %vm232, %v3747, 0
    %3756 = vmatprep.subr.mxu0 0.0
    %3757 = vmatpush1.msra.mxu0 %v2683
    %3758 = vmatprep.subr.mxu0 0.0
    %3759 = vmatpush1.msra.mxu0 %v2684
    %3760 = vmatprep.subr.mxu0 0.0
    %3761 = vmatpush1.msra.mxu0 %v2685
    %3762 = vmatprep.subr.mxu0 0.0
    %3763 = vmatpush1.msra.mxu0 %v2686
    %3764 = vmatprep.subr.mxu0 0.0
    %3765 = vmatpush1.msra.mxu0 0.0
    %3766 = vmatprep.subr.mxu0 0.0
    %3767 = vmatpush1.msra.mxu0 0.0
    %3768 = vmatprep.subr.mxu0 0.0
    %3769 = vmatpush1.msra.mxu0 0.0
    %3770 = vmatprep.subr.mxu0 0.0
    %3771 = vmatpush1.msra.mxu0 0.0
    %3772 = vmatprep.subr.mxu0 0.0
    %3773 = vmatpush1.msra.mxu0 0.0
    %3774 = vmatprep.subr.mxu0 0.0
    %3775 = vmatpush1.msra.mxu0 0.0
    %3776 = vmatprep.subr.mxu0 0.0
    %3777 = vmatpush1.msra.mxu0 0.0
    %3778 = vmatprep.subr.mxu0 0.0
    %3779 = vmatpush1.msra.mxu0 0.0
    %3780 = vmatprep.subr.mxu0 0.0
    %3781 = vmatpush1.msra.mxu0 0.0
    %3782 = vmatprep.subr.mxu0 0.0
    %3783 = vmatpush1.msra.mxu0 0.0
    %3784 = vmatprep.subr.mxu0 0.0
    %3785 = vmatpush1.msra.mxu0 0.0
    %3786 = vmatprep.subr.mxu0 0.0
    %3787 = vmatpush1.msra.mxu0 0.0
    %3788 = vmatprep.subr.mxu0 0.0
    %3789 = vmatpush1.msra.mxu0 0.0
    %3790 = vmatprep.subr.mxu0 0.0
    %3791 = vmatpush1.msra.mxu0 0.0
    %3792 = vmatprep.subr.mxu0 0.0
    %3793 = vmatpush1.msra.mxu0 0.0
    %3794 = vmatprep.subr.mxu0 0.0
    %3795 = vmatpush1.msra.mxu0 0.0
    %3796 = vmatprep.subr.mxu0 0.0
    %3797 = vmatpush1.msra.mxu0 0.0
    %3798 = vmatprep.subr.mxu0 0.0
    %3799 = vmatpush1.msra.mxu0 0.0
    %3800 = vmatprep.subr.mxu0 0.0
    %3801 = vmatpush1.msra.mxu0 0.0
    %3802 = vmatprep.subr.mxu0 0.0
    %3803 = vmatpush1.msra.mxu0 0.0
    %3804 = vmatprep.subr.mxu0 0.0
    %3805 = vmatpush1.msra.mxu0 0.0
    %3806 = vmatprep.subr.mxu0 0.0
    %3807 = vmatpush1.msra.mxu0 0.0
    %3808 = vmatprep.subr.mxu0 0.0
    %3809 = vmatpush1.msra.mxu0 0.0
    %3810 = vmatprep.subr.mxu0 0.0
    %3811 = vmatpush1.msra.mxu0 0.0
    %3812 = vmatprep.subr.mxu0 0.0
    %3813 = vmatpush1.msra.mxu0 0.0
    %3814 = vmatprep.subr.mxu0 0.0
    %3815 = vmatpush1.msra.mxu0 0.0
    %3816 = vmatprep.subr.mxu0 0.0
    %3817 = vmatpush1.msra.mxu0 0.0
    %3818 = vmatprep.subr.mxu0 0.0
    %3819 = vmatpush1.msra.mxu0 0.0
    %3820 = vmatprep.mubr.f32.mxu0 0.0
    %3821 = vmatmul.mubr.f32.gmra.mrb[0].mxu0 %v3754
    %v3822 = vpop.f32.mrb[0].mxu0
    %v3823 = vadd.f32 0.0, %v3822
    %v3824 = vpop.f32.mrb[0].mxu0
    %3825 = vdwg.mxu0
    %v3826 = vadd.f32 %v3752, %v3823
    %3827 = vrot.lane.b32.xlu0 %v3590, 96
    %v3828 = vpop.permute.xlu0 %3827
    %v3830 = vadd.f32 %v3826, %v3828
    %v3831 = vxor.u32 %v3830, 2147483648
    %v3832 = vmul.f32 %v3831, 1.442695
    %v3833 = vpow.pop %v3832
    %v3834 = vadd.f32 %v3833, 1.0
    %v3835 = vrcp.pop %v3834
    %v3836 = vmul.f32 1.0, %v3835
    %3837 = vrot.lane.b32.xlu0 %v3590, 32
    %v3838 = vpop.permute.xlu0 %3837
    %v3840 = vmul.f32 %v3836, %v3838
    %3842 = vrot.lane.b32.xlu0 %v3840, 64
    %v3843 = vpop.permute.xlu0 %3842
    %v3845 = vadd.f32 %v3826, %v3843
    %v3846 = vtanh.pop %v3845
    %v3847 = vsub.f32 1.0, %v3836
    %3849 = vrot.lane.b32.xlu0 %v3846, 96
    %v3850 = vpop.permute.xlu0 %3849
    %v3852 = vmul.f32 %v3847, %v3850
    %v3853 = vmul.f32 %v3836, %v3501
    %v3854 = vadd.f32 %v3852, %v3853
    %v3855 = vmul.f32 %v3854, %v2794
    %3857 = vrot.lane.b32.xlu0 %v3855, 96
    %v3858 = vpop.permute.xlu0 %3857
    %v3860 = vsel %vm232, %v3858, 0.0
    %3861 = vadd.xlane.f32.xlu0 %v3860
    %v3862 = vpop.xlane.xlu0 %3861
    %v3863 = vadd.f32 %v3862, %v2398
    %vm3864 = vcmp.eq.s32.totalorder %v2375, 3
    %3866 = vset.pattern.permute.xlu0 0
    %3867 = vperm.xlu0 %3866, %v3863
    %v3868 = vpop.permute.xlu0 %3867
    %v3870 = vsel %vm3864, %v3868, %v3517
    %3871 = vst.msk [vmem:[%s3] sm:$0xff] %vm2268, %v3870
    // Predicated region
    $region18: #{attention_seq2seq_forward.1} parent=1 // pred_check
      _
    $region19: #{attention_seq2seq_forward.1} parent=1 // pred_check_branch
      %3873 = sbr.rel (0) target = $region21
    $region20: #{attention_seq2seq_forward.1} parent=1 // pred_region
      _
    $region21: #{attention_seq2seq_forward.1} parent=1 // pred_fallthru
      _
    // Predicated region
    $region22: #{attention_seq2seq_forward.1} parent=1 // pred_check
      _
    $region23: #{attention_seq2seq_forward.1} parent=1 // pred_check_branch
      %3875 = sbr.rel (0) target = $region25
    $region24: #{attention_seq2seq_forward.1} parent=1 // pred_region
      _
    $region25: #{attention_seq2seq_forward.1} parent=1 // pred_fallthru
      _
    %3876 = vsyncpa [#allocation8], 1

</llo_original>
